<compile_context>
chip_gen: v7x
topology: tpu7x:2x2x1
jax: 0.10.0
libtpu: 0.0.40
codegen_flags: <defaults>
</compile_context>

<pallas_src>
import functools

import jax
import jax.numpy as jnp
import numpy as np
from jax.experimental import pallas as pl
from jax.experimental.pallas import tpu as pltpu

_LN_EPS = 1e-5  # PyTorch nn.LayerNorm default


def _round_up(x, m):
    return ((x + m - 1) // m) * m


def _layer_norm(x, gamma, beta):
    mu = jnp.mean(x, axis=-1, keepdims=True)
    xc = x - mu
    var = jnp.mean(xc * xc, axis=-1, keepdims=True)
    return xc * jax.lax.rsqrt(var + _LN_EPS) * gamma + beta


def _softmax_size1(x):
    # Faithful to the module: softmax over a trailing size-1 axis is exp(x-max)/sum,
    # which is exactly 1 for finite x.  Kept as a live op (not folded to ones).
    # TODO(synk): the PyTorch module applies F.softmax(dim=-1) to a (B, L, 1) tensor,
    # which makes the pooling weights identically 1 and the whole attention pipeline
    # dead w.r.t. the output.  Confirm intent with the model owner before stripping it
    # (that would make this kernel pure HBM-bandwidth bound).
    return jnp.exp(x - x)


def _co_encoder_kernel(nv_ref, uv_ref, wcat_ref, bcat_ref, vh_ref, vd_ref, sc_ref,
                       out_ref, *, L):
    f32 = jnp.float32
    nv2 = nv_ref[...]                              # (TB*L, D) f32
    uv2 = uv_ref[...]
    TBL, D = nv2.shape
    TB = TBL // L
    HP = vh_ref.shape[-1]                          # hidden padded to a full lane tile (128)

    # --- fused projections: one (TB*L, D) x (D, 2*HP) bf16 matmul per side ----------
    W_n = wcat_ref[0]                              # (D, 2*HP) bf16  [att_1 | co_att]
    W_u = wcat_ref[1]
    b_n = bcat_ref[0:1, :]                         # (1, 2*HP) f32
    b_u = bcat_ref[1:2, :]
    nv16 = nv2.astype(jnp.bfloat16)
    uv16 = uv2.astype(jnp.bfloat16)
    prec = jax.lax.Precision.DEFAULT               # single-pass MXU, f32 accumulate
    pn = jnp.dot(nv16, W_n, preferred_element_type=f32, precision=prec) + b_n
    pu = jnp.dot(uv16, W_u, preferred_element_type=f32, precision=prec) + b_u

    hn3 = jnp.tanh(pn[:, :HP]).reshape(TB, L, HP)  # lane-tile aligned halves
    hu3 = jnp.tanh(pu[:, :HP]).reshape(TB, L, HP)
    cn3 = pn[:, HP:].reshape(TB, L, HP)            # co_att branch (padding lanes are 0)
    cu3 = pu[:, HP:].reshape(TB, L, HP)

    # --- Linear(H->1) heads: VPU broadcast-mul + lane reduce (no N=1 matmuls) -------
    w_n2 = vh_ref[0:1, :]                          # (1, HP), zero-padded
    w_u2 = vh_ref[1:2, :]
    news_att_bt = jnp.sum(hn3 * w_n2, axis=-1) + sc_ref[0]       # (TB, L)
    user_att_bt = jnp.sum(hu3 * w_u2, axis=-1) + sc_ref[1]
    news_att_t = news_att_bt.T                                   # (L, TB)  batch on lanes
    user_att_t = user_att_bt.T

    # --- cross attention scores on the VPU, re-laid out with TB on the lane axis ----
    rows = []
    for j in range(L):                                           # L is small & static
        s_j = jnp.sum(cn3 * cu3[:, j:j + 1, :], axis=-1)         # (TB, L_i) = cross[:, :, j]
        rows.append(s_j.T)                                       # (L_i, TB)
    cross_ji = jnp.stack(rows, axis=0)                           # (L_j, L_i, TB)

    # softmax over the user index j (axis 0): dense vregs, cheap cross-vreg reduces
    m_j = jnp.max(cross_ji, axis=0, keepdims=True)
    e_j = jnp.exp(cross_ji - m_j)
    cu_att = e_j * pl.reciprocal(jnp.sum(e_j, axis=0, keepdims=True), approx=True)
    cua_t = 0.01 * jnp.sum(cu_att * news_att_t[:, None, :], axis=0)       # (L_i, TB)
    ua_t = _softmax_size1(user_att_t + cua_t)                             # (L, TB) == 1

    # softmax over the news index i (axis 1): sublane reduces
    m_i = jnp.max(cross_ji, axis=1, keepdims=True)
    e_i = jnp.exp(cross_ji - m_i)
    cn_att = e_i * pl.reciprocal(jnp.sum(e_i, axis=1, keepdims=True), approx=True)
    cna_t = 0.01 * jnp.sum(cn_att * ua_t[None, :, :], axis=1)             # (L_j, TB)
    na_t = _softmax_size1(news_att_t + cna_t)                             # (L, TB) == 1

    # --- attention pooling + LayerNorm + dot-product score --------------------------
    vd = vd_ref[...]
    g1, be1 = vd[0:1, :], vd[1:2, :]
    g2, be2 = vd[2:3, :], vd[3:4, :]
    na_bt = na_t.T                                   # (TB, L)
    ua_bt = ua_t.T
    news_vec = jnp.sum(nv2.reshape(TB, L, D) * na_bt[:, :, None], axis=1)   # (TB, D)
    user_vec = jnp.sum(uv2.reshape(TB, L, D) * ua_bt[:, :, None], axis=1)
    news_vec = _layer_norm(news_vec, g1, be1)
    user_vec = _layer_norm(user_vec, g2, be2)
    score = jnp.sum(news_vec * user_vec, axis=-1)                           # (TB,)
    out_ref[...] = score[None, None, :]                                     # (1, 1, TB)


def _tpu_generation():
    try:
        kind = jax.devices()[0].device_kind.lower()
    except Exception:
        return 0
    for tag, gen in (("v7", 7), ("tpu7", 7), ("v6", 6), ("v5", 5), ("v4", 4),
                     ("v3", 3), ("v2", 2)):
        if tag in kind:
            return gen
    return 0


def news_user_co_encoder(params, news_vecs, user_vecs, *, block_rows=None):
    B, L, D = news_vecs.shape
    H = params["Wn1"].shape[1]
    HP = _round_up(max(H, 8), 128)                 # pad hidden to a full 128-lane tile
    f32 = jnp.float32

    gen = _tpu_generation()
    if block_rows is None:
        if gen in (4, 5, 6):
            block_rows = 256                        # 128 MiB VMEM: bigger tiles
        elif gen in (2, 3):
            block_rows = 64
        else:
            block_rows = 128                        # v7x (64 MiB/TC) or unknown: conservative
    if gen in (4, 5, 6):
        vmem_limit = 80 * 1024 * 1024
    elif gen in (2, 3):
        vmem_limit = 12 * 1024 * 1024
    else:
        vmem_limit = 40 * 1024 * 1024

    tb = min(block_rows, _round_up(B, 8))
    if gen >= 7 and B > 8:
        # keep >= 2 grid blocks so the ("parallel",) axis can feed both TensorCores
        tb = min(tb, _round_up((B + 1) // 2, 8))
    nblocks = -(-B // tb)
    R = nblocks * tb
    if R != B:                                      # pad so the last block is in-bounds
        pad = ((0, R - B), (0, 0), (0, 0))
        news_vecs = jnp.pad(news_vecs, pad)
        user_vecs = jnp.pad(user_vecs, pad)

    # pre-flatten: the matmul operand arrives as (tb*L, D) with no in-kernel reshape
    news_flat = news_vecs.reshape(R * L, D)
    user_flat = user_vecs.reshape(R * L, D)

    def _pad_h(v):                                  # (H,)   -> (HP,)
        return jnp.pad(jnp.asarray(v, f32), (0, HP - H))

    def _pad_cols(W):                               # (D, H) -> (D, HP)
        return jnp.pad(jnp.asarray(W, f32), ((0, 0), (0, HP - H)))

    # fused, lane-aligned weight packing: [att_1 | 0-pad | co_att | 0-pad], bf16
    w_cat = jnp.stack([
        jnp.concatenate([_pad_cols(params["Wn1"]), _pad_cols(params["Wco"])], axis=1),
        jnp.concatenate([_pad_cols(params["Wu1"]), _pad_cols(params["Wco"])], axis=1),
    ]).astype(jnp.bfloat16)                                                 # (2, D, 2*HP)
    b_cat = jnp.stack([
        jnp.concatenate([_pad_h(params["bn1"]), _pad_h(params["bco"])]),
        jnp.concatenate([_pad_h(params["bu1"]), _pad_h(params["bco"])]),
    ])                                                                      # (2, 2*HP)
    vec_h = jnp.stack([_pad_h(params["wn2"]), _pad_h(params["wu2"])])       # (2, HP)
    vec_d = jnp.stack([params["g1"], params["beta1"],
                       params["g2"], params["beta2"]]).astype(f32)          # (4, D)
    scal = jnp.stack([jnp.asarray(params["bn2"], f32),
                      jnp.asarray(params["bu2"], f32)])                     # (2,) -> SMEM

    tbl = tb * L
    in_specs = [
        pl.BlockSpec((tbl, D), lambda i: (i, 0)),
        pl.BlockSpec((tbl, D), lambda i: (i, 0)),
        pl.BlockSpec((2, D, 2 * HP), lambda i: (0, 0, 0)),
        pl.BlockSpec((2, 2 * HP), lambda i: (0, 0)),
        pl.BlockSpec((2, HP), lambda i: (0, 0)),
        pl.BlockSpec((4, D), lambda i: (0, 0)),
        pl.BlockSpec(memory_space=pltpu.MemorySpace.SMEM),
    ]
    out_spec = pl.BlockSpec((1, 1, tb), lambda i: (i, 0, 0))

    out = pl.pallas_call(
        functools.partial(_co_encoder_kernel, L=L),
        out_shape=jax.ShapeDtypeStruct((nblocks, 1, tb), f32),
        grid=(nblocks,),
        in_specs=in_specs,
        out_specs=out_spec,
        compiler_params=pltpu.CompilerParams(
            dimension_semantics=("parallel",),
            vmem_limit_bytes=vmem_limit),
    )(news_flat, user_flat, w_cat, b_cat, vec_h, vec_d, scal)

    return out.reshape(R)[:B].reshape(B, 1)


# ----------------------------- reference / init ------------------------------

def _layer_norm_ref(x, gamma, beta):
    mu = jnp.mean(x, axis=-1, keepdims=True)
    xc = x - mu
    var = jnp.mean(xc * xc, axis=-1, keepdims=True)
    return xc / jnp.sqrt(var + _LN_EPS) * gamma + beta


def reference_forward(p, news_vecs, user_vecs):
    # Pure-JAX mirror of the PyTorch forward.
    def lin(x, W, b):
        return x @ W + b

    news_att = jnp.tanh(lin(news_vecs, p["Wn1"], p["bn1"])) @ p["wn2"][:, None] + p["bn2"]
    user_att = jnp.tanh(lin(user_vecs, p["Wu1"], p["bu1"])) @ p["wu2"][:, None] + p["bu2"]
    cross_news_vecs = lin(news_vecs, p["Wco"], p["bco"])
    cross_user_vecs = lin(user_vecs, p["Wco"], p["bco"])
    cross_att = jnp.matmul(cross_news_vecs, jnp.swapaxes(cross_user_vecs, -1, -2))
    cross_user_att = jax.nn.softmax(cross_att, axis=-1)
    cross_user_att = 0.01 * jnp.matmul(cross_user_att, news_att)
    user_att = jax.nn.softmax(user_att + cross_user_att, axis=-1)
    cross_news_att = jax.nn.softmax(jnp.swapaxes(cross_att, -1, -2), axis=-1)
    cross_news_att = 0.01 * jnp.matmul(cross_news_att, user_att)
    news_att = jax.nn.softmax(news_att + cross_news_att, axis=-1)
    news_vec = jnp.matmul(jnp.swapaxes(news_att, -1, -2), news_vecs)
    news_vec = _layer_norm_ref(news_vec, p["g1"], p["beta1"])
    user_vec = jnp.matmul(jnp.swapaxes(user_att, -1, -2), user_vecs)
    user_vec = _layer_norm_ref(user_vec, p["g2"], p["beta2"])
    return jnp.sum(news_vec * user_vec, axis=2)


def init_params(key, input_dim, hidden=100):
    D, H = input_dim, hidden
    ks = jax.random.split(key, 10)

    def w(k, shape, scale):
        return jax.random.normal(k, shape, jnp.float32) * scale

    sD = 1.0 / np.sqrt(D)
    sH = 1.0 / np.sqrt(H)
    return dict(
        Wn1=w(ks[0], (D, H), sD), bn1=w(ks[1], (H,), 0.02),
        wn2=w(ks[2], (H,), sH), bn2=jnp.asarray(0.01, jnp.float32),
        Wu1=w(ks[3], (D, H), sD), bu1=w(ks[4], (H,), 0.02),
        wu2=w(ks[5], (H,), sH), bu2=jnp.asarray(-0.01, jnp.float32),
        Wco=w(ks[6], (D, H), sD), bco=w(ks[7], (H,), 0.02),
        g1=1.0 + 0.1 * w(ks[8], (D,), 1.0), beta1=jnp.full((D,), 0.01, jnp.float32),
        g2=1.0 - 0.1 * w(ks[9], (D,), 1.0), beta2=jnp.full((D,), -0.01, jnp.float32),
    )


if __name__ == "__main__":
    # Keep the pure-JAX reference at full f32 matmul accuracy; the kernel's dots pass
    # an explicit precision, so this config does not slow the Pallas kernel down.
    jax.config.update("jax_default_matmul_precision", "highest")

    key = jax.random.PRNGKey(0)
    B, L, D, H = 8, 8, 400, 100        # input_dim=400 is implied by nn.LayerNorm(400)
    k1, k2, kp = jax.random.split(key, 3)
    news_vecs = jax.random.normal(k1, (B, L, D), jnp.float32)
    user_vecs = jax.random.normal(k2, (B, L, D), jnp.float32)
    params = init_params(kp, D, H)

    score = news_user_co_encoder(params, news_vecs, user_vecs)
    jax.block_until_ready(score)

    ref = reference_forward(params, news_vecs, user_vecs)
    np.testing.assert_allclose(np.asarray(score), np.asarray(ref), rtol=2e-3, atol=2e-3)

    print("KERNEL_OK")
</pallas_src>

<mosaic_0001>
module attributes {stable_mosaic.version = 11 : i64} {
  func.func @_co_encoder_kernel(%arg0: i32, %arg1: memref<64x400xf32, #tpu.memory_space<vmem>>, %arg2: memref<64x400xf32, #tpu.memory_space<vmem>>, %arg3: memref<2x400x256xbf16, #tpu.memory_space<vmem>>, %arg4: memref<2x256xf32, #tpu.memory_space<vmem>>, %arg5: memref<2x128xf32, #tpu.memory_space<vmem>>, %arg6: memref<4x400xf32, #tpu.memory_space<vmem>>, %arg7: memref<2xf32, #tpu.memory_space<smem>>, %arg8: memref<1x1x8xf32, #tpu.memory_space<vmem>>) attributes {dimension_semantics = [#tpu.dimension_semantics<parallel>], iteration_bounds = array<i64: 1>, scalar_prefetch = 0 : i64, scratch_operands = 0 : i64, tpu.core_type = #tpu.core_type<tc>, window_params = [{transform_indices = @transform_0, window_bounds = array<i64: 64, 400>}, {transform_indices = @transform_1, window_bounds = array<i64: 64, 400>}, {pipeline_mode = #tpu.pipeline_mode<synchronous>, transform_indices = @transform_2, window_bounds = array<i64: 2, 400, 256>}, {pipeline_mode = #tpu.pipeline_mode<synchronous>, transform_indices = @transform_3, window_bounds = array<i64: 2, 256>}, {pipeline_mode = #tpu.pipeline_mode<synchronous>, transform_indices = @transform_4, window_bounds = array<i64: 2, 128>}, {pipeline_mode = #tpu.pipeline_mode<synchronous>, transform_indices = @transform_5, window_bounds = array<i64: 4, 400>}, {transform_indices = @transform_6, window_bounds = array<i64: 2>}, {transform_indices = @transform_7, window_bounds = array<i64: 1, 1, 8>}]} {
    %c0 = arith.constant 0 : index
    %c0_0 = arith.constant 0 : index
    %0 = vector.load %arg1[%c0, %c0_0] : memref<64x400xf32, #tpu.memory_space<vmem>>, vector<64x400xf32>
    %c0_1 = arith.constant 0 : index
    %c0_2 = arith.constant 0 : index
    %1 = vector.load %arg2[%c0_1, %c0_2] : memref<64x400xf32, #tpu.memory_space<vmem>>, vector<64x400xf32>
    %c0_3 = arith.constant 0 : index
    %c0_4 = arith.constant 0 : index
    %c0_5 = arith.constant 0 : index
    %2 = vector.load %arg3[%c0_3, %c0_4, %c0_5] : memref<2x400x256xbf16, #tpu.memory_space<vmem>>, vector<1x400x256xbf16>
    %3 = vector.shape_cast %2 : vector<1x400x256xbf16> to vector<400x256xbf16>
    %c1 = arith.constant 1 : index
    %c0_6 = arith.constant 0 : index
    %c0_7 = arith.constant 0 : index
    %4 = vector.load %arg3[%c1, %c0_6, %c0_7] : memref<2x400x256xbf16, #tpu.memory_space<vmem>>, vector<1x400x256xbf16>
    %5 = vector.shape_cast %4 : vector<1x400x256xbf16> to vector<400x256xbf16>
    %c0_8 = arith.constant 0 : index
    %c0_9 = arith.constant 0 : index
    %6 = vector.load %arg4[%c0_8, %c0_9] : memref<2x256xf32, #tpu.memory_space<vmem>>, vector<1x256xf32>
    %c1_10 = arith.constant 1 : index
    %c0_11 = arith.constant 0 : index
    %7 = vector.load %arg4[%c1_10, %c0_11] : memref<2x256xf32, #tpu.memory_space<vmem>>, vector<1x256xf32>
    %8 = arith.truncf %0 : vector<64x400xf32> to vector<64x400xbf16>
    %9 = arith.truncf %1 : vector<64x400xf32> to vector<64x400xbf16>
    %cst = arith.constant dense<0.000000e+00> : vector<64x256xf32>
    %10 = tpu.matmul %8, %3, %cst {dimension_numbers = #tpu.dot_dimension_numbers<[1], [0], [0], [1], [0, 0, 1, 1], [], []>} : vector<64x400xbf16>, vector<400x256xbf16>, vector<64x256xf32> -> vector<64x256xf32>
    %11 = vector.broadcast %6 : vector<1x256xf32> to vector<64x256xf32>
    %12 = arith.addf %10, %11 : vector<64x256xf32>
    %cst_12 = arith.constant dense<0.000000e+00> : vector<64x256xf32>
    %13 = tpu.matmul %9, %5, %cst_12 {dimension_numbers = #tpu.dot_dimension_numbers<[1], [0], [0], [1], [0, 0, 1, 1], [], []>} : vector<64x400xbf16>, vector<400x256xbf16>, vector<64x256xf32> -> vector<64x256xf32>
    %14 = vector.broadcast %7 : vector<1x256xf32> to vector<64x256xf32>
    %15 = arith.addf %13, %14 : vector<64x256xf32>
    %16 = vector.extract_strided_slice %12 {offsets = [0, 0], sizes = [64, 128], strides = [1, 1]} : vector<64x256xf32> to vector<64x128xf32>
    %17 = math.tanh %16 : vector<64x128xf32>
    %18 = vector.shape_cast %17 : vector<64x128xf32> to vector<8x8x128xf32>
    %19 = vector.extract_strided_slice %15 {offsets = [0, 0], sizes = [64, 128], strides = [1, 1]} : vector<64x256xf32> to vector<64x128xf32>
    %20 = math.tanh %19 : vector<64x128xf32>
    %21 = vector.shape_cast %20 : vector<64x128xf32> to vector<8x8x128xf32>
    %22 = vector.extract_strided_slice %12 {offsets = [0, 128], sizes = [64, 128], strides = [1, 1]} : vector<64x256xf32> to vector<64x128xf32>
    %23 = vector.shape_cast %22 : vector<64x128xf32> to vector<8x8x128xf32>
    %24 = vector.extract_strided_slice %15 {offsets = [0, 128], sizes = [64, 128], strides = [1, 1]} : vector<64x256xf32> to vector<64x128xf32>
    %25 = vector.shape_cast %24 : vector<64x128xf32> to vector<8x8x128xf32>
    %c0_13 = arith.constant 0 : index
    %c0_14 = arith.constant 0 : index
    %26 = vector.load %arg5[%c0_13, %c0_14] : memref<2x128xf32, #tpu.memory_space<vmem>>, vector<1x128xf32>
    %c1_15 = arith.constant 1 : index
    %c0_16 = arith.constant 0 : index
    %27 = vector.load %arg5[%c1_15, %c0_16] : memref<2x128xf32, #tpu.memory_space<vmem>>, vector<1x128xf32>
    %28 = vector.shape_cast %26 : vector<1x128xf32> to vector<1x1x128xf32>
    %29 = vector.broadcast %28 : vector<1x1x128xf32> to vector<8x8x128xf32>
    %30 = arith.mulf %18, %29 : vector<8x8x128xf32>
    %cst_17 = arith.constant dense<0.000000e+00> : vector<8x8xf32>
    %31 = vector.multi_reduction <add>, %30, %cst_17 [2] : vector<8x8x128xf32> to vector<8x8xf32>
    %c0_18 = arith.constant 0 : index
    %32 = memref.load %arg7[%c0_18] : memref<2xf32, #tpu.memory_space<smem>>
    %33 = vector.broadcast %32 : f32 to vector<8x8xf32>
    %34 = arith.addf %31, %33 : vector<8x8xf32>
    %35 = vector.shape_cast %27 : vector<1x128xf32> to vector<1x1x128xf32>
    %36 = vector.broadcast %35 : vector<1x1x128xf32> to vector<8x8x128xf32>
    %37 = arith.mulf %21, %36 : vector<8x8x128xf32>
    %cst_19 = arith.constant dense<0.000000e+00> : vector<8x8xf32>
    %38 = vector.multi_reduction <add>, %37, %cst_19 [2] : vector<8x8x128xf32> to vector<8x8xf32>
    %c1_20 = arith.constant 1 : index
    %39 = memref.load %arg7[%c1_20] : memref<2xf32, #tpu.memory_space<smem>>
    %40 = vector.broadcast %39 : f32 to vector<8x8xf32>
    %41 = arith.addf %38, %40 : vector<8x8xf32>
    %42 = tpu.transpose %34, [1, 0] : vector<8x8xf32> -> vector<8x8xf32>
    %43 = tpu.transpose %41, [1, 0] : vector<8x8xf32> -> vector<8x8xf32>
    %44 = vector.extract_strided_slice %25 {offsets = [0, 0, 0], sizes = [8, 1, 128], strides = [1, 1, 1]} : vector<8x8x128xf32> to vector<8x1x128xf32>
    %45 = vector.broadcast %44 : vector<8x1x128xf32> to vector<8x8x128xf32>
    %46 = arith.mulf %23, %45 : vector<8x8x128xf32>
    %cst_21 = arith.constant dense<0.000000e+00> : vector<8x8xf32>
    %47 = vector.multi_reduction <add>, %46, %cst_21 [2] : vector<8x8x128xf32> to vector<8x8xf32>
    %48 = tpu.transpose %47, [1, 0] : vector<8x8xf32> -> vector<8x8xf32>
    %49 = vector.extract_strided_slice %25 {offsets = [0, 1, 0], sizes = [8, 1, 128], strides = [1, 1, 1]} : vector<8x8x128xf32> to vector<8x1x128xf32>
    %50 = vector.broadcast %49 : vector<8x1x128xf32> to vector<8x8x128xf32>
    %51 = arith.mulf %23, %50 : vector<8x8x128xf32>
    %cst_22 = arith.constant dense<0.000000e+00> : vector<8x8xf32>
    %52 = vector.multi_reduction <add>, %51, %cst_22 [2] : vector<8x8x128xf32> to vector<8x8xf32>
    %53 = tpu.transpose %52, [1, 0] : vector<8x8xf32> -> vector<8x8xf32>
    %54 = vector.extract_strided_slice %25 {offsets = [0, 2, 0], sizes = [8, 1, 128], strides = [1, 1, 1]} : vector<8x8x128xf32> to vector<8x1x128xf32>
    %55 = vector.broadcast %54 : vector<8x1x128xf32> to vector<8x8x128xf32>
    %56 = arith.mulf %23, %55 : vector<8x8x128xf32>
    %cst_23 = arith.constant dense<0.000000e+00> : vector<8x8xf32>
    %57 = vector.multi_reduction <add>, %56, %cst_23 [2] : vector<8x8x128xf32> to vector<8x8xf32>
    %58 = tpu.transpose %57, [1, 0] : vector<8x8xf32> -> vector<8x8xf32>
    %59 = vector.extract_strided_slice %25 {offsets = [0, 3, 0], sizes = [8, 1, 128], strides = [1, 1, 1]} : vector<8x8x128xf32> to vector<8x1x128xf32>
    %60 = vector.broadcast %59 : vector<8x1x128xf32> to vector<8x8x128xf32>
    %61 = arith.mulf %23, %60 : vector<8x8x128xf32>
    %cst_24 = arith.constant dense<0.000000e+00> : vector<8x8xf32>
    %62 = vector.multi_reduction <add>, %61, %cst_24 [2] : vector<8x8x128xf32> to vector<8x8xf32>
    %63 = tpu.transpose %62, [1, 0] : vector<8x8xf32> -> vector<8x8xf32>
    %64 = vector.extract_strided_slice %25 {offsets = [0, 4, 0], sizes = [8, 1, 128], strides = [1, 1, 1]} : vector<8x8x128xf32> to vector<8x1x128xf32>
    %65 = vector.broadcast %64 : vector<8x1x128xf32> to vector<8x8x128xf32>
    %66 = arith.mulf %23, %65 : vector<8x8x128xf32>
    %cst_25 = arith.constant dense<0.000000e+00> : vector<8x8xf32>
    %67 = vector.multi_reduction <add>, %66, %cst_25 [2] : vector<8x8x128xf32> to vector<8x8xf32>
    %68 = tpu.transpose %67, [1, 0] : vector<8x8xf32> -> vector<8x8xf32>
    %69 = vector.extract_strided_slice %25 {offsets = [0, 5, 0], sizes = [8, 1, 128], strides = [1, 1, 1]} : vector<8x8x128xf32> to vector<8x1x128xf32>
    %70 = vector.broadcast %69 : vector<8x1x128xf32> to vector<8x8x128xf32>
    %71 = arith.mulf %23, %70 : vector<8x8x128xf32>
    %cst_26 = arith.constant dense<0.000000e+00> : vector<8x8xf32>
    %72 = vector.multi_reduction <add>, %71, %cst_26 [2] : vector<8x8x128xf32> to vector<8x8xf32>
    %73 = tpu.transpose %72, [1, 0] : vector<8x8xf32> -> vector<8x8xf32>
    %74 = vector.extract_strided_slice %25 {offsets = [0, 6, 0], sizes = [8, 1, 128], strides = [1, 1, 1]} : vector<8x8x128xf32> to vector<8x1x128xf32>
    %75 = vector.broadcast %74 : vector<8x1x128xf32> to vector<8x8x128xf32>
    %76 = arith.mulf %23, %75 : vector<8x8x128xf32>
    %cst_27 = arith.constant dense<0.000000e+00> : vector<8x8xf32>
    %77 = vector.multi_reduction <add>, %76, %cst_27 [2] : vector<8x8x128xf32> to vector<8x8xf32>
    %78 = tpu.transpose %77, [1, 0] : vector<8x8xf32> -> vector<8x8xf32>
    %79 = vector.extract_strided_slice %25 {offsets = [0, 7, 0], sizes = [8, 1, 128], strides = [1, 1, 1]} : vector<8x8x128xf32> to vector<8x1x128xf32>
    %80 = vector.broadcast %79 : vector<8x1x128xf32> to vector<8x8x128xf32>
    %81 = arith.mulf %23, %80 : vector<8x8x128xf32>
    %cst_28 = arith.constant dense<0.000000e+00> : vector<8x8xf32>
    %82 = vector.multi_reduction <add>, %81, %cst_28 [2] : vector<8x8x128xf32> to vector<8x8xf32>
    %83 = tpu.transpose %82, [1, 0] : vector<8x8xf32> -> vector<8x8xf32>
    %84 = vector.shape_cast %48 : vector<8x8xf32> to vector<1x8x8xf32>
    %85 = vector.shape_cast %53 : vector<8x8xf32> to vector<1x8x8xf32>
    %86 = vector.shape_cast %58 : vector<8x8xf32> to vector<1x8x8xf32>
    %87 = vector.shape_cast %63 : vector<8x8xf32> to vector<1x8x8xf32>
    %88 = vector.shape_cast %68 : vector<8x8xf32> to vector<1x8x8xf32>
    %89 = vector.shape_cast %73 : vector<8x8xf32> to vector<1x8x8xf32>
    %90 = vector.shape_cast %78 : vector<8x8xf32> to vector<1x8x8xf32>
    %91 = vector.shape_cast %83 : vector<8x8xf32> to vector<1x8x8xf32>
    %92 = tpu.concatenate %84, %85, %86, %87, %88, %89, %90, %91 in 0 : vector<1x8x8xf32>, vector<1x8x8xf32>, vector<1x8x8xf32>, vector<1x8x8xf32>, vector<1x8x8xf32>, vector<1x8x8xf32>, vector<1x8x8xf32>, vector<1x8x8xf32> -> vector<8x8x8xf32>
    %cst_29 = arith.constant dense<0xFF800000> : vector<8x8xf32>
    %93 = vector.multi_reduction <maximumf>, %92, %cst_29 [0] : vector<8x8x8xf32> to vector<8x8xf32>
    %94 = vector.shape_cast %93 : vector<8x8xf32> to vector<1x8x8xf32>
    %95 = vector.broadcast %94 : vector<1x8x8xf32> to vector<8x8x8xf32>
    %96 = arith.subf %92, %95 : vector<8x8x8xf32>
    %97 = math.exp %96 : vector<8x8x8xf32>
    %cst_30 = arith.constant dense<0.000000e+00> : vector<8x8xf32>
    %98 = vector.multi_reduction <add>, %97, %cst_30 [0] : vector<8x8x8xf32> to vector<8x8xf32>
    %99 = vector.shape_cast %98 : vector<8x8xf32> to vector<1x8x8xf32>
    %100 = tpu.reciprocal %99 {approx = true} : vector<1x8x8xf32> -> vector<1x8x8xf32>
    %101 = vector.broadcast %100 : vector<1x8x8xf32> to vector<8x8x8xf32>
    %102 = arith.mulf %97, %101 : vector<8x8x8xf32>
    %103 = vector.shape_cast %42 : vector<8x8xf32> to vector<8x1x8xf32>
    %104 = vector.broadcast %103 : vector<8x1x8xf32> to vector<8x8x8xf32>
    %105 = arith.mulf %102, %104 : vector<8x8x8xf32>
    %cst_31 = arith.constant dense<0.000000e+00> : vector<8x8xf32>
    %106 = vector.multi_reduction <add>, %105, %cst_31 [0] : vector<8x8x8xf32> to vector<8x8xf32>
    %cst_32 = arith.constant 0.00999999977 : f32
    %107 = vector.broadcast %cst_32 : f32 to vector<8x8xf32>
    %108 = arith.mulf %107, %106 : vector<8x8xf32>
    %109 = arith.addf %43, %108 : vector<8x8xf32>
    %110 = arith.subf %109, %109 : vector<8x8xf32>
    %111 = math.exp %110 : vector<8x8xf32>
    %cst_33 = arith.constant dense<0xFF800000> : vector<8x8xf32>
    %112 = vector.multi_reduction <maximumf>, %92, %cst_33 [1] : vector<8x8x8xf32> to vector<8x8xf32>
    %113 = vector.shape_cast %112 : vector<8x8xf32> to vector<8x1x8xf32>
    %114 = vector.broadcast %113 : vector<8x1x8xf32> to vector<8x8x8xf32>
    %115 = arith.subf %92, %114 : vector<8x8x8xf32>
    %116 = math.exp %115 : vector<8x8x8xf32>
    %cst_34 = arith.constant dense<0.000000e+00> : vector<8x8xf32>
    %117 = vector.multi_reduction <add>, %116, %cst_34 [1] : vector<8x8x8xf32> to vector<8x8xf32>
    %118 = vector.shape_cast %117 : vector<8x8xf32> to vector<8x1x8xf32>
    %119 = tpu.reciprocal %118 {approx = true} : vector<8x1x8xf32> -> vector<8x1x8xf32>
    %120 = vector.broadcast %119 : vector<8x1x8xf32> to vector<8x8x8xf32>
    %121 = arith.mulf %116, %120 : vector<8x8x8xf32>
    %122 = vector.shape_cast %111 : vector<8x8xf32> to vector<1x8x8xf32>
    %123 = vector.broadcast %122 : vector<1x8x8xf32> to vector<8x8x8xf32>
    %124 = arith.mulf %121, %123 : vector<8x8x8xf32>
    %cst_35 = arith.constant dense<0.000000e+00> : vector<8x8xf32>
    %125 = vector.multi_reduction <add>, %124, %cst_35 [1] : vector<8x8x8xf32> to vector<8x8xf32>
    %cst_36 = arith.constant 0.00999999977 : f32
    %126 = vector.broadcast %cst_36 : f32 to vector<8x8xf32>
    %127 = arith.mulf %126, %125 : vector<8x8xf32>
    %128 = arith.addf %42, %127 : vector<8x8xf32>
    %129 = arith.subf %128, %128 : vector<8x8xf32>
    %130 = math.exp %129 : vector<8x8xf32>
    %c0_37 = arith.constant 0 : index
    %c0_38 = arith.constant 0 : index
    %131 = vector.load %arg6[%c0_37, %c0_38] : memref<4x400xf32, #tpu.memory_space<vmem>>, vector<4x400xf32>
    %132 = vector.extract_strided_slice %131 {offsets = [0, 0], sizes = [1, 400], strides = [1, 1]} : vector<4x400xf32> to vector<1x400xf32>
    %133 = vector.extract_strided_slice %131 {offsets = [1, 0], sizes = [1, 400], strides = [1, 1]} : vector<4x400xf32> to vector<1x400xf32>
    %134 = vector.extract_strided_slice %131 {offsets = [2, 0], sizes = [1, 400], strides = [1, 1]} : vector<4x400xf32> to vector<1x400xf32>
    %135 = vector.extract_strided_slice %131 {offsets = [3, 0], sizes = [1, 400], strides = [1, 1]} : vector<4x400xf32> to vector<1x400xf32>
    %136 = tpu.transpose %130, [1, 0] : vector<8x8xf32> -> vector<8x8xf32>
    %137 = tpu.transpose %111, [1, 0] : vector<8x8xf32> -> vector<8x8xf32>
    %138 = vector.shape_cast %0 : vector<64x400xf32> to vector<8x8x400xf32>
    %139 = vector.shape_cast %136 : vector<8x8xf32> to vector<8x8x1xf32>
    %140 = vector.broadcast %139 : vector<8x8x1xf32> to vector<8x8x400xf32>
    %141 = arith.mulf %138, %140 : vector<8x8x400xf32>
    %cst_39 = arith.constant dense<0.000000e+00> : vector<8x400xf32>
    %142 = vector.multi_reduction <add>, %141, %cst_39 [1] : vector<8x8x400xf32> to vector<8x400xf32>
    %143 = vector.shape_cast %1 : vector<64x400xf32> to vector<8x8x400xf32>
    %144 = vector.shape_cast %137 : vector<8x8xf32> to vector<8x8x1xf32>
    %145 = vector.broadcast %144 : vector<8x8x1xf32> to vector<8x8x400xf32>
    %146 = arith.mulf %143, %145 : vector<8x8x400xf32>
    %cst_40 = arith.constant dense<0.000000e+00> : vector<8x400xf32>
    %147 = vector.multi_reduction <add>, %146, %cst_40 [1] : vector<8x8x400xf32> to vector<8x400xf32>
    %cst_41 = arith.constant dense<0.000000e+00> : vector<8xf32>
    %148 = vector.multi_reduction <add>, %142, %cst_41 [1] : vector<8x400xf32> to vector<8xf32>
    %149 = vector.shape_cast %148 : vector<8xf32> to vector<8x1xf32>
    %cst_42 = arith.constant 4.000000e+02 : f32
    %150 = vector.broadcast %cst_42 : f32 to vector<8x1xf32>
    %151 = arith.divf %149, %150 : vector<8x1xf32>
    %152 = vector.broadcast %151 : vector<8x1xf32> to vector<8x400xf32>
    %153 = arith.subf %142, %152 : vector<8x400xf32>
    %154 = arith.mulf %153, %153 : vector<8x400xf32>
    %cst_43 = arith.constant dense<0.000000e+00> : vector<8xf32>
    %155 = vector.multi_reduction <add>, %154, %cst_43 [1] : vector<8x400xf32> to vector<8xf32>
    %156 = vector.shape_cast %155 : vector<8xf32> to vector<8x1xf32>
    %cst_44 = arith.constant 4.000000e+02 : f32
    %157 = vector.broadcast %cst_44 : f32 to vector<8x1xf32>
    %158 = arith.divf %156, %157 : vector<8x1xf32>
    %cst_45 = arith.constant 9.99999974E-6 : f32
    %159 = vector.broadcast %cst_45 : f32 to vector<8x1xf32>
    %160 = arith.addf %158, %159 : vector<8x1xf32>
    %161 = math.rsqrt %160 : vector<8x1xf32>
    %162 = vector.broadcast %161 : vector<8x1xf32> to vector<8x400xf32>
    %163 = arith.mulf %153, %162 : vector<8x400xf32>
    %164 = vector.broadcast %132 : vector<1x400xf32> to vector<8x400xf32>
    %165 = arith.mulf %163, %164 : vector<8x400xf32>
    %166 = vector.broadcast %133 : vector<1x400xf32> to vector<8x400xf32>
    %167 = arith.addf %165, %166 : vector<8x400xf32>
    %cst_46 = arith.constant dense<0.000000e+00> : vector<8xf32>
    %168 = vector.multi_reduction <add>, %147, %cst_46 [1] : vector<8x400xf32> to vector<8xf32>
    %169 = vector.shape_cast %168 : vector<8xf32> to vector<8x1xf32>
    %cst_47 = arith.constant 4.000000e+02 : f32
    %170 = vector.broadcast %cst_47 : f32 to vector<8x1xf32>
    %171 = arith.divf %169, %170 : vector<8x1xf32>
    %172 = vector.broadcast %171 : vector<8x1xf32> to vector<8x400xf32>
    %173 = arith.subf %147, %172 : vector<8x400xf32>
    %174 = arith.mulf %173, %173 : vector<8x400xf32>
    %cst_48 = arith.constant dense<0.000000e+00> : vector<8xf32>
    %175 = vector.multi_reduction <add>, %174, %cst_48 [1] : vector<8x400xf32> to vector<8xf32>
    %176 = vector.shape_cast %175 : vector<8xf32> to vector<8x1xf32>
    %cst_49 = arith.constant 4.000000e+02 : f32
    %177 = vector.broadcast %cst_49 : f32 to vector<8x1xf32>
    %178 = arith.divf %176, %177 : vector<8x1xf32>
    %cst_50 = arith.constant 9.99999974E-6 : f32
    %179 = vector.broadcast %cst_50 : f32 to vector<8x1xf32>
    %180 = arith.addf %178, %179 : vector<8x1xf32>
    %181 = math.rsqrt %180 : vector<8x1xf32>
    %182 = vector.broadcast %181 : vector<8x1xf32> to vector<8x400xf32>
    %183 = arith.mulf %173, %182 : vector<8x400xf32>
    %184 = vector.broadcast %134 : vector<1x400xf32> to vector<8x400xf32>
    %185 = arith.mulf %183, %184 : vector<8x400xf32>
    %186 = vector.broadcast %135 : vector<1x400xf32> to vector<8x400xf32>
    %187 = arith.addf %185, %186 : vector<8x400xf32>
    %188 = arith.mulf %167, %187 : vector<8x400xf32>
    %cst_51 = arith.constant dense<0.000000e+00> : vector<8xf32>
    %189 = vector.multi_reduction <add>, %188, %cst_51 [1] : vector<8x400xf32> to vector<8xf32>
    %190 = vector.shape_cast %189 : vector<8xf32> to vector<1x1x8xf32>
    %c0_52 = arith.constant 0 : index
    %c0_53 = arith.constant 0 : index
    %c0_54 = arith.constant 0 : index
    %191 = vector.load %arg8[%c0_52, %c0_53, %c0_54] : memref<1x1x8xf32, #tpu.memory_space<vmem>>, vector<1x1x8xf32>
    tpu.vector_store %arg8[%c0_52, %c0_53, %c0_54], %190 {strides = array<i32>} : memref<1x1x8xf32, #tpu.memory_space<vmem>>, vector<1x1x8xf32>,
    return
  }
  func.func @transform_0(%arg0: i32) -> (i32, i32) {
    %c0_i32 = arith.constant 0 : i32
    %c0_i32_0 = arith.constant 0 : i32
    return %arg0, %c0_i32 : i32, i32
  }
  func.func @transform_1(%arg0: i32) -> (i32, i32) {
    %c0_i32 = arith.constant 0 : i32
    %c0_i32_0 = arith.constant 0 : i32
    return %arg0, %c0_i32 : i32, i32
  }
  func.func @transform_2(%arg0: i32) -> (i32, i32, i32) {
    %c0_i32 = arith.constant 0 : i32
    %c0_i32_0 = arith.constant 0 : i32
    %c0_i32_1 = arith.constant 0 : i32
    %c0_i32_2 = arith.constant 0 : i32
    return %c0_i32, %c0_i32_0, %c0_i32_1 : i32, i32, i32
  }
  func.func @transform_3(%arg0: i32) -> (i32, i32) {
    %c0_i32 = arith.constant 0 : i32
    %c0_i32_0 = arith.constant 0 : i32
    %c0_i32_1 = arith.constant 0 : i32
    return %c0_i32, %c0_i32_0 : i32, i32
  }
  func.func @transform_4(%arg0: i32) -> (i32, i32) {
    %c0_i32 = arith.constant 0 : i32
    %c0_i32_0 = arith.constant 0 : i32
    %c0_i32_1 = arith.constant 0 : i32
    return %c0_i32, %c0_i32_0 : i32, i32
  }
  func.func @transform_5(%arg0: i32) -> (i32, i32) {
    %c0_i32 = arith.constant 0 : i32
    %c0_i32_0 = arith.constant 0 : i32
    %c0_i32_1 = arith.constant 0 : i32
    return %c0_i32, %c0_i32_0 : i32, i32
  }
  func.func @transform_6(%arg0: i32) -> i32 {
    %c0_i32 = arith.constant 0 : i32
    %c0_i32_0 = arith.constant 0 : i32
    return %c0_i32 : i32
  }
  func.func @transform_7(%arg0: i32) -> (i32, i32, i32) {
    %c0_i32 = arith.constant 0 : i32
    %c0_i32_0 = arith.constant 0 : i32
    %c0_i32_1 = arith.constant 0 : i32
    return %arg0, %c0_i32, %c0_i32_0 : i32, i32, i32
  }
}

</mosaic_0001>

<llo_original>
// kernel: tpu_custom_call.1
$region0: #{tpu_custom_call.1}
  #allocation0 [shape = 'u32[]', space=smem, size = 0x4, offset = 0x4, fixed_abs, tag = 'smem constant byte address 0x4 - core index']
  #allocation1 [shape = 'u32[144,128]{1,0:T(1,128)}', space=vmem, size = 0x12000, scoped, tag = 'internal scratch']
  %s0 = inlined_call_operand.hbm [shape: f32[64,400], index: 0, kind: input, shape index: {}]
  %s1 = inlined_call_operand.hbm [shape: f32[64,400], index: 1, kind: input, shape index: {}]
  %s2 = inlined_call_operand.hbm [shape: bf16[2,400,256], index: 2, kind: input, shape index: {}]
  %s3 = inlined_call_operand.hbm [shape: f32[2,256], index: 3, kind: input, shape index: {}]
  %s4 = inlined_call_operand.vmem [shape: f32[2,128], index: 4, kind: input, shape index: {}]
  %s5 = inlined_call_operand.vmem [shape: f32[4,400], index: 5, kind: input, shape index: {}]
  %s6 = inlined_call_operand.vmem [shape: f32[2], index: 6, kind: input, shape index: {}]
  %s7 = inlined_call_operand.hbm [shape: f32[1,1,8], index: 7, kind: output, shape index: {}]
  %s8 = sld [smem:[#allocation0]]
  $region58: #{tpu_custom_call.1} parent=0
    _
  %s10 = ssub.s32 1, %s8
  %s11 = scalar_select 0, %s10, %s8
  $region1: #{tpu_custom_call.1} parent=0
    #allocation2 [shape = 'u8[131072]{0}', space=vmem, size = 0x20000, scoped, tag = 'input window, operand 0, single buffered']
    #allocation3 [shape = 's32[1]{0}', space=sflag, size = 0x4, scoped, tag = 'scoped memory for tpu_custom_call.1']
    #allocation4 [shape = 's32[1]{0}', space=sflag, size = 0x4, scoped, tag = 'scoped memory for tpu_custom_call.1']
    #allocation5 [shape = 's32[1]{0}', space=sflag, size = 0x4, scoped, tag = 'scoped memory for tpu_custom_call.1']
    #allocation6 [shape = 'u8[131072]{0}', space=vmem, size = 0x20000, scoped, tag = 'input window, operand 1, single buffered']
    #allocation7 [shape = 's32[1]{0}', space=sflag, size = 0x4, scoped, tag = 'scoped memory for tpu_custom_call.1']
    #allocation8 [shape = 'u8[409600]{0}', space=vmem, size = 0x64000, scoped, tag = 'input window, operand 2, single buffered']
    #allocation9 [shape = 'u8[2048]{0}', space=vmem, size = 0x800, scoped, tag = 'input window, operand 3, single buffered']
    #allocation10 [shape = 's32[1]{0}', space=sflag, size = 0x4, scoped, tag = 'scoped memory for tpu_custom_call.1']
    #allocation11 [shape = 'u8[512]{0}', space=smem, size = 0x200, scoped, tag = 'input window, operand 6, single buffered']
    #allocation12 [shape = 'u8[512]{0}', space=vmem, size = 0x400, scoped, tag = 'output window, operand 0, single buffered']
    %12 = vsyncpa [#allocation3], 0
    %13 = vsyncpa [#allocation7], 0
    %14 = vsyncpa [#allocation10], 0
    %15 = vsyncpa [#allocation5], 0
    %16 = vsyncpa [#allocation4], 0
    // Predicated region
    $region2: #{tpu_custom_call.1} parent=1 // pred_check
      _
    $region3: #{tpu_custom_call.1} parent=1 // pred_check_branch
      %18 = sbr.rel (0) target = $region5
    $region4: #{tpu_custom_call.1} parent=1 // pred_region
      %s20 = ssub.s32 4096, 4096
      %21 = vsyncadd [#allocation3], %s20
      %s22 = sshll.u32 [#allocation2], 4
      %s23 = int_to_ptr.vmem [resolvable:$true] %s22
      %28 = dma.hbm_to_vmem [thread:$0]  %s0, 4096, %s23, [#allocation3], 512, 512, 32
    $region5: #{tpu_custom_call.1} parent=1 // pred_fallthru
      _
    // Predicated region
    $region6: #{tpu_custom_call.1} parent=1 // pred_check
      _
    $region7: #{tpu_custom_call.1} parent=1 // pred_check_branch
      %30 = sbr.rel (0) target = $region9
    $region8: #{tpu_custom_call.1} parent=1 // pred_region
      %s32 = ssub.s32 4096, 4096
      %33 = vsyncadd [#allocation7], %s32
      %s34 = sshll.u32 [#allocation6], 4
      %s35 = int_to_ptr.vmem [resolvable:$true] %s34
      %40 = dma.hbm_to_vmem [thread:$0]  %s1, 4096, %s35, [#allocation7], 512, 512, 32
    $region9: #{tpu_custom_call.1} parent=1 // pred_fallthru
      _
    // Predicated region
    $region10: #{tpu_custom_call.1} parent=1 // pred_check
      _
    $region11: #{tpu_custom_call.1} parent=1 // pred_check_branch
      %42 = sbr.rel (0) target = $region13
    $region12: #{tpu_custom_call.1} parent=1 // pred_region
      %s44 = ssub.s32 12800, 12800
      %45 = vsyncadd [#allocation7], %s44
      %s46 = sshll.u32 [#allocation8], 4
      %s47 = int_to_ptr.vmem [resolvable:$true] %s46
      %52 = dma.hbm_to_vmem [thread:$0]  %s2, 12800, %s47, [#allocation7], 128, 128, 8
    $region13: #{tpu_custom_call.1} parent=1 // pred_fallthru
      _
    // Predicated region
    $region14: #{tpu_custom_call.1} parent=1 // pred_check
      _
    $region15: #{tpu_custom_call.1} parent=1 // pred_check_branch
      %54 = sbr.rel (0) target = $region17
    $region16: #{tpu_custom_call.1} parent=1 // pred_region
      %s56 = ssub.s32 64, 64
      %57 = vsyncadd [#allocation10], %s56
      %s59 = sshll.u32 [#allocation9], 4
      %s60 = int_to_ptr.vmem [resolvable:$true] %s59
      %62 = dma.hbm_to_vmem [thread:$0]  %s3, 64, %s60, [#allocation10]
    $region17: #{tpu_custom_call.1} parent=1 // pred_fallthru
      _
    // Predicated region
    $region18: #{tpu_custom_call.1} parent=1 // pred_check
      _
    $region19: #{tpu_custom_call.1} parent=1 // pred_check_branch
      %64 = sbr.rel (0) target = $region21
    $region20: #{tpu_custom_call.1} parent=1 // pred_region
      _
    $region21: #{tpu_custom_call.1} parent=1 // pred_fallthru
      _
    // Predicated region
    $region22: #{tpu_custom_call.1} parent=1 // pred_check
      _
    $region23: #{tpu_custom_call.1} parent=1 // pred_check_branch
      %66 = sbr.rel (0) target = $region25
    $region24: #{tpu_custom_call.1} parent=1 // pred_region
      _
    $region25: #{tpu_custom_call.1} parent=1 // pred_fallthru
      _
    // Predicated region
    $region26: #{tpu_custom_call.1} parent=1 // pred_check
      _
    $region27: #{tpu_custom_call.1} parent=1 // pred_check_branch
      %68 = sbr.rel (0) target = $region29
    $region28: #{tpu_custom_call.1} parent=1 // pred_region
      %s70 = ssub.s32 16, 16
      %71 = vsyncadd [#allocation5], %s70
      %s73 = sshll.u32 %s6, 4
      %s74 = int_to_ptr.vmem [resolvable:$true] %s73
      %76 = dma.vmem_to_smem %s74, 16, [#allocation11], [#allocation5]
    $region29: #{tpu_custom_call.1} parent=1 // pred_fallthru
      _
    // Predicated region
    $region30: #{tpu_custom_call.1} parent=1 // pred_check
      _
    $region31: #{tpu_custom_call.1} parent=1 // pred_check_branch
      %78 = sbr.rel (0) target = $region33
    $region32: #{tpu_custom_call.1} parent=1 // pred_region
      %79 = dma.done [#allocation3], 4096
    $region33: #{tpu_custom_call.1} parent=1 // pred_fallthru
      _
    // Predicated region
    $region34: #{tpu_custom_call.1} parent=1 // pred_check
      _
    $region35: #{tpu_custom_call.1} parent=1 // pred_check_branch
      %81 = sbr.rel (0) target = $region37
    $region36: #{tpu_custom_call.1} parent=1 // pred_region
      %82 = dma.done [#allocation7], 4096
    $region37: #{tpu_custom_call.1} parent=1 // pred_fallthru
      _
    // Predicated region
    $region38: #{tpu_custom_call.1} parent=1 // pred_check
      _
    $region39: #{tpu_custom_call.1} parent=1 // pred_check_branch
      %84 = sbr.rel (0) target = $region41
    $region40: #{tpu_custom_call.1} parent=1 // pred_region
      %85 = dma.done [#allocation7], 12800
    $region41: #{tpu_custom_call.1} parent=1 // pred_fallthru
      _
    // Predicated region
    $region42: #{tpu_custom_call.1} parent=1 // pred_check
      _
    $region43: #{tpu_custom_call.1} parent=1 // pred_check_branch
      %87 = sbr.rel (0) target = $region45
    $region44: #{tpu_custom_call.1} parent=1 // pred_region
      %88 = dma.done [#allocation10], 64
    $region45: #{tpu_custom_call.1} parent=1 // pred_fallthru
      _
    // Predicated region
    $region46: #{tpu_custom_call.1} parent=1 // pred_check
      _
    $region47: #{tpu_custom_call.1} parent=1 // pred_check_branch
      %90 = sbr.rel (0) target = $region49
    $region48: #{tpu_custom_call.1} parent=1 // pred_region
      %91 = dma.done [#allocation5], 16
    $region49: #{tpu_custom_call.1} parent=1 // pred_fallthru
      _
    %92 = sfence
    %v94 = vld [vmem:[#allocation2] sm:$0xff]
    %v95 = vld [vmem:[#allocation2 + $0x8] sm:$0xff]
    %v96 = vld [vmem:[#allocation2 + $0x10] sm:$0xff]
    %v97 = vld [vmem:[#allocation2 + $0x18] sm:$0xff]
    %v98 = vld [vmem:[#allocation2 + $0x20] sm:$0xff]
    %v99 = vld [vmem:[#allocation2 + $0x28] sm:$0xff]
    %v100 = vld [vmem:[#allocation2 + $0x30] sm:$0xff]
    %v101 = vld [vmem:[#allocation2 + $0x38] sm:$0xff]
    %v102 = vld [vmem:[#allocation2 + $0x40] sm:$0xff]
    %v103 = vld [vmem:[#allocation2 + $0x48] sm:$0xff]
    %v104 = vld [vmem:[#allocation2 + $0x50] sm:$0xff]
    %v105 = vld [vmem:[#allocation2 + $0x58] sm:$0xff]
    %v106 = vld [vmem:[#allocation2 + $0x60] sm:$0xff]
    %v107 = vld [vmem:[#allocation2 + $0x68] sm:$0xff]
    %v108 = vld [vmem:[#allocation2 + $0x70] sm:$0xff]
    %v109 = vld [vmem:[#allocation2 + $0x78] sm:$0xff]
    %v110 = vld [vmem:[#allocation2 + $0x80] sm:$0xff]
    %v111 = vld [vmem:[#allocation2 + $0x88] sm:$0xff]
    %v112 = vld [vmem:[#allocation2 + $0x90] sm:$0xff]
    %v113 = vld [vmem:[#allocation2 + $0x98] sm:$0xff]
    %v114 = vld [vmem:[#allocation2 + $0xa0] sm:$0xff]
    %v115 = vld [vmem:[#allocation2 + $0xa8] sm:$0xff]
    %v116 = vld [vmem:[#allocation2 + $0xb0] sm:$0xff]
    %v117 = vld [vmem:[#allocation2 + $0xb8] sm:$0xff]
    %v118 = vld [vmem:[#allocation2 + $0xc0] sm:$0xff]
    %v119 = vld [vmem:[#allocation2 + $0xc8] sm:$0xff]
    %v120 = vld [vmem:[#allocation2 + $0xd0] sm:$0xff]
    %v121 = vld [vmem:[#allocation2 + $0xd8] sm:$0xff]
    %v122 = vld [vmem:[#allocation2 + $0xe0] sm:$0xff]
    %v123 = vld [vmem:[#allocation2 + $0xe8] sm:$0xff]
    %v124 = vld [vmem:[#allocation2 + $0xf0] sm:$0xff]
    %v125 = vld [vmem:[#allocation2 + $0xf8] sm:$0xff]
    %v126 = vld [vmem:[#allocation6] sm:$0xff]
    %v127 = vld [vmem:[#allocation6 + $0x8] sm:$0xff]
    %v128 = vld [vmem:[#allocation6 + $0x10] sm:$0xff]
    %v129 = vld [vmem:[#allocation6 + $0x18] sm:$0xff]
    %v130 = vld [vmem:[#allocation6 + $0x20] sm:$0xff]
    %v131 = vld [vmem:[#allocation6 + $0x28] sm:$0xff]
    %v132 = vld [vmem:[#allocation6 + $0x30] sm:$0xff]
    %v133 = vld [vmem:[#allocation6 + $0x38] sm:$0xff]
    %v134 = vld [vmem:[#allocation6 + $0x40] sm:$0xff]
    %v135 = vld [vmem:[#allocation6 + $0x48] sm:$0xff]
    %v136 = vld [vmem:[#allocation6 + $0x50] sm:$0xff]
    %v137 = vld [vmem:[#allocation6 + $0x58] sm:$0xff]
    %v138 = vld [vmem:[#allocation6 + $0x60] sm:$0xff]
    %v139 = vld [vmem:[#allocation6 + $0x68] sm:$0xff]
    %v140 = vld [vmem:[#allocation6 + $0x70] sm:$0xff]
    %v141 = vld [vmem:[#allocation6 + $0x78] sm:$0xff]
    %v142 = vld [vmem:[#allocation6 + $0x80] sm:$0xff]
    %v143 = vld [vmem:[#allocation6 + $0x88] sm:$0xff]
    %v144 = vld [vmem:[#allocation6 + $0x90] sm:$0xff]
    %v145 = vld [vmem:[#allocation6 + $0x98] sm:$0xff]
    %v146 = vld [vmem:[#allocation6 + $0xa0] sm:$0xff]
    %v147 = vld [vmem:[#allocation6 + $0xa8] sm:$0xff]
    %v148 = vld [vmem:[#allocation6 + $0xb0] sm:$0xff]
    %v149 = vld [vmem:[#allocation6 + $0xb8] sm:$0xff]
    %v150 = vld [vmem:[#allocation6 + $0xc0] sm:$0xff]
    %v151 = vld [vmem:[#allocation6 + $0xc8] sm:$0xff]
    %v152 = vld [vmem:[#allocation6 + $0xd0] sm:$0xff]
    %v153 = vld [vmem:[#allocation6 + $0xd8] sm:$0xff]
    %v154 = vld [vmem:[#allocation6 + $0xe0] sm:$0xff]
    %v155 = vld [vmem:[#allocation6 + $0xe8] sm:$0xff]
    %v156 = vld [vmem:[#allocation6 + $0xf0] sm:$0xff]
    %v157 = vld [vmem:[#allocation6 + $0xf8] sm:$0xff]
    %v158 = vld [vmem:[#allocation8] sm:$0xff]
    %v159 = vld [vmem:[#allocation8 + $0x8] sm:$0xff]
    %v160 = vld [vmem:[#allocation8 + $0x10] sm:$0xff]
    %v161 = vld [vmem:[#allocation8 + $0x18] sm:$0xff]
    %v162 = vld [vmem:[#allocation8 + $0x20] sm:$0xff]
    %v163 = vld [vmem:[#allocation8 + $0x28] sm:$0xff]
    %v164 = vld [vmem:[#allocation8 + $0x30] sm:$0xff]
    %v165 = vld [vmem:[#allocation8 + $0x38] sm:$0xff]
    %v166 = vld [vmem:[#allocation8 + $0x40] sm:$0xff]
    %v167 = vld [vmem:[#allocation8 + $0x48] sm:$0xff]
    %v168 = vld [vmem:[#allocation8 + $0x50] sm:$0xff]
    %v169 = vld [vmem:[#allocation8 + $0x58] sm:$0xff]
    %v170 = vld [vmem:[#allocation8 + $0x60] sm:$0xff]
    %v171 = vld [vmem:[#allocation8 + $0x68] sm:$0xff]
    %v172 = vld [vmem:[#allocation8 + $0x70] sm:$0xff]
    %v173 = vld [vmem:[#allocation8 + $0x78] sm:$0xff]
    %v174 = vld [vmem:[#allocation8 + $0x80] sm:$0xff]
    %v175 = vld [vmem:[#allocation8 + $0x88] sm:$0xff]
    %v176 = vld [vmem:[#allocation8 + $0x90] sm:$0xff]
    %v177 = vld [vmem:[#allocation8 + $0x98] sm:$0xff]
    %v178 = vld [vmem:[#allocation8 + $0xa0] sm:$0xff]
    %v179 = vld [vmem:[#allocation8 + $0xa8] sm:$0xff]
    %v180 = vld [vmem:[#allocation8 + $0xb0] sm:$0xff]
    %v181 = vld [vmem:[#allocation8 + $0xb8] sm:$0xff]
    %v182 = vld [vmem:[#allocation8 + $0xc0] sm:$0xff]
    %v183 = vld [vmem:[#allocation8 + $0xc8] sm:$0xff]
    %v184 = vld [vmem:[#allocation8 + $0xd0] sm:$0xff]
    %v185 = vld [vmem:[#allocation8 + $0xd8] sm:$0xff]
    %v186 = vld [vmem:[#allocation8 + $0xe0] sm:$0xff]
    %v187 = vld [vmem:[#allocation8 + $0xe8] sm:$0xff]
    %v188 = vld [vmem:[#allocation8 + $0xf0] sm:$0xff]
    %v189 = vld [vmem:[#allocation8 + $0xf8] sm:$0xff]
    %v190 = vld [vmem:[#allocation8 + $0x100] sm:$0xff]
    %v191 = vld [vmem:[#allocation8 + $0x108] sm:$0xff]
    %v192 = vld [vmem:[#allocation8 + $0x110] sm:$0xff]
    %v193 = vld [vmem:[#allocation8 + $0x118] sm:$0xff]
    %v194 = vld [vmem:[#allocation8 + $0x120] sm:$0xff]
    %v195 = vld [vmem:[#allocation8 + $0x128] sm:$0xff]
    %v196 = vld [vmem:[#allocation8 + $0x130] sm:$0xff]
    %v197 = vld [vmem:[#allocation8 + $0x138] sm:$0xff]
    %v198 = vld [vmem:[#allocation8 + $0x140] sm:$0xff]
    %v199 = vld [vmem:[#allocation8 + $0x148] sm:$0xff]
    %v200 = vld [vmem:[#allocation8 + $0x150] sm:$0xff]
    %v201 = vld [vmem:[#allocation8 + $0x158] sm:$0xff]
    %v202 = vld [vmem:[#allocation8 + $0x160] sm:$0xff]
    %v203 = vld [vmem:[#allocation8 + $0x168] sm:$0xff]
    %v204 = vld [vmem:[#allocation8 + $0x170] sm:$0xff]
    %v205 = vld [vmem:[#allocation8 + $0x178] sm:$0xff]
    %v206 = vld [vmem:[#allocation8 + $0x180] sm:$0xff]
    %v207 = vld [vmem:[#allocation8 + $0x188] sm:$0xff]
    %s208 = scalar_lea.vmem [#allocation8], 400
    %v209 = vld [vmem:[%s208] sm:$0xff]
    %v210 = vld [vmem:[%s208 + $0x8] sm:$0xff]
    %v211 = vld [vmem:[%s208 + $0x10] sm:$0xff]
    %v212 = vld [vmem:[%s208 + $0x18] sm:$0xff]
    %v213 = vld [vmem:[%s208 + $0x20] sm:$0xff]
    %v214 = vld [vmem:[%s208 + $0x28] sm:$0xff]
    %v215 = vld [vmem:[%s208 + $0x30] sm:$0xff]
    %v216 = vld [vmem:[%s208 + $0x38] sm:$0xff]
    %v217 = vld [vmem:[%s208 + $0x40] sm:$0xff]
    %v218 = vld [vmem:[%s208 + $0x48] sm:$0xff]
    %v219 = vld [vmem:[%s208 + $0x50] sm:$0xff]
    %v220 = vld [vmem:[%s208 + $0x58] sm:$0xff]
    %v221 = vld [vmem:[%s208 + $0x60] sm:$0xff]
    %v222 = vld [vmem:[%s208 + $0x68] sm:$0xff]
    %v223 = vld [vmem:[%s208 + $0x70] sm:$0xff]
    %v224 = vld [vmem:[%s208 + $0x78] sm:$0xff]
    %v225 = vld [vmem:[%s208 + $0x80] sm:$0xff]
    %v226 = vld [vmem:[%s208 + $0x88] sm:$0xff]
    %v227 = vld [vmem:[%s208 + $0x90] sm:$0xff]
    %v228 = vld [vmem:[%s208 + $0x98] sm:$0xff]
    %v229 = vld [vmem:[%s208 + $0xa0] sm:$0xff]
    %v230 = vld [vmem:[%s208 + $0xa8] sm:$0xff]
    %v231 = vld [vmem:[%s208 + $0xb0] sm:$0xff]
    %v232 = vld [vmem:[%s208 + $0xb8] sm:$0xff]
    %v233 = vld [vmem:[%s208 + $0xc0] sm:$0xff]
    %v234 = vld [vmem:[%s208 + $0xc8] sm:$0xff]
    %v235 = vld [vmem:[%s208 + $0xd0] sm:$0xff]
    %v236 = vld [vmem:[%s208 + $0xd8] sm:$0xff]
    %v237 = vld [vmem:[%s208 + $0xe0] sm:$0xff]
    %v238 = vld [vmem:[%s208 + $0xe8] sm:$0xff]
    %v239 = vld [vmem:[%s208 + $0xf0] sm:$0xff]
    %v240 = vld [vmem:[%s208 + $0xf8] sm:$0xff]
    %v241 = vld [vmem:[%s208 + $0x100] sm:$0xff]
    %v242 = vld [vmem:[%s208 + $0x108] sm:$0xff]
    %v243 = vld [vmem:[%s208 + $0x110] sm:$0xff]
    %v244 = vld [vmem:[%s208 + $0x118] sm:$0xff]
    %v245 = vld [vmem:[%s208 + $0x120] sm:$0xff]
    %v246 = vld [vmem:[%s208 + $0x128] sm:$0xff]
    %v247 = vld [vmem:[%s208 + $0x130] sm:$0xff]
    %v248 = vld [vmem:[%s208 + $0x138] sm:$0xff]
    %v249 = vld [vmem:[%s208 + $0x140] sm:$0xff]
    %v250 = vld [vmem:[%s208 + $0x148] sm:$0xff]
    %v251 = vld [vmem:[%s208 + $0x150] sm:$0xff]
    %v252 = vld [vmem:[%s208 + $0x158] sm:$0xff]
    %v253 = vld [vmem:[%s208 + $0x160] sm:$0xff]
    %v254 = vld [vmem:[%s208 + $0x168] sm:$0xff]
    %v255 = vld [vmem:[%s208 + $0x170] sm:$0xff]
    %v256 = vld [vmem:[%s208 + $0x178] sm:$0xff]
    %v257 = vld [vmem:[%s208 + $0x180] sm:$0xff]
    %v258 = vld [vmem:[%s208 + $0x188] sm:$0xff]
    %v259 = vld [vmem:[#allocation9] ss:$2 sm:$0x3]
    %s260 = scalar_lea.vmem [#allocation9], 1
    %v261 = vld [vmem:[%s260] ss:$2 sm:$0x3]
    %v262 = vpack.c.bf16 %v98, %v94
    %v263 = vpack.c.bf16 %v99, %v95
    %v264 = vpack.c.bf16 %v100, %v96
    %v265 = vpack.c.bf16 %v101, %v97
    %v266 = vpack.c.bf16 %v106, %v102
    %v267 = vpack.c.bf16 %v107, %v103
    %v268 = vpack.c.bf16 %v108, %v104
    %v269 = vpack.c.bf16 %v109, %v105
    %v270 = vpack.c.bf16 %v114, %v110
    %v271 = vpack.c.bf16 %v115, %v111
    %v272 = vpack.c.bf16 %v116, %v112
    %v273 = vpack.c.bf16 %v117, %v113
    %v274 = vpack.c.bf16 %v122, %v118
    %v275 = vpack.c.bf16 %v123, %v119
    %v276 = vpack.c.bf16 %v124, %v120
    %v277 = vpack.c.bf16 %v125, %v121
    %v278 = vpack.c.bf16 %v130, %v126
    %v279 = vpack.c.bf16 %v131, %v127
    %v280 = vpack.c.bf16 %v132, %v128
    %v281 = vpack.c.bf16 %v133, %v129
    %v282 = vpack.c.bf16 %v138, %v134
    %v283 = vpack.c.bf16 %v139, %v135
    %v284 = vpack.c.bf16 %v140, %v136
    %v285 = vpack.c.bf16 %v141, %v137
    %v286 = vpack.c.bf16 %v146, %v142
    %v287 = vpack.c.bf16 %v147, %v143
    %v288 = vpack.c.bf16 %v148, %v144
    %v289 = vpack.c.bf16 %v149, %v145
    %v290 = vpack.c.bf16 %v154, %v150
    %v291 = vpack.c.bf16 %v155, %v151
    %v292 = vpack.c.bf16 %v156, %v152
    %v293 = vpack.c.bf16 %v157, %v153
    %v295 = vlaneseq
    %v296 = vshrl.u32 %v295, 7
    %v297 = vsub.s32 0, %v296
    %v298 = vrot.slane %v259, %v297
    %v299 = vlaneseq
    %v300 = vshrl.u32 %v299, 7
    %v301 = vsub.s32 1, %v300
    %v302 = vrot.slane %v259, %v301
    %v355 = vunpack.c.l.b16 %v158
    %v356 = vunpack.c.h.b16 %v158
    %v357 = vunpack.c.l.b16 %v159
    %v358 = vunpack.c.h.b16 %v159
    %v359 = vunpack.c.l.b16 %v160
    %v360 = vunpack.c.h.b16 %v160
    %v361 = vunpack.c.l.b16 %v161
    %v362 = vunpack.c.h.b16 %v161
    %v363 = vunpack.c.l.b16 %v162
    %v364 = vunpack.c.h.b16 %v162
    %v365 = vunpack.c.l.b16 %v163
    %v366 = vunpack.c.h.b16 %v163
    %v367 = vunpack.c.l.b16 %v164
    %v368 = vunpack.c.h.b16 %v164
    %v369 = vunpack.c.l.b16 %v165
    %v370 = vunpack.c.h.b16 %v165
    %v371 = vunpack.c.l.b16 %v166
    %v372 = vunpack.c.h.b16 %v166
    %v373 = vunpack.c.l.b16 %v167
    %v374 = vunpack.c.h.b16 %v167
    %v375 = vunpack.c.l.b16 %v168
    %v376 = vunpack.c.h.b16 %v168
    %v377 = vunpack.c.l.b16 %v169
    %v378 = vunpack.c.h.b16 %v169
    %v379 = vunpack.c.l.b16 %v170
    %v380 = vunpack.c.h.b16 %v170
    %v381 = vunpack.c.l.b16 %v171
    %v382 = vunpack.c.h.b16 %v171
    %v383 = vunpack.c.l.b16 %v172
    %v384 = vunpack.c.h.b16 %v172
    %v385 = vunpack.c.l.b16 %v173
    %v386 = vunpack.c.h.b16 %v173
    %v387 = vunpack.c.l.b16 %v174
    %v388 = vunpack.c.h.b16 %v174
    %v389 = vunpack.c.l.b16 %v175
    %v390 = vunpack.c.h.b16 %v175
    %v391 = vunpack.c.l.b16 %v176
    %v392 = vunpack.c.h.b16 %v176
    %v393 = vunpack.c.l.b16 %v177
    %v394 = vunpack.c.h.b16 %v177
    %v395 = vunpack.c.l.b16 %v178
    %v396 = vunpack.c.h.b16 %v178
    %v397 = vunpack.c.l.b16 %v179
    %v398 = vunpack.c.h.b16 %v179
    %v399 = vunpack.c.l.b16 %v180
    %v400 = vunpack.c.h.b16 %v180
    %v401 = vunpack.c.l.b16 %v181
    %v402 = vunpack.c.h.b16 %v181
    %v403 = vunpack.c.l.b16 %v182
    %v404 = vunpack.c.h.b16 %v182
    %v405 = vunpack.c.l.b16 %v183
    %v406 = vunpack.c.h.b16 %v183
    %v407 = vunpack.c.l.b16 %v184
    %v408 = vunpack.c.h.b16 %v184
    %v409 = vunpack.c.l.b16 %v185
    %v410 = vunpack.c.h.b16 %v185
    %v411 = vunpack.c.l.b16 %v186
    %v412 = vunpack.c.h.b16 %v186
    %v413 = vunpack.c.l.b16 %v187
    %v414 = vunpack.c.h.b16 %v187
    %v415 = vunpack.c.l.b16 %v188
    %v416 = vunpack.c.h.b16 %v188
    %v417 = vunpack.c.l.b16 %v189
    %v418 = vunpack.c.h.b16 %v189
    %v419 = vunpack.c.l.b16 %v190
    %v420 = vunpack.c.h.b16 %v190
    %v421 = vunpack.c.l.b16 %v191
    %v422 = vunpack.c.h.b16 %v191
    %v423 = vunpack.c.l.b16 %v192
    %v424 = vunpack.c.h.b16 %v192
    %v425 = vunpack.c.l.b16 %v193
    %v426 = vunpack.c.h.b16 %v193
    %v427 = vunpack.c.l.b16 %v194
    %v428 = vunpack.c.h.b16 %v194
    %v429 = vunpack.c.l.b16 %v195
    %v430 = vunpack.c.h.b16 %v195
    %v431 = vunpack.c.l.b16 %v196
    %v432 = vunpack.c.h.b16 %v196
    %v433 = vunpack.c.l.b16 %v197
    %v434 = vunpack.c.h.b16 %v197
    %v435 = vunpack.c.l.b16 %v198
    %v436 = vunpack.c.h.b16 %v198
    %v437 = vunpack.c.l.b16 %v199
    %v438 = vunpack.c.h.b16 %v199
    %v439 = vunpack.c.l.b16 %v200
    %v440 = vunpack.c.h.b16 %v200
    %v441 = vunpack.c.l.b16 %v201
    %v442 = vunpack.c.h.b16 %v201
    %v443 = vunpack.c.l.b16 %v202
    %v444 = vunpack.c.h.b16 %v202
    %v445 = vunpack.c.l.b16 %v203
    %v446 = vunpack.c.h.b16 %v203
    %v447 = vunpack.c.l.b16 %v204
    %v448 = vunpack.c.h.b16 %v204
    %v449 = vunpack.c.l.b16 %v205
    %v450 = vunpack.c.h.b16 %v205
    %v451 = vunpack.c.l.b16 %v206
    %v452 = vunpack.c.h.b16 %v206
    %v453 = vunpack.c.l.b16 %v207
    %v454 = vunpack.c.h.b16 %v207
    %v455 = vpack.c.b16 %v357, %v355
    %v456 = vpack.c.b16 %v358, %v356
    %v457 = vpack.c.b16 %v361, %v359
    %v458 = vpack.c.b16 %v362, %v360
    %v459 = vpack.c.b16 %v365, %v363
    %v460 = vpack.c.b16 %v366, %v364
    %v461 = vpack.c.b16 %v369, %v367
    %v462 = vpack.c.b16 %v370, %v368
    %v463 = vpack.c.b16 %v373, %v371
    %v464 = vpack.c.b16 %v374, %v372
    %v465 = vpack.c.b16 %v377, %v375
    %v466 = vpack.c.b16 %v378, %v376
    %v467 = vpack.c.b16 %v381, %v379
    %v468 = vpack.c.b16 %v382, %v380
    %v469 = vpack.c.b16 %v385, %v383
    %v470 = vpack.c.b16 %v386, %v384
    %v471 = vpack.c.b16 %v389, %v387
    %v472 = vpack.c.b16 %v390, %v388
    %v473 = vpack.c.b16 %v393, %v391
    %v474 = vpack.c.b16 %v394, %v392
    %v475 = vpack.c.b16 %v397, %v395
    %v476 = vpack.c.b16 %v398, %v396
    %v477 = vpack.c.b16 %v401, %v399
    %v478 = vpack.c.b16 %v402, %v400
    %v479 = vpack.c.b16 %v405, %v403
    %v480 = vpack.c.b16 %v406, %v404
    %v481 = vpack.c.b16 %v409, %v407
    %v482 = vpack.c.b16 %v410, %v408
    %v483 = vpack.c.b16 %v413, %v411
    %v484 = vpack.c.b16 %v414, %v412
    %v485 = vpack.c.b16 %v417, %v415
    %v486 = vpack.c.b16 %v418, %v416
    %v487 = vpack.c.b16 %v421, %v419
    %v488 = vpack.c.b16 %v422, %v420
    %v489 = vpack.c.b16 %v425, %v423
    %v490 = vpack.c.b16 %v426, %v424
    %v491 = vpack.c.b16 %v429, %v427
    %v492 = vpack.c.b16 %v430, %v428
    %v493 = vpack.c.b16 %v433, %v431
    %v494 = vpack.c.b16 %v434, %v432
    %v495 = vpack.c.b16 %v437, %v435
    %v496 = vpack.c.b16 %v438, %v436
    %v497 = vpack.c.b16 %v441, %v439
    %v498 = vpack.c.b16 %v442, %v440
    %v499 = vpack.c.b16 %v445, %v443
    %v500 = vpack.c.b16 %v446, %v444
    %v501 = vpack.c.b16 %v449, %v447
    %v502 = vpack.c.b16 %v450, %v448
    %v503 = vpack.c.b16 %v453, %v451
    %v504 = vpack.c.b16 %v454, %v452
    %vm555 = vcmask 130048
    %v557 = vsel %vm555, %v265, 0
    %v560 = vsel %vm555, %v269, 0
    %v563 = vsel %vm555, %v273, 0
    %v566 = vsel %vm555, %v277, 0
    %568 = vmatprep.subr.bf16.mxu0 %v456
    %569 = vmatpush1.bf16.msra.mxu0 %v455
    %570 = vmatprep.subr.bf16.mxu0 %v458
    %571 = vmatpush1.bf16.msra.mxu0 %v457
    %572 = vmatprep.subr.bf16.mxu0 %v460
    %573 = vmatpush1.bf16.msra.mxu0 %v459
    %574 = vmatprep.subr.bf16.mxu0 %v462
    %575 = vmatpush1.bf16.msra.mxu0 %v461
    %576 = vmatprep.subr.bf16.mxu0 %v464
    %577 = vmatpush1.bf16.msra.mxu0 %v463
    %578 = vmatprep.subr.bf16.mxu0 %v466
    %579 = vmatpush1.bf16.msra.mxu0 %v465
    %580 = vmatprep.subr.bf16.mxu0 %v468
    %581 = vmatpush1.bf16.msra.mxu0 %v467
    %582 = vmatprep.subr.bf16.mxu0 %v470
    %583 = vmatpush1.bf16.msra.mxu0 %v469
    %584 = vmatprep.subr.bf16.mxu0 %v472
    %585 = vmatpush1.bf16.msra.mxu0 %v471
    %586 = vmatprep.subr.bf16.mxu0 %v474
    %587 = vmatpush1.bf16.msra.mxu0 %v473
    %588 = vmatprep.subr.bf16.mxu0 %v476
    %589 = vmatpush1.bf16.msra.mxu0 %v475
    %590 = vmatprep.subr.bf16.mxu0 %v478
    %591 = vmatpush1.bf16.msra.mxu0 %v477
    %592 = vmatprep.subr.bf16.mxu0 %v480
    %593 = vmatpush1.bf16.msra.mxu0 %v479
    %594 = vmatprep.subr.bf16.mxu0 %v482
    %595 = vmatpush1.bf16.msra.mxu0 %v481
    %596 = vmatprep.subr.bf16.mxu0 %v484
    %597 = vmatpush1.bf16.msra.mxu0 %v483
    %598 = vmatprep.subr.bf16.mxu0 %v486
    %599 = vmatpush1.bf16.msra.mxu0 %v485
    %600 = vmatprep.mubr.bf16.mxu0 %v263
    %601 = vmatmul.mubr.bf16.gmra.mrb[0].mxu0 %v262
    %v602 = vpop.f32.mrb[0].mxu0
    %v603 = vadd.f32 %v298, %v602
    %v604 = vpop.f32.mrb[0].mxu0
    %v605 = vadd.f32 %v302, %v604
    %v606 = vpop.f32.mrb[0].mxu0
    %v607 = vadd.f32 %v298, %v606
    %v608 = vpop.f32.mrb[0].mxu0
    %v609 = vadd.f32 %v302, %v608
    %610 = vmatprep.mubr.bf16.mxu0 %v267
    %611 = vmatmul.mubr.bf16.gmra.mrb[0].mxu0 %v266
    %v612 = vpop.f32.mrb[0].mxu0
    %v613 = vadd.f32 %v298, %v612
    %v614 = vpop.f32.mrb[0].mxu0
    %v615 = vadd.f32 %v302, %v614
    %v616 = vpop.f32.mrb[0].mxu0
    %v617 = vadd.f32 %v298, %v616
    %v618 = vpop.f32.mrb[0].mxu0
    %v619 = vadd.f32 %v302, %v618
    %620 = vmatprep.mubr.bf16.mxu0 %v271
    %621 = vmatmul.mubr.bf16.gmra.mrb[0].mxu0 %v270
    %v622 = vpop.f32.mrb[0].mxu0
    %v623 = vadd.f32 %v298, %v622
    %v624 = vpop.f32.mrb[0].mxu0
    %v625 = vadd.f32 %v302, %v624
    %v626 = vpop.f32.mrb[0].mxu0
    %v627 = vadd.f32 %v298, %v626
    %v628 = vpop.f32.mrb[0].mxu0
    %v629 = vadd.f32 %v302, %v628
    %630 = vmatprep.mubr.bf16.mxu0 %v275
    %631 = vmatmul.mubr.bf16.gmra.mrb[0].mxu0 %v274
    %v632 = vpop.f32.mrb[0].mxu0
    %v633 = vadd.f32 %v298, %v632
    %v634 = vpop.f32.mrb[0].mxu0
    %v635 = vadd.f32 %v302, %v634
    %v636 = vpop.f32.mrb[0].mxu0
    %v637 = vadd.f32 %v298, %v636
    %v638 = vpop.f32.mrb[0].mxu0
    %v639 = vadd.f32 %v302, %v638
    %640 = vdwg.mxu0
    %641 = vmatprep.subr.bf16.mxu0 %v488
    %642 = vmatpush1.bf16.msra.mxu0 %v487
    %643 = vmatprep.subr.bf16.mxu0 %v490
    %644 = vmatpush1.bf16.msra.mxu0 %v489
    %645 = vmatprep.subr.bf16.mxu0 %v492
    %646 = vmatpush1.bf16.msra.mxu0 %v491
    %647 = vmatprep.subr.bf16.mxu0 %v494
    %648 = vmatpush1.bf16.msra.mxu0 %v493
    %649 = vmatprep.subr.bf16.mxu0 %v496
    %650 = vmatpush1.bf16.msra.mxu0 %v495
    %651 = vmatprep.subr.bf16.mxu0 %v498
    %652 = vmatpush1.bf16.msra.mxu0 %v497
    %653 = vmatprep.subr.bf16.mxu0 %v500
    %654 = vmatpush1.bf16.msra.mxu0 %v499
    %655 = vmatprep.subr.bf16.mxu0 %v502
    %656 = vmatpush1.bf16.msra.mxu0 %v501
    %657 = vmatprep.subr.bf16.mxu0 %v504
    %658 = vmatpush1.bf16.msra.mxu0 %v503
    %659 = vmatprep.subr.bf16.mxu0 0
    %660 = vmatpush1.bf16.msra.mxu0 0
    %661 = vmatprep.subr.bf16.mxu0 0
    %662 = vmatpush1.bf16.msra.mxu0 0
    %663 = vmatprep.subr.bf16.mxu0 0
    %664 = vmatpush1.bf16.msra.mxu0 0
    %665 = vmatprep.subr.bf16.mxu0 0
    %666 = vmatpush1.bf16.msra.mxu0 0
    %667 = vmatprep.subr.bf16.mxu0 0
    %668 = vmatpush1.bf16.msra.mxu0 0
    %669 = vmatprep.subr.bf16.mxu0 0
    %670 = vmatpush1.bf16.msra.mxu0 0
    %671 = vmatprep.subr.bf16.mxu0 0
    %672 = vmatpush1.bf16.msra.mxu0 0
    %673 = vmatprep.mubr.bf16.mxu0 %v557
    %674 = vmatmul.mubr.bf16.gmra.mrb[0].mxu0 %v264
    %v675 = vpop.f32.mrb[0].mxu0
    %v676 = vadd.f32 %v603, %v675
    %v677 = vpop.f32.mrb[0].mxu0
    %v678 = vadd.f32 %v605, %v677
    %v679 = vpop.f32.mrb[0].mxu0
    %v680 = vadd.f32 %v607, %v679
    %v681 = vpop.f32.mrb[0].mxu0
    %v682 = vadd.f32 %v609, %v681
    %683 = vmatprep.mubr.bf16.mxu0 %v560
    %684 = vmatmul.mubr.bf16.gmra.mrb[0].mxu0 %v268
    %v685 = vpop.f32.mrb[0].mxu0
    %v686 = vadd.f32 %v613, %v685
    %v687 = vpop.f32.mrb[0].mxu0
    %v688 = vadd.f32 %v615, %v687
    %v689 = vpop.f32.mrb[0].mxu0
    %v690 = vadd.f32 %v617, %v689
    %v691 = vpop.f32.mrb[0].mxu0
    %v692 = vadd.f32 %v619, %v691
    %693 = vmatprep.mubr.bf16.mxu0 %v563
    %694 = vmatmul.mubr.bf16.gmra.mrb[0].mxu0 %v272
    %v695 = vpop.f32.mrb[0].mxu0
    %v696 = vadd.f32 %v623, %v695
    %v697 = vpop.f32.mrb[0].mxu0
    %v698 = vadd.f32 %v625, %v697
    %v699 = vpop.f32.mrb[0].mxu0
    %v700 = vadd.f32 %v627, %v699
    %v701 = vpop.f32.mrb[0].mxu0
    %v702 = vadd.f32 %v629, %v701
    %703 = vmatprep.mubr.bf16.mxu0 %v566
    %704 = vmatmul.mubr.bf16.gmra.mrb[0].mxu0 %v276
    %v705 = vpop.f32.mrb[0].mxu0
    %v706 = vadd.f32 %v633, %v705
    %v707 = vpop.f32.mrb[0].mxu0
    %v708 = vadd.f32 %v635, %v707
    %v709 = vpop.f32.mrb[0].mxu0
    %v710 = vadd.f32 %v637, %v709
    %v711 = vpop.f32.mrb[0].mxu0
    %v712 = vadd.f32 %v639, %v711
    %713 = vdwg.mxu0
    %v715 = vlaneseq
    %v716 = vshrl.u32 %v715, 7
    %v717 = vsub.s32 0, %v716
    %v718 = vrot.slane %v261, %v717
    %v719 = vlaneseq
    %v720 = vshrl.u32 %v719, 7
    %v721 = vsub.s32 1, %v720
    %v722 = vrot.slane %v261, %v721
    %v775 = vunpack.c.l.b16 %v209
    %v776 = vunpack.c.h.b16 %v209
    %v777 = vunpack.c.l.b16 %v210
    %v778 = vunpack.c.h.b16 %v210
    %v779 = vunpack.c.l.b16 %v211
    %v780 = vunpack.c.h.b16 %v211
    %v781 = vunpack.c.l.b16 %v212
    %v782 = vunpack.c.h.b16 %v212
    %v783 = vunpack.c.l.b16 %v213
    %v784 = vunpack.c.h.b16 %v213
    %v785 = vunpack.c.l.b16 %v214
    %v786 = vunpack.c.h.b16 %v214
    %v787 = vunpack.c.l.b16 %v215
    %v788 = vunpack.c.h.b16 %v215
    %v789 = vunpack.c.l.b16 %v216
    %v790 = vunpack.c.h.b16 %v216
    %v791 = vunpack.c.l.b16 %v217
    %v792 = vunpack.c.h.b16 %v217
    %v793 = vunpack.c.l.b16 %v218
    %v794 = vunpack.c.h.b16 %v218
    %v795 = vunpack.c.l.b16 %v219
    %v796 = vunpack.c.h.b16 %v219
    %v797 = vunpack.c.l.b16 %v220
    %v798 = vunpack.c.h.b16 %v220
    %v799 = vunpack.c.l.b16 %v221
    %v800 = vunpack.c.h.b16 %v221
    %v801 = vunpack.c.l.b16 %v222
    %v802 = vunpack.c.h.b16 %v222
    %v803 = vunpack.c.l.b16 %v223
    %v804 = vunpack.c.h.b16 %v223
    %v805 = vunpack.c.l.b16 %v224
    %v806 = vunpack.c.h.b16 %v224
    %v807 = vunpack.c.l.b16 %v225
    %v808 = vunpack.c.h.b16 %v225
    %v809 = vunpack.c.l.b16 %v226
    %v810 = vunpack.c.h.b16 %v226
    %v811 = vunpack.c.l.b16 %v227
    %v812 = vunpack.c.h.b16 %v227
    %v813 = vunpack.c.l.b16 %v228
    %v814 = vunpack.c.h.b16 %v228
    %v815 = vunpack.c.l.b16 %v229
    %v816 = vunpack.c.h.b16 %v229
    %v817 = vunpack.c.l.b16 %v230
    %v818 = vunpack.c.h.b16 %v230
    %v819 = vunpack.c.l.b16 %v231
    %v820 = vunpack.c.h.b16 %v231
    %v821 = vunpack.c.l.b16 %v232
    %v822 = vunpack.c.h.b16 %v232
    %v823 = vunpack.c.l.b16 %v233
    %v824 = vunpack.c.h.b16 %v233
    %v825 = vunpack.c.l.b16 %v234
    %v826 = vunpack.c.h.b16 %v234
    %v827 = vunpack.c.l.b16 %v235
    %v828 = vunpack.c.h.b16 %v235
    %v829 = vunpack.c.l.b16 %v236
    %v830 = vunpack.c.h.b16 %v236
    %v831 = vunpack.c.l.b16 %v237
    %v832 = vunpack.c.h.b16 %v237
    %v833 = vunpack.c.l.b16 %v238
    %v834 = vunpack.c.h.b16 %v238
    %v835 = vunpack.c.l.b16 %v239
    %v836 = vunpack.c.h.b16 %v239
    %v837 = vunpack.c.l.b16 %v240
    %v838 = vunpack.c.h.b16 %v240
    %v839 = vunpack.c.l.b16 %v241
    %v840 = vunpack.c.h.b16 %v241
    %v841 = vunpack.c.l.b16 %v242
    %v842 = vunpack.c.h.b16 %v242
    %v843 = vunpack.c.l.b16 %v243
    %v844 = vunpack.c.h.b16 %v243
    %v845 = vunpack.c.l.b16 %v244
    %v846 = vunpack.c.h.b16 %v244
    %v847 = vunpack.c.l.b16 %v245
    %v848 = vunpack.c.h.b16 %v245
    %v849 = vunpack.c.l.b16 %v246
    %v850 = vunpack.c.h.b16 %v246
    %v851 = vunpack.c.l.b16 %v247
    %v852 = vunpack.c.h.b16 %v247
    %v853 = vunpack.c.l.b16 %v248
    %v854 = vunpack.c.h.b16 %v248
    %v855 = vunpack.c.l.b16 %v249
    %v856 = vunpack.c.h.b16 %v249
    %v857 = vunpack.c.l.b16 %v250
    %v858 = vunpack.c.h.b16 %v250
    %v859 = vunpack.c.l.b16 %v251
    %v860 = vunpack.c.h.b16 %v251
    %v861 = vunpack.c.l.b16 %v252
    %v862 = vunpack.c.h.b16 %v252
    %v863 = vunpack.c.l.b16 %v253
    %v864 = vunpack.c.h.b16 %v253
    %v865 = vunpack.c.l.b16 %v254
    %v866 = vunpack.c.h.b16 %v254
    %v867 = vunpack.c.l.b16 %v255
    %v868 = vunpack.c.h.b16 %v255
    %v869 = vunpack.c.l.b16 %v256
    %v870 = vunpack.c.h.b16 %v256
    %v871 = vunpack.c.l.b16 %v257
    %v872 = vunpack.c.h.b16 %v257
    %v873 = vunpack.c.l.b16 %v258
    %v874 = vunpack.c.h.b16 %v258
    %v875 = vpack.c.b16 %v777, %v775
    %v876 = vpack.c.b16 %v778, %v776
    %v877 = vpack.c.b16 %v781, %v779
    %v878 = vpack.c.b16 %v782, %v780
    %v879 = vpack.c.b16 %v785, %v783
    %v880 = vpack.c.b16 %v786, %v784
    %v881 = vpack.c.b16 %v789, %v787
    %v882 = vpack.c.b16 %v790, %v788
    %v883 = vpack.c.b16 %v793, %v791
    %v884 = vpack.c.b16 %v794, %v792
    %v885 = vpack.c.b16 %v797, %v795
    %v886 = vpack.c.b16 %v798, %v796
    %v887 = vpack.c.b16 %v801, %v799
    %v888 = vpack.c.b16 %v802, %v800
    %v889 = vpack.c.b16 %v805, %v803
    %v890 = vpack.c.b16 %v806, %v804
    %v891 = vpack.c.b16 %v809, %v807
    %v892 = vpack.c.b16 %v810, %v808
    %v893 = vpack.c.b16 %v813, %v811
    %v894 = vpack.c.b16 %v814, %v812
    %v895 = vpack.c.b16 %v817, %v815
    %v896 = vpack.c.b16 %v818, %v816
    %v897 = vpack.c.b16 %v821, %v819
    %v898 = vpack.c.b16 %v822, %v820
    %v899 = vpack.c.b16 %v825, %v823
    %v900 = vpack.c.b16 %v826, %v824
    %v901 = vpack.c.b16 %v829, %v827
    %v902 = vpack.c.b16 %v830, %v828
    %v903 = vpack.c.b16 %v833, %v831
    %v904 = vpack.c.b16 %v834, %v832
    %v905 = vpack.c.b16 %v837, %v835
    %v906 = vpack.c.b16 %v838, %v836
    %v907 = vpack.c.b16 %v841, %v839
    %v908 = vpack.c.b16 %v842, %v840
    %v909 = vpack.c.b16 %v845, %v843
    %v910 = vpack.c.b16 %v846, %v844
    %v911 = vpack.c.b16 %v849, %v847
    %v912 = vpack.c.b16 %v850, %v848
    %v913 = vpack.c.b16 %v853, %v851
    %v914 = vpack.c.b16 %v854, %v852
    %v915 = vpack.c.b16 %v857, %v855
    %v916 = vpack.c.b16 %v858, %v856
    %v917 = vpack.c.b16 %v861, %v859
    %v918 = vpack.c.b16 %v862, %v860
    %v919 = vpack.c.b16 %v865, %v863
    %v920 = vpack.c.b16 %v866, %v864
    %v921 = vpack.c.b16 %v869, %v867
    %v922 = vpack.c.b16 %v870, %v868
    %v923 = vpack.c.b16 %v873, %v871
    %v924 = vpack.c.b16 %v874, %v872
    %v976 = vsel %vm555, %v281, 0
    %v979 = vsel %vm555, %v285, 0
    %v982 = vsel %vm555, %v289, 0
    %v985 = vsel %vm555, %v293, 0
    %987 = vmatprep.subr.bf16.mxu0 %v876
    %988 = vmatpush1.bf16.msra.mxu0 %v875
    %989 = vmatprep.subr.bf16.mxu0 %v878
    %990 = vmatpush1.bf16.msra.mxu0 %v877
    %991 = vmatprep.subr.bf16.mxu0 %v880
    %992 = vmatpush1.bf16.msra.mxu0 %v879
    %993 = vmatprep.subr.bf16.mxu0 %v882
    %994 = vmatpush1.bf16.msra.mxu0 %v881
    %995 = vmatprep.subr.bf16.mxu0 %v884
    %996 = vmatpush1.bf16.msra.mxu0 %v883
    %997 = vmatprep.subr.bf16.mxu0 %v886
    %998 = vmatpush1.bf16.msra.mxu0 %v885
    %999 = vmatprep.subr.bf16.mxu0 %v888
    %1000 = vmatpush1.bf16.msra.mxu0 %v887
    %1001 = vmatprep.subr.bf16.mxu0 %v890
    %1002 = vmatpush1.bf16.msra.mxu0 %v889
    %1003 = vmatprep.subr.bf16.mxu0 %v892
    %1004 = vmatpush1.bf16.msra.mxu0 %v891
    %1005 = vmatprep.subr.bf16.mxu0 %v894
    %1006 = vmatpush1.bf16.msra.mxu0 %v893
    %1007 = vmatprep.subr.bf16.mxu0 %v896
    %1008 = vmatpush1.bf16.msra.mxu0 %v895
    %1009 = vmatprep.subr.bf16.mxu0 %v898
    %1010 = vmatpush1.bf16.msra.mxu0 %v897
    %1011 = vmatprep.subr.bf16.mxu0 %v900
    %1012 = vmatpush1.bf16.msra.mxu0 %v899
    %1013 = vmatprep.subr.bf16.mxu0 %v902
    %1014 = vmatpush1.bf16.msra.mxu0 %v901
    %1015 = vmatprep.subr.bf16.mxu0 %v904
    %1016 = vmatpush1.bf16.msra.mxu0 %v903
    %1017 = vmatprep.subr.bf16.mxu0 %v906
    %1018 = vmatpush1.bf16.msra.mxu0 %v905
    %1019 = vmatprep.mubr.bf16.mxu0 %v279
    %1020 = vmatmul.mubr.bf16.gmra.mrb[0].mxu0 %v278
    %v1021 = vpop.f32.mrb[0].mxu0
    %v1022 = vadd.f32 %v718, %v1021
    %v1023 = vpop.f32.mrb[0].mxu0
    %v1024 = vadd.f32 %v722, %v1023
    %v1025 = vpop.f32.mrb[0].mxu0
    %v1026 = vadd.f32 %v718, %v1025
    %v1027 = vpop.f32.mrb[0].mxu0
    %v1028 = vadd.f32 %v722, %v1027
    %1029 = vmatprep.mubr.bf16.mxu0 %v283
    %1030 = vmatmul.mubr.bf16.gmra.mrb[0].mxu0 %v282
    %v1031 = vpop.f32.mrb[0].mxu0
    %v1032 = vadd.f32 %v718, %v1031
    %v1033 = vpop.f32.mrb[0].mxu0
    %v1034 = vadd.f32 %v722, %v1033
    %v1035 = vpop.f32.mrb[0].mxu0
    %v1036 = vadd.f32 %v718, %v1035
    %v1037 = vpop.f32.mrb[0].mxu0
    %v1038 = vadd.f32 %v722, %v1037
    %1039 = vmatprep.mubr.bf16.mxu0 %v287
    %1040 = vmatmul.mubr.bf16.gmra.mrb[0].mxu0 %v286
    %v1041 = vpop.f32.mrb[0].mxu0
    %v1042 = vadd.f32 %v718, %v1041
    %v1043 = vpop.f32.mrb[0].mxu0
    %v1044 = vadd.f32 %v722, %v1043
    %v1045 = vpop.f32.mrb[0].mxu0
    %v1046 = vadd.f32 %v718, %v1045
    %v1047 = vpop.f32.mrb[0].mxu0
    %v1048 = vadd.f32 %v722, %v1047
    %1049 = vmatprep.mubr.bf16.mxu0 %v291
    %1050 = vmatmul.mubr.bf16.gmra.mrb[0].mxu0 %v290
    %v1051 = vpop.f32.mrb[0].mxu0
    %v1052 = vadd.f32 %v718, %v1051
    %v1053 = vpop.f32.mrb[0].mxu0
    %v1054 = vadd.f32 %v722, %v1053
    %v1055 = vpop.f32.mrb[0].mxu0
    %v1056 = vadd.f32 %v718, %v1055
    %v1057 = vpop.f32.mrb[0].mxu0
    %v1058 = vadd.f32 %v722, %v1057
    %1059 = vdwg.mxu0
    %1060 = vmatprep.subr.bf16.mxu0 %v908
    %1061 = vmatpush1.bf16.msra.mxu0 %v907
    %1062 = vmatprep.subr.bf16.mxu0 %v910
    %1063 = vmatpush1.bf16.msra.mxu0 %v909
    %1064 = vmatprep.subr.bf16.mxu0 %v912
    %1065 = vmatpush1.bf16.msra.mxu0 %v911
    %1066 = vmatprep.subr.bf16.mxu0 %v914
    %1067 = vmatpush1.bf16.msra.mxu0 %v913
    %1068 = vmatprep.subr.bf16.mxu0 %v916
    %1069 = vmatpush1.bf16.msra.mxu0 %v915
    %1070 = vmatprep.subr.bf16.mxu0 %v918
    %1071 = vmatpush1.bf16.msra.mxu0 %v917
    %1072 = vmatprep.subr.bf16.mxu0 %v920
    %1073 = vmatpush1.bf16.msra.mxu0 %v919
    %1074 = vmatprep.subr.bf16.mxu0 %v922
    %1075 = vmatpush1.bf16.msra.mxu0 %v921
    %1076 = vmatprep.subr.bf16.mxu0 %v924
    %1077 = vmatpush1.bf16.msra.mxu0 %v923
    %1078 = vmatprep.subr.bf16.mxu0 0
    %1079 = vmatpush1.bf16.msra.mxu0 0
    %1080 = vmatprep.subr.bf16.mxu0 0
    %1081 = vmatpush1.bf16.msra.mxu0 0
    %1082 = vmatprep.subr.bf16.mxu0 0
    %1083 = vmatpush1.bf16.msra.mxu0 0
    %1084 = vmatprep.subr.bf16.mxu0 0
    %1085 = vmatpush1.bf16.msra.mxu0 0
    %1086 = vmatprep.subr.bf16.mxu0 0
    %1087 = vmatpush1.bf16.msra.mxu0 0
    %1088 = vmatprep.subr.bf16.mxu0 0
    %1089 = vmatpush1.bf16.msra.mxu0 0
    %1090 = vmatprep.subr.bf16.mxu0 0
    %1091 = vmatpush1.bf16.msra.mxu0 0
    %1092 = vmatprep.mubr.bf16.mxu0 %v976
    %1093 = vmatmul.mubr.bf16.gmra.mrb[0].mxu0 %v280
    %v1094 = vpop.f32.mrb[0].mxu0
    %v1095 = vadd.f32 %v1022, %v1094
    %v1096 = vpop.f32.mrb[0].mxu0
    %v1097 = vadd.f32 %v1024, %v1096
    %v1098 = vpop.f32.mrb[0].mxu0
    %v1099 = vadd.f32 %v1026, %v1098
    %v1100 = vpop.f32.mrb[0].mxu0
    %v1101 = vadd.f32 %v1028, %v1100
    %1102 = vmatprep.mubr.bf16.mxu0 %v979
    %1103 = vmatmul.mubr.bf16.gmra.mrb[0].mxu0 %v284
    %v1104 = vpop.f32.mrb[0].mxu0
    %v1105 = vadd.f32 %v1032, %v1104
    %v1106 = vpop.f32.mrb[0].mxu0
    %v1107 = vadd.f32 %v1034, %v1106
    %v1108 = vpop.f32.mrb[0].mxu0
    %v1109 = vadd.f32 %v1036, %v1108
    %v1110 = vpop.f32.mrb[0].mxu0
    %v1111 = vadd.f32 %v1038, %v1110
    %1112 = vmatprep.mubr.bf16.mxu0 %v982
    %1113 = vmatmul.mubr.bf16.gmra.mrb[0].mxu0 %v288
    %v1114 = vpop.f32.mrb[0].mxu0
    %v1115 = vadd.f32 %v1042, %v1114
    %v1116 = vpop.f32.mrb[0].mxu0
    %v1117 = vadd.f32 %v1044, %v1116
    %v1118 = vpop.f32.mrb[0].mxu0
    %v1119 = vadd.f32 %v1046, %v1118
    %v1120 = vpop.f32.mrb[0].mxu0
    %v1121 = vadd.f32 %v1048, %v1120
    %1122 = vmatprep.mubr.bf16.mxu0 %v985
    %1123 = vmatmul.mubr.bf16.gmra.mrb[0].mxu0 %v292
    %v1124 = vpop.f32.mrb[0].mxu0
    %v1125 = vadd.f32 %v1052, %v1124
    %v1126 = vpop.f32.mrb[0].mxu0
    %v1127 = vadd.f32 %v1054, %v1126
    %v1128 = vpop.f32.mrb[0].mxu0
    %v1129 = vadd.f32 %v1056, %v1128
    %v1130 = vpop.f32.mrb[0].mxu0
    %v1131 = vadd.f32 %v1058, %v1130
    %1132 = vdwg.mxu0
    %v1133 = vtanh.pop %v676
    %v1134 = vtanh.pop %v680
    %v1135 = vtanh.pop %v686
    %v1136 = vtanh.pop %v690
    %v1137 = vtanh.pop %v696
    %v1138 = vtanh.pop %v700
    %v1139 = vtanh.pop %v706
    %v1140 = vtanh.pop %v710
    %v1141 = vtanh.pop %v1095
    %v1142 = vtanh.pop %v1099
    %v1143 = vtanh.pop %v1105
    %v1144 = vtanh.pop %v1109
    %v1145 = vtanh.pop %v1115
    %v1146 = vtanh.pop %v1119
    %v1147 = vtanh.pop %v1125
    %v1148 = vtanh.pop %v1129
    %v1149 = vld [vmem:[%s4] sm:$0x1]
    %v1150 = vld [vmem:[%s4 + $0x1] sm:$0x1]
    %v1151 = vlaneseq
    %v1152 = vshrl.u32 %v1151, 7
    %v1153 = vsub.s32 0, %v1152
    %v1154 = vrot.slane %v1149, %v1153
    %v1155 = vmul.f32 %v1133, %v1154
    %v1156 = vmul.f32 %v1134, %v1154
    %v1157 = vmul.f32 %v1135, %v1154
    %v1158 = vmul.f32 %v1136, %v1154
    %v1159 = vmul.f32 %v1137, %v1154
    %v1160 = vmul.f32 %v1138, %v1154
    %v1161 = vmul.f32 %v1139, %v1154
    %v1162 = vmul.f32 %v1140, %v1154
    %1163 = vadd.xlane.f32.xlu0 %v1155
    %v1164 = vpop.xlane.xlu0 %1163
    %1165 = vadd.xlane.f32.xlu0 %v1156
    %v1166 = vpop.xlane.xlu0 %1165
    %1167 = vadd.xlane.f32.xlu0 %v1157
    %v1168 = vpop.xlane.xlu0 %1167
    %1169 = vadd.xlane.f32.xlu0 %v1158
    %v1170 = vpop.xlane.xlu0 %1169
    %1171 = vadd.xlane.f32.xlu0 %v1159
    %v1172 = vpop.xlane.xlu0 %1171
    %1173 = vadd.xlane.f32.xlu0 %v1160
    %v1174 = vpop.xlane.xlu0 %1173
    %1175 = vadd.xlane.f32.xlu0 %v1161
    %v1176 = vpop.xlane.xlu0 %1175
    %1177 = vadd.xlane.f32.xlu0 %v1162
    %v1178 = vpop.xlane.xlu0 %1177
    %s1179 = sld [smem:[#allocation11]]
    %v1180 = vstv %s1179
    %v1181 = vadd.f32 %v1164, %v1180
    %v1182 = vadd.f32 %v1166, %v1180
    %v1183 = vadd.f32 %v1168, %v1180
    %v1184 = vadd.f32 %v1170, %v1180
    %v1185 = vadd.f32 %v1172, %v1180
    %v1186 = vadd.f32 %v1174, %v1180
    %v1187 = vadd.f32 %v1176, %v1180
    %v1188 = vadd.f32 %v1178, %v1180
    %v1189 = vlaneseq
    %v1190 = vshrl.u32 %v1189, 7
    %v1191 = vsub.s32 0, %v1190
    %v1192 = vrot.slane %v1150, %v1191
    %v1193 = vmul.f32 %v1141, %v1192
    %v1194 = vmul.f32 %v1142, %v1192
    %v1195 = vmul.f32 %v1143, %v1192
    %v1196 = vmul.f32 %v1144, %v1192
    %v1197 = vmul.f32 %v1145, %v1192
    %v1198 = vmul.f32 %v1146, %v1192
    %v1199 = vmul.f32 %v1147, %v1192
    %v1200 = vmul.f32 %v1148, %v1192
    %1201 = vadd.xlane.f32.xlu0 %v1193
    %v1202 = vpop.xlane.xlu0 %1201
    %1203 = vadd.xlane.f32.xlu0 %v1194
    %v1204 = vpop.xlane.xlu0 %1203
    %1205 = vadd.xlane.f32.xlu0 %v1195
    %v1206 = vpop.xlane.xlu0 %1205
    %1207 = vadd.xlane.f32.xlu0 %v1196
    %v1208 = vpop.xlane.xlu0 %1207
    %1209 = vadd.xlane.f32.xlu0 %v1197
    %v1210 = vpop.xlane.xlu0 %1209
    %1211 = vadd.xlane.f32.xlu0 %v1198
    %v1212 = vpop.xlane.xlu0 %1211
    %1213 = vadd.xlane.f32.xlu0 %v1199
    %v1214 = vpop.xlane.xlu0 %1213
    %1215 = vadd.xlane.f32.xlu0 %v1200
    %v1216 = vpop.xlane.xlu0 %1215
    %s1217 = sld [smem:[#allocation11 + $0x1]]
    %v1218 = vstv %s1217
    %v1219 = vadd.f32 %v1202, %v1218
    %v1220 = vadd.f32 %v1204, %v1218
    %v1221 = vadd.f32 %v1206, %v1218
    %v1222 = vadd.f32 %v1208, %v1218
    %v1223 = vadd.f32 %v1210, %v1218
    %v1224 = vadd.f32 %v1212, %v1218
    %v1225 = vadd.f32 %v1214, %v1218
    %v1226 = vadd.f32 %v1216, %v1218
    %v1235 = vlaneseq
    %v1236 = vand.u32 %v1235, 127
    %v1237 = vlaneseq
    %v1238 = vshrl.u32 %v1237, 7
    %v1239 = vsub.s32 %v1236, %v1238
    %v1240 = vrot.slane %v1181, %v1239
    %v1241 = vlaneseq
    %v1242 = vshrl.u32 %v1241, 7
    %v1243 = vsub.s32 %v1236, %v1242
    %v1244 = vrot.slane %v1182, %v1243
    %v1245 = vlaneseq
    %v1246 = vshrl.u32 %v1245, 7
    %v1247 = vsub.s32 %v1236, %v1246
    %v1248 = vrot.slane %v1183, %v1247
    %v1249 = vlaneseq
    %v1250 = vshrl.u32 %v1249, 7
    %v1251 = vsub.s32 %v1236, %v1250
    %v1252 = vrot.slane %v1184, %v1251
    %v1253 = vlaneseq
    %v1254 = vshrl.u32 %v1253, 7
    %v1255 = vsub.s32 %v1236, %v1254
    %v1256 = vrot.slane %v1185, %v1255
    %v1257 = vlaneseq
    %v1258 = vshrl.u32 %v1257, 7
    %v1259 = vsub.s32 %v1236, %v1258
    %v1260 = vrot.slane %v1186, %v1259
    %v1261 = vlaneseq
    %v1262 = vshrl.u32 %v1261, 7
    %v1263 = vsub.s32 %v1236, %v1262
    %v1264 = vrot.slane %v1187, %v1263
    %v1265 = vlaneseq
    %v1266 = vshrl.u32 %v1265, 7
    %v1267 = vsub.s32 %v1236, %v1266
    %v1268 = vrot.slane %v1188, %v1267
    %vm1269 = vcmask 1041409
    %v1270 = vsel %vm1269, %v1244, %v1240
    %vm1271 = vcmask 1042434
    %v1272 = vsel %vm1271, %v1248, %v1270
    %vm1273 = vcmask 1043459
    %v1274 = vsel %vm1273, %v1252, %v1272
    %vm1275 = vcmask 1044484
    %v1276 = vsel %vm1275, %v1256, %v1274
    %vm1277 = vcmask 1045509
    %v1278 = vsel %vm1277, %v1260, %v1276
    %vm1279 = vcmask 1046534
    %v1280 = vsel %vm1279, %v1264, %v1278
    %vm1281 = vcmask 1047559
    %v1282 = vsel %vm1281, %v1268, %v1280
    %1284 = vxpose.xlu0.b32.start [1/16] %v1282, 128
    %1285 = vxpose.xlu0.b32.cont [2/16] 0.0, 128
    %1286 = vxpose.xlu0.b32.cont [3/16] 0.0, 128
    %1287 = vxpose.xlu0.b32.cont [4/16] 0.0, 128
    %1288 = vxpose.xlu0.b32.cont [5/16] 0.0, 128
    %1289 = vxpose.xlu0.b32.cont [6/16] 0.0, 128
    %1290 = vxpose.xlu0.b32.cont [7/16] 0.0, 128
    %1291 = vxpose.xlu0.b32.cont [8/16] 0.0, 128
    %1292 = vxpose.xlu0.b32.cont [9/16] 0.0, 128
    %1293 = vxpose.xlu0.b32.cont [10/16] 0.0, 128
    %1294 = vxpose.xlu0.b32.cont [11/16] 0.0, 128
    %1295 = vxpose.xlu0.b32.cont [12/16] 0.0, 128
    %1296 = vxpose.xlu0.b32.cont [13/16] 0.0, 128
    %1297 = vxpose.xlu0.b32.cont [14/16] 0.0, 128
    %1298 = vxpose.xlu0.b32.cont [15/16] 0.0, 128
    %1299 = vxpose.xlu0.b32.end [16/16] 0.0, 128
    %v1300 = vpop.trf.xlu0
    %v1301 = vpop.trf.xlu0
    %v1302 = vpop.trf.xlu0
    %v1303 = vpop.trf.xlu0
    %v1304 = vpop.trf.xlu0
    %v1305 = vpop.trf.xlu0
    %v1306 = vpop.trf.xlu0
    %v1307 = vpop.trf.xlu0
    %v1308 = vpop.trf.xlu0
    %v1309 = vpop.trf.xlu0
    %v1310 = vpop.trf.xlu0
    %v1311 = vpop.trf.xlu0
    %v1312 = vpop.trf.xlu0
    %v1313 = vpop.trf.xlu0
    %v1314 = vpop.trf.xlu0
    %v1315 = vpop.trf.xlu0
    %v1324 = vlaneseq
    %v1325 = vshrl.u32 %v1324, 7
    %v1326 = vsub.s32 %v1236, %v1325
    %v1327 = vrot.slane %v1219, %v1326
    %v1328 = vlaneseq
    %v1329 = vshrl.u32 %v1328, 7
    %v1330 = vsub.s32 %v1236, %v1329
    %v1331 = vrot.slane %v1220, %v1330
    %v1332 = vlaneseq
    %v1333 = vshrl.u32 %v1332, 7
    %v1334 = vsub.s32 %v1236, %v1333
    %v1335 = vrot.slane %v1221, %v1334
    %v1336 = vlaneseq
    %v1337 = vshrl.u32 %v1336, 7
    %v1338 = vsub.s32 %v1236, %v1337
    %v1339 = vrot.slane %v1222, %v1338
    %v1340 = vlaneseq
    %v1341 = vshrl.u32 %v1340, 7
    %v1342 = vsub.s32 %v1236, %v1341
    %v1343 = vrot.slane %v1223, %v1342
    %v1344 = vlaneseq
    %v1345 = vshrl.u32 %v1344, 7
    %v1346 = vsub.s32 %v1236, %v1345
    %v1347 = vrot.slane %v1224, %v1346
    %v1348 = vlaneseq
    %v1349 = vshrl.u32 %v1348, 7
    %v1350 = vsub.s32 %v1236, %v1349
    %v1351 = vrot.slane %v1225, %v1350
    %v1352 = vlaneseq
    %v1353 = vshrl.u32 %v1352, 7
    %v1354 = vsub.s32 %v1236, %v1353
    %v1355 = vrot.slane %v1226, %v1354
    %v1356 = vsel %vm1269, %v1331, %v1327
    %v1357 = vsel %vm1271, %v1335, %v1356
    %v1358 = vsel %vm1273, %v1339, %v1357
    %v1359 = vsel %vm1275, %v1343, %v1358
    %v1360 = vsel %vm1277, %v1347, %v1359
    %v1361 = vsel %vm1279, %v1351, %v1360
    %v1362 = vsel %vm1281, %v1355, %v1361
    %1364 = vxpose.xlu0.b32.start [1/16] %v1362, 128
    %1365 = vxpose.xlu0.b32.cont [2/16] 0.0, 128
    %1366 = vxpose.xlu0.b32.cont [3/16] 0.0, 128
    %1367 = vxpose.xlu0.b32.cont [4/16] 0.0, 128
    %1368 = vxpose.xlu0.b32.cont [5/16] 0.0, 128
    %1369 = vxpose.xlu0.b32.cont [6/16] 0.0, 128
    %1370 = vxpose.xlu0.b32.cont [7/16] 0.0, 128
    %1371 = vxpose.xlu0.b32.cont [8/16] 0.0, 128
    %1372 = vxpose.xlu0.b32.cont [9/16] 0.0, 128
    %1373 = vxpose.xlu0.b32.cont [10/16] 0.0, 128
    %1374 = vxpose.xlu0.b32.cont [11/16] 0.0, 128
    %1375 = vxpose.xlu0.b32.cont [12/16] 0.0, 128
    %1376 = vxpose.xlu0.b32.cont [13/16] 0.0, 128
    %1377 = vxpose.xlu0.b32.cont [14/16] 0.0, 128
    %1378 = vxpose.xlu0.b32.cont [15/16] 0.0, 128
    %1379 = vxpose.xlu0.b32.end [16/16] 0.0, 128
    %v1380 = vpop.trf.xlu0
    %v1381 = vpop.trf.xlu0
    %v1382 = vpop.trf.xlu0
    %v1383 = vpop.trf.xlu0
    %v1384 = vpop.trf.xlu0
    %v1385 = vpop.trf.xlu0
    %v1386 = vpop.trf.xlu0
    %v1387 = vpop.trf.xlu0
    %v1388 = vpop.trf.xlu0
    %v1389 = vpop.trf.xlu0
    %v1390 = vpop.trf.xlu0
    %v1391 = vpop.trf.xlu0
    %v1392 = vpop.trf.xlu0
    %v1393 = vpop.trf.xlu0
    %v1394 = vpop.trf.xlu0
    %v1395 = vpop.trf.xlu0
    %v1396 = vlaneseq
    %v1397 = vshrl.u32 %v1396, 7
    %v1398 = vsub.s32 0, %v1397
    %v1399 = vrot.slane %v1097, %v1398
    %v1400 = vlaneseq
    %v1401 = vshrl.u32 %v1400, 7
    %v1402 = vsub.s32 0, %v1401
    %v1403 = vrot.slane %v1101, %v1402
    %v1404 = vlaneseq
    %v1405 = vshrl.u32 %v1404, 7
    %v1406 = vsub.s32 0, %v1405
    %v1407 = vrot.slane %v1107, %v1406
    %v1408 = vlaneseq
    %v1409 = vshrl.u32 %v1408, 7
    %v1410 = vsub.s32 0, %v1409
    %v1411 = vrot.slane %v1111, %v1410
    %v1412 = vlaneseq
    %v1413 = vshrl.u32 %v1412, 7
    %v1414 = vsub.s32 0, %v1413
    %v1415 = vrot.slane %v1117, %v1414
    %v1416 = vlaneseq
    %v1417 = vshrl.u32 %v1416, 7
    %v1418 = vsub.s32 0, %v1417
    %v1419 = vrot.slane %v1121, %v1418
    %v1420 = vlaneseq
    %v1421 = vshrl.u32 %v1420, 7
    %v1422 = vsub.s32 0, %v1421
    %v1423 = vrot.slane %v1127, %v1422
    %v1424 = vlaneseq
    %v1425 = vshrl.u32 %v1424, 7
    %v1426 = vsub.s32 0, %v1425
    %v1427 = vrot.slane %v1131, %v1426
    %v1428 = vmul.f32 %v678, %v1399
    %v1429 = vmul.f32 %v682, %v1403
    %v1430 = vmul.f32 %v688, %v1407
    %v1431 = vmul.f32 %v692, %v1411
    %v1432 = vmul.f32 %v698, %v1415
    %v1433 = vmul.f32 %v702, %v1419
    %v1434 = vmul.f32 %v708, %v1423
    %v1435 = vmul.f32 %v712, %v1427
    %1436 = vadd.xlane.f32.xlu0 %v1428
    %v1437 = vpop.xlane.xlu0 %1436
    %1438 = vadd.xlane.f32.xlu0 %v1429
    %v1439 = vpop.xlane.xlu0 %1438
    %1440 = vadd.xlane.f32.xlu0 %v1430
    %v1441 = vpop.xlane.xlu0 %1440
    %1442 = vadd.xlane.f32.xlu0 %v1431
    %v1443 = vpop.xlane.xlu0 %1442
    %1444 = vadd.xlane.f32.xlu0 %v1432
    %v1445 = vpop.xlane.xlu0 %1444
    %1446 = vadd.xlane.f32.xlu0 %v1433
    %v1447 = vpop.xlane.xlu0 %1446
    %1448 = vadd.xlane.f32.xlu0 %v1434
    %v1449 = vpop.xlane.xlu0 %1448
    %1450 = vadd.xlane.f32.xlu0 %v1435
    %v1451 = vpop.xlane.xlu0 %1450
    %v1460 = vlaneseq
    %v1461 = vshrl.u32 %v1460, 7
    %v1462 = vsub.s32 %v1236, %v1461
    %v1463 = vrot.slane %v1437, %v1462
    %v1464 = vlaneseq
    %v1465 = vshrl.u32 %v1464, 7
    %v1466 = vsub.s32 %v1236, %v1465
    %v1467 = vrot.slane %v1439, %v1466
    %v1468 = vlaneseq
    %v1469 = vshrl.u32 %v1468, 7
    %v1470 = vsub.s32 %v1236, %v1469
    %v1471 = vrot.slane %v1441, %v1470
    %v1472 = vlaneseq
    %v1473 = vshrl.u32 %v1472, 7
    %v1474 = vsub.s32 %v1236, %v1473
    %v1475 = vrot.slane %v1443, %v1474
    %v1476 = vlaneseq
    %v1477 = vshrl.u32 %v1476, 7
    %v1478 = vsub.s32 %v1236, %v1477
    %v1479 = vrot.slane %v1445, %v1478
    %v1480 = vlaneseq
    %v1481 = vshrl.u32 %v1480, 7
    %v1482 = vsub.s32 %v1236, %v1481
    %v1483 = vrot.slane %v1447, %v1482
    %v1484 = vlaneseq
    %v1485 = vshrl.u32 %v1484, 7
    %v1486 = vsub.s32 %v1236, %v1485
    %v1487 = vrot.slane %v1449, %v1486
    %v1488 = vlaneseq
    %v1489 = vshrl.u32 %v1488, 7
    %v1490 = vsub.s32 %v1236, %v1489
    %v1491 = vrot.slane %v1451, %v1490
    %v1492 = vsel %vm1269, %v1467, %v1463
    %v1493 = vsel %vm1271, %v1471, %v1492
    %v1494 = vsel %vm1273, %v1475, %v1493
    %v1495 = vsel %vm1275, %v1479, %v1494
    %v1496 = vsel %vm1277, %v1483, %v1495
    %v1497 = vsel %vm1279, %v1487, %v1496
    %v1498 = vsel %vm1281, %v1491, %v1497
    %1500 = vxpose.xlu0.b32.start [1/16] %v1498, 128
    %1501 = vxpose.xlu0.b32.cont [2/16] 0.0, 128
    %1502 = vxpose.xlu0.b32.cont [3/16] 0.0, 128
    %1503 = vxpose.xlu0.b32.cont [4/16] 0.0, 128
    %1504 = vxpose.xlu0.b32.cont [5/16] 0.0, 128
    %1505 = vxpose.xlu0.b32.cont [6/16] 0.0, 128
    %1506 = vxpose.xlu0.b32.cont [7/16] 0.0, 128
    %1507 = vxpose.xlu0.b32.cont [8/16] 0.0, 128
    %1508 = vxpose.xlu0.b32.cont [9/16] 0.0, 128
    %1509 = vxpose.xlu0.b32.cont [10/16] 0.0, 128
    %1510 = vxpose.xlu0.b32.cont [11/16] 0.0, 128
    %1511 = vxpose.xlu0.b32.cont [12/16] 0.0, 128
    %1512 = vxpose.xlu0.b32.cont [13/16] 0.0, 128
    %1513 = vxpose.xlu0.b32.cont [14/16] 0.0, 128
    %1514 = vxpose.xlu0.b32.cont [15/16] 0.0, 128
    %1515 = vxpose.xlu0.b32.end [16/16] 0.0, 128
    %v1516 = vpop.trf.xlu0
    %v1517 = vpop.trf.xlu0
    %v1518 = vpop.trf.xlu0
    %v1519 = vpop.trf.xlu0
    %v1520 = vpop.trf.xlu0
    %v1521 = vpop.trf.xlu0
    %v1522 = vpop.trf.xlu0
    %v1523 = vpop.trf.xlu0
    %v1524 = vpop.trf.xlu0
    %v1525 = vpop.trf.xlu0
    %v1526 = vpop.trf.xlu0
    %v1527 = vpop.trf.xlu0
    %v1528 = vpop.trf.xlu0
    %v1529 = vpop.trf.xlu0
    %v1530 = vpop.trf.xlu0
    %v1531 = vpop.trf.xlu0
    %v1532 = vlaneseq
    %v1533 = vshrl.u32 %v1532, 7
    %v1534 = vsub.s32 1, %v1533
    %v1535 = vrot.slane %v1097, %v1534
    %v1536 = vlaneseq
    %v1537 = vshrl.u32 %v1536, 7
    %v1538 = vsub.s32 1, %v1537
    %v1539 = vrot.slane %v1101, %v1538
    %v1540 = vlaneseq
    %v1541 = vshrl.u32 %v1540, 7
    %v1542 = vsub.s32 1, %v1541
    %v1543 = vrot.slane %v1107, %v1542
    %v1544 = vlaneseq
    %v1545 = vshrl.u32 %v1544, 7
    %v1546 = vsub.s32 1, %v1545
    %v1547 = vrot.slane %v1111, %v1546
    %v1548 = vlaneseq
    %v1549 = vshrl.u32 %v1548, 7
    %v1550 = vsub.s32 1, %v1549
    %v1551 = vrot.slane %v1117, %v1550
    %v1552 = vlaneseq
    %v1553 = vshrl.u32 %v1552, 7
    %v1554 = vsub.s32 1, %v1553
    %v1555 = vrot.slane %v1121, %v1554
    %v1556 = vlaneseq
    %v1557 = vshrl.u32 %v1556, 7
    %v1558 = vsub.s32 1, %v1557
    %v1559 = vrot.slane %v1127, %v1558
    %v1560 = vlaneseq
    %v1561 = vshrl.u32 %v1560, 7
    %v1562 = vsub.s32 1, %v1561
    %v1563 = vrot.slane %v1131, %v1562
    %v1564 = vmul.f32 %v678, %v1535
    %v1565 = vmul.f32 %v682, %v1539
    %v1566 = vmul.f32 %v688, %v1543
    %v1567 = vmul.f32 %v692, %v1547
    %v1568 = vmul.f32 %v698, %v1551
    %v1569 = vmul.f32 %v702, %v1555
    %v1570 = vmul.f32 %v708, %v1559
    %v1571 = vmul.f32 %v712, %v1563
    %1572 = vadd.xlane.f32.xlu0 %v1564
    %v1573 = vpop.xlane.xlu0 %1572
    %1574 = vadd.xlane.f32.xlu0 %v1565
    %v1575 = vpop.xlane.xlu0 %1574
    %1576 = vadd.xlane.f32.xlu0 %v1566
    %v1577 = vpop.xlane.xlu0 %1576
    %1578 = vadd.xlane.f32.xlu0 %v1567
    %v1579 = vpop.xlane.xlu0 %1578
    %1580 = vadd.xlane.f32.xlu0 %v1568
    %v1581 = vpop.xlane.xlu0 %1580
    %1582 = vadd.xlane.f32.xlu0 %v1569
    %v1583 = vpop.xlane.xlu0 %1582
    %1584 = vadd.xlane.f32.xlu0 %v1570
    %v1585 = vpop.xlane.xlu0 %1584
    %1586 = vadd.xlane.f32.xlu0 %v1571
    %v1587 = vpop.xlane.xlu0 %1586
    %v1596 = vlaneseq
    %v1597 = vshrl.u32 %v1596, 7
    %v1598 = vsub.s32 %v1236, %v1597
    %v1599 = vrot.slane %v1573, %v1598
    %v1600 = vlaneseq
    %v1601 = vshrl.u32 %v1600, 7
    %v1602 = vsub.s32 %v1236, %v1601
    %v1603 = vrot.slane %v1575, %v1602
    %v1604 = vlaneseq
    %v1605 = vshrl.u32 %v1604, 7
    %v1606 = vsub.s32 %v1236, %v1605
    %v1607 = vrot.slane %v1577, %v1606
    %v1608 = vlaneseq
    %v1609 = vshrl.u32 %v1608, 7
    %v1610 = vsub.s32 %v1236, %v1609
    %v1611 = vrot.slane %v1579, %v1610
    %v1612 = vlaneseq
    %v1613 = vshrl.u32 %v1612, 7
    %v1614 = vsub.s32 %v1236, %v1613
    %v1615 = vrot.slane %v1581, %v1614
    %v1616 = vlaneseq
    %v1617 = vshrl.u32 %v1616, 7
    %v1618 = vsub.s32 %v1236, %v1617
    %v1619 = vrot.slane %v1583, %v1618
    %v1620 = vlaneseq
    %v1621 = vshrl.u32 %v1620, 7
    %v1622 = vsub.s32 %v1236, %v1621
    %v1623 = vrot.slane %v1585, %v1622
    %v1624 = vlaneseq
    %v1625 = vshrl.u32 %v1624, 7
    %v1626 = vsub.s32 %v1236, %v1625
    %v1627 = vrot.slane %v1587, %v1626
    %v1628 = vsel %vm1269, %v1603, %v1599
    %v1629 = vsel %vm1271, %v1607, %v1628
    %v1630 = vsel %vm1273, %v1611, %v1629
    %v1631 = vsel %vm1275, %v1615, %v1630
    %v1632 = vsel %vm1277, %v1619, %v1631
    %v1633 = vsel %vm1279, %v1623, %v1632
    %v1634 = vsel %vm1281, %v1627, %v1633
    %1636 = vxpose.xlu0.b32.start [1/16] %v1634, 128
    %1637 = vxpose.xlu0.b32.cont [2/16] 0.0, 128
    %1638 = vxpose.xlu0.b32.cont [3/16] 0.0, 128
    %1639 = vxpose.xlu0.b32.cont [4/16] 0.0, 128
    %1640 = vxpose.xlu0.b32.cont [5/16] 0.0, 128
    %1641 = vxpose.xlu0.b32.cont [6/16] 0.0, 128
    %1642 = vxpose.xlu0.b32.cont [7/16] 0.0, 128
    %1643 = vxpose.xlu0.b32.cont [8/16] 0.0, 128
    %1644 = vxpose.xlu0.b32.cont [9/16] 0.0, 128
    %1645 = vxpose.xlu0.b32.cont [10/16] 0.0, 128
    %1646 = vxpose.xlu0.b32.cont [11/16] 0.0, 128
    %1647 = vxpose.xlu0.b32.cont [12/16] 0.0, 128
    %1648 = vxpose.xlu0.b32.cont [13/16] 0.0, 128
    %1649 = vxpose.xlu0.b32.cont [14/16] 0.0, 128
    %1650 = vxpose.xlu0.b32.cont [15/16] 0.0, 128
    %1651 = vxpose.xlu0.b32.end [16/16] 0.0, 128
    %v1652 = vpop.trf.xlu0
    %v1653 = vpop.trf.xlu0
    %v1654 = vpop.trf.xlu0
    %v1655 = vpop.trf.xlu0
    %v1656 = vpop.trf.xlu0
    %v1657 = vpop.trf.xlu0
    %v1658 = vpop.trf.xlu0
    %v1659 = vpop.trf.xlu0
    %v1660 = vpop.trf.xlu0
    %v1661 = vpop.trf.xlu0
    %v1662 = vpop.trf.xlu0
    %v1663 = vpop.trf.xlu0
    %v1664 = vpop.trf.xlu0
    %v1665 = vpop.trf.xlu0
    %v1666 = vpop.trf.xlu0
    %v1667 = vpop.trf.xlu0
    %v1668 = vlaneseq
    %v1669 = vshrl.u32 %v1668, 7
    %v1670 = vsub.s32 2, %v1669
    %v1671 = vrot.slane %v1097, %v1670
    %v1672 = vlaneseq
    %v1673 = vshrl.u32 %v1672, 7
    %v1674 = vsub.s32 2, %v1673
    %v1675 = vrot.slane %v1101, %v1674
    %v1676 = vlaneseq
    %v1677 = vshrl.u32 %v1676, 7
    %v1678 = vsub.s32 2, %v1677
    %v1679 = vrot.slane %v1107, %v1678
    %v1680 = vlaneseq
    %v1681 = vshrl.u32 %v1680, 7
    %v1682 = vsub.s32 2, %v1681
    %v1683 = vrot.slane %v1111, %v1682
    %v1684 = vlaneseq
    %v1685 = vshrl.u32 %v1684, 7
    %v1686 = vsub.s32 2, %v1685
    %v1687 = vrot.slane %v1117, %v1686
    %v1688 = vlaneseq
    %v1689 = vshrl.u32 %v1688, 7
    %v1690 = vsub.s32 2, %v1689
    %v1691 = vrot.slane %v1121, %v1690
    %v1692 = vlaneseq
    %v1693 = vshrl.u32 %v1692, 7
    %v1694 = vsub.s32 2, %v1693
    %v1695 = vrot.slane %v1127, %v1694
    %v1696 = vlaneseq
    %v1697 = vshrl.u32 %v1696, 7
    %v1698 = vsub.s32 2, %v1697
    %v1699 = vrot.slane %v1131, %v1698
    %v1700 = vmul.f32 %v678, %v1671
    %v1701 = vmul.f32 %v682, %v1675
    %v1702 = vmul.f32 %v688, %v1679
    %v1703 = vmul.f32 %v692, %v1683
    %v1704 = vmul.f32 %v698, %v1687
    %v1705 = vmul.f32 %v702, %v1691
    %v1706 = vmul.f32 %v708, %v1695
    %v1707 = vmul.f32 %v712, %v1699
    %1708 = vadd.xlane.f32.xlu0 %v1700
    %v1709 = vpop.xlane.xlu0 %1708
    %1710 = vadd.xlane.f32.xlu0 %v1701
    %v1711 = vpop.xlane.xlu0 %1710
    %1712 = vadd.xlane.f32.xlu0 %v1702
    %v1713 = vpop.xlane.xlu0 %1712
    %1714 = vadd.xlane.f32.xlu0 %v1703
    %v1715 = vpop.xlane.xlu0 %1714
    %1716 = vadd.xlane.f32.xlu0 %v1704
    %v1717 = vpop.xlane.xlu0 %1716
    %1718 = vadd.xlane.f32.xlu0 %v1705
    %v1719 = vpop.xlane.xlu0 %1718
    %1720 = vadd.xlane.f32.xlu0 %v1706
    %v1721 = vpop.xlane.xlu0 %1720
    %1722 = vadd.xlane.f32.xlu0 %v1707
    %v1723 = vpop.xlane.xlu0 %1722
    %v1732 = vlaneseq
    %v1733 = vshrl.u32 %v1732, 7
    %v1734 = vsub.s32 %v1236, %v1733
    %v1735 = vrot.slane %v1709, %v1734
    %v1736 = vlaneseq
    %v1737 = vshrl.u32 %v1736, 7
    %v1738 = vsub.s32 %v1236, %v1737
    %v1739 = vrot.slane %v1711, %v1738
    %v1740 = vlaneseq
    %v1741 = vshrl.u32 %v1740, 7
    %v1742 = vsub.s32 %v1236, %v1741
    %v1743 = vrot.slane %v1713, %v1742
    %v1744 = vlaneseq
    %v1745 = vshrl.u32 %v1744, 7
    %v1746 = vsub.s32 %v1236, %v1745
    %v1747 = vrot.slane %v1715, %v1746
    %v1748 = vlaneseq
    %v1749 = vshrl.u32 %v1748, 7
    %v1750 = vsub.s32 %v1236, %v1749
    %v1751 = vrot.slane %v1717, %v1750
    %v1752 = vlaneseq
    %v1753 = vshrl.u32 %v1752, 7
    %v1754 = vsub.s32 %v1236, %v1753
    %v1755 = vrot.slane %v1719, %v1754
    %v1756 = vlaneseq
    %v1757 = vshrl.u32 %v1756, 7
    %v1758 = vsub.s32 %v1236, %v1757
    %v1759 = vrot.slane %v1721, %v1758
    %v1760 = vlaneseq
    %v1761 = vshrl.u32 %v1760, 7
    %v1762 = vsub.s32 %v1236, %v1761
    %v1763 = vrot.slane %v1723, %v1762
    %v1764 = vsel %vm1269, %v1739, %v1735
    %v1765 = vsel %vm1271, %v1743, %v1764
    %v1766 = vsel %vm1273, %v1747, %v1765
    %v1767 = vsel %vm1275, %v1751, %v1766
    %v1768 = vsel %vm1277, %v1755, %v1767
    %v1769 = vsel %vm1279, %v1759, %v1768
    %v1770 = vsel %vm1281, %v1763, %v1769
    %1772 = vxpose.xlu0.b32.start [1/16] %v1770, 128
    %1773 = vxpose.xlu0.b32.cont [2/16] 0.0, 128
    %1774 = vxpose.xlu0.b32.cont [3/16] 0.0, 128
    %1775 = vxpose.xlu0.b32.cont [4/16] 0.0, 128
    %1776 = vxpose.xlu0.b32.cont [5/16] 0.0, 128
    %1777 = vxpose.xlu0.b32.cont [6/16] 0.0, 128
    %1778 = vxpose.xlu0.b32.cont [7/16] 0.0, 128
    %1779 = vxpose.xlu0.b32.cont [8/16] 0.0, 128
    %1780 = vxpose.xlu0.b32.cont [9/16] 0.0, 128
    %1781 = vxpose.xlu0.b32.cont [10/16] 0.0, 128
    %1782 = vxpose.xlu0.b32.cont [11/16] 0.0, 128
    %1783 = vxpose.xlu0.b32.cont [12/16] 0.0, 128
    %1784 = vxpose.xlu0.b32.cont [13/16] 0.0, 128
    %1785 = vxpose.xlu0.b32.cont [14/16] 0.0, 128
    %1786 = vxpose.xlu0.b32.cont [15/16] 0.0, 128
    %1787 = vxpose.xlu0.b32.end [16/16] 0.0, 128
    %v1788 = vpop.trf.xlu0
    %v1789 = vpop.trf.xlu0
    %v1790 = vpop.trf.xlu0
    %v1791 = vpop.trf.xlu0
    %v1792 = vpop.trf.xlu0
    %v1793 = vpop.trf.xlu0
    %v1794 = vpop.trf.xlu0
    %v1795 = vpop.trf.xlu0
    %v1796 = vpop.trf.xlu0
    %v1797 = vpop.trf.xlu0
    %v1798 = vpop.trf.xlu0
    %v1799 = vpop.trf.xlu0
    %v1800 = vpop.trf.xlu0
    %v1801 = vpop.trf.xlu0
    %v1802 = vpop.trf.xlu0
    %v1803 = vpop.trf.xlu0
    %v1804 = vlaneseq
    %v1805 = vshrl.u32 %v1804, 7
    %v1806 = vsub.s32 3, %v1805
    %v1807 = vrot.slane %v1097, %v1806
    %v1808 = vlaneseq
    %v1809 = vshrl.u32 %v1808, 7
    %v1810 = vsub.s32 3, %v1809
    %v1811 = vrot.slane %v1101, %v1810
    %v1812 = vlaneseq
    %v1813 = vshrl.u32 %v1812, 7
    %v1814 = vsub.s32 3, %v1813
    %v1815 = vrot.slane %v1107, %v1814
    %v1816 = vlaneseq
    %v1817 = vshrl.u32 %v1816, 7
    %v1818 = vsub.s32 3, %v1817
    %v1819 = vrot.slane %v1111, %v1818
    %v1820 = vlaneseq
    %v1821 = vshrl.u32 %v1820, 7
    %v1822 = vsub.s32 3, %v1821
    %v1823 = vrot.slane %v1117, %v1822
    %v1824 = vlaneseq
    %v1825 = vshrl.u32 %v1824, 7
    %v1826 = vsub.s32 3, %v1825
    %v1827 = vrot.slane %v1121, %v1826
    %v1828 = vlaneseq
    %v1829 = vshrl.u32 %v1828, 7
    %v1830 = vsub.s32 3, %v1829
    %v1831 = vrot.slane %v1127, %v1830
    %v1832 = vlaneseq
    %v1833 = vshrl.u32 %v1832, 7
    %v1834 = vsub.s32 3, %v1833
    %v1835 = vrot.slane %v1131, %v1834
    %v1836 = vmul.f32 %v678, %v1807
    %v1837 = vmul.f32 %v682, %v1811
    %v1838 = vmul.f32 %v688, %v1815
    %v1839 = vmul.f32 %v692, %v1819
    %v1840 = vmul.f32 %v698, %v1823
    %v1841 = vmul.f32 %v702, %v1827
    %v1842 = vmul.f32 %v708, %v1831
    %v1843 = vmul.f32 %v712, %v1835
    %1844 = vadd.xlane.f32.xlu0 %v1836
    %v1845 = vpop.xlane.xlu0 %1844
    %1846 = vadd.xlane.f32.xlu0 %v1837
    %v1847 = vpop.xlane.xlu0 %1846
    %1848 = vadd.xlane.f32.xlu0 %v1838
    %v1849 = vpop.xlane.xlu0 %1848
    %1850 = vadd.xlane.f32.xlu0 %v1839
    %v1851 = vpop.xlane.xlu0 %1850
    %1852 = vadd.xlane.f32.xlu0 %v1840
    %v1853 = vpop.xlane.xlu0 %1852
    %1854 = vadd.xlane.f32.xlu0 %v1841
    %v1855 = vpop.xlane.xlu0 %1854
    %1856 = vadd.xlane.f32.xlu0 %v1842
    %v1857 = vpop.xlane.xlu0 %1856
    %1858 = vadd.xlane.f32.xlu0 %v1843
    %v1859 = vpop.xlane.xlu0 %1858
    %v1868 = vlaneseq
    %v1869 = vshrl.u32 %v1868, 7
    %v1870 = vsub.s32 %v1236, %v1869
    %v1871 = vrot.slane %v1845, %v1870
    %v1872 = vlaneseq
    %v1873 = vshrl.u32 %v1872, 7
    %v1874 = vsub.s32 %v1236, %v1873
    %v1875 = vrot.slane %v1847, %v1874
    %v1876 = vlaneseq
    %v1877 = vshrl.u32 %v1876, 7
    %v1878 = vsub.s32 %v1236, %v1877
    %v1879 = vrot.slane %v1849, %v1878
    %v1880 = vlaneseq
    %v1881 = vshrl.u32 %v1880, 7
    %v1882 = vsub.s32 %v1236, %v1881
    %v1883 = vrot.slane %v1851, %v1882
    %v1884 = vlaneseq
    %v1885 = vshrl.u32 %v1884, 7
    %v1886 = vsub.s32 %v1236, %v1885
    %v1887 = vrot.slane %v1853, %v1886
    %v1888 = vlaneseq
    %v1889 = vshrl.u32 %v1888, 7
    %v1890 = vsub.s32 %v1236, %v1889
    %v1891 = vrot.slane %v1855, %v1890
    %v1892 = vlaneseq
    %v1893 = vshrl.u32 %v1892, 7
    %v1894 = vsub.s32 %v1236, %v1893
    %v1895 = vrot.slane %v1857, %v1894
    %v1896 = vlaneseq
    %v1897 = vshrl.u32 %v1896, 7
    %v1898 = vsub.s32 %v1236, %v1897
    %v1899 = vrot.slane %v1859, %v1898
    %v1900 = vsel %vm1269, %v1875, %v1871
    %v1901 = vsel %vm1271, %v1879, %v1900
    %v1902 = vsel %vm1273, %v1883, %v1901
    %v1903 = vsel %vm1275, %v1887, %v1902
    %v1904 = vsel %vm1277, %v1891, %v1903
    %v1905 = vsel %vm1279, %v1895, %v1904
    %v1906 = vsel %vm1281, %v1899, %v1905
    %1908 = vxpose.xlu0.b32.start [1/16] %v1906, 128
    %1909 = vxpose.xlu0.b32.cont [2/16] 0.0, 128
    %1910 = vxpose.xlu0.b32.cont [3/16] 0.0, 128
    %1911 = vxpose.xlu0.b32.cont [4/16] 0.0, 128
    %1912 = vxpose.xlu0.b32.cont [5/16] 0.0, 128
    %1913 = vxpose.xlu0.b32.cont [6/16] 0.0, 128
    %1914 = vxpose.xlu0.b32.cont [7/16] 0.0, 128
    %1915 = vxpose.xlu0.b32.cont [8/16] 0.0, 128
    %1916 = vxpose.xlu0.b32.cont [9/16] 0.0, 128
    %1917 = vxpose.xlu0.b32.cont [10/16] 0.0, 128
    %1918 = vxpose.xlu0.b32.cont [11/16] 0.0, 128
    %1919 = vxpose.xlu0.b32.cont [12/16] 0.0, 128
    %1920 = vxpose.xlu0.b32.cont [13/16] 0.0, 128
    %1921 = vxpose.xlu0.b32.cont [14/16] 0.0, 128
    %1922 = vxpose.xlu0.b32.cont [15/16] 0.0, 128
    %1923 = vxpose.xlu0.b32.end [16/16] 0.0, 128
    %v1924 = vpop.trf.xlu0
    %v1925 = vpop.trf.xlu0
    %v1926 = vpop.trf.xlu0
    %v1927 = vpop.trf.xlu0
    %v1928 = vpop.trf.xlu0
    %v1929 = vpop.trf.xlu0
    %v1930 = vpop.trf.xlu0
    %v1931 = vpop.trf.xlu0
    %v1932 = vpop.trf.xlu0
    %v1933 = vpop.trf.xlu0
    %v1934 = vpop.trf.xlu0
    %v1935 = vpop.trf.xlu0
    %v1936 = vpop.trf.xlu0
    %v1937 = vpop.trf.xlu0
    %v1938 = vpop.trf.xlu0
    %v1939 = vpop.trf.xlu0
    %v1940 = vlaneseq
    %v1941 = vshrl.u32 %v1940, 7
    %v1942 = vsub.s32 4, %v1941
    %v1943 = vrot.slane %v1097, %v1942
    %v1944 = vlaneseq
    %v1945 = vshrl.u32 %v1944, 7
    %v1946 = vsub.s32 4, %v1945
    %v1947 = vrot.slane %v1101, %v1946
    %v1948 = vlaneseq
    %v1949 = vshrl.u32 %v1948, 7
    %v1950 = vsub.s32 4, %v1949
    %v1951 = vrot.slane %v1107, %v1950
    %v1952 = vlaneseq
    %v1953 = vshrl.u32 %v1952, 7
    %v1954 = vsub.s32 4, %v1953
    %v1955 = vrot.slane %v1111, %v1954
    %v1956 = vlaneseq
    %v1957 = vshrl.u32 %v1956, 7
    %v1958 = vsub.s32 4, %v1957
    %v1959 = vrot.slane %v1117, %v1958
    %v1960 = vlaneseq
    %v1961 = vshrl.u32 %v1960, 7
    %v1962 = vsub.s32 4, %v1961
    %v1963 = vrot.slane %v1121, %v1962
    %v1964 = vlaneseq
    %v1965 = vshrl.u32 %v1964, 7
    %v1966 = vsub.s32 4, %v1965
    %v1967 = vrot.slane %v1127, %v1966
    %v1968 = vlaneseq
    %v1969 = vshrl.u32 %v1968, 7
    %v1970 = vsub.s32 4, %v1969
    %v1971 = vrot.slane %v1131, %v1970
    %v1972 = vmul.f32 %v678, %v1943
    %v1973 = vmul.f32 %v682, %v1947
    %v1974 = vmul.f32 %v688, %v1951
    %v1975 = vmul.f32 %v692, %v1955
    %v1976 = vmul.f32 %v698, %v1959
    %v1977 = vmul.f32 %v702, %v1963
    %v1978 = vmul.f32 %v708, %v1967
    %v1979 = vmul.f32 %v712, %v1971
    %1980 = vadd.xlane.f32.xlu0 %v1972
    %v1981 = vpop.xlane.xlu0 %1980
    %1982 = vadd.xlane.f32.xlu0 %v1973
    %v1983 = vpop.xlane.xlu0 %1982
    %1984 = vadd.xlane.f32.xlu0 %v1974
    %v1985 = vpop.xlane.xlu0 %1984
    %1986 = vadd.xlane.f32.xlu0 %v1975
    %v1987 = vpop.xlane.xlu0 %1986
    %1988 = vadd.xlane.f32.xlu0 %v1976
    %v1989 = vpop.xlane.xlu0 %1988
    %1990 = vadd.xlane.f32.xlu0 %v1977
    %v1991 = vpop.xlane.xlu0 %1990
    %1992 = vadd.xlane.f32.xlu0 %v1978
    %v1993 = vpop.xlane.xlu0 %1992
    %1994 = vadd.xlane.f32.xlu0 %v1979
    %v1995 = vpop.xlane.xlu0 %1994
    %v2004 = vlaneseq
    %v2005 = vshrl.u32 %v2004, 7
    %v2006 = vsub.s32 %v1236, %v2005
    %v2007 = vrot.slane %v1981, %v2006
    %v2008 = vlaneseq
    %v2009 = vshrl.u32 %v2008, 7
    %v2010 = vsub.s32 %v1236, %v2009
    %v2011 = vrot.slane %v1983, %v2010
    %v2012 = vlaneseq
    %v2013 = vshrl.u32 %v2012, 7
    %v2014 = vsub.s32 %v1236, %v2013
    %v2015 = vrot.slane %v1985, %v2014
    %v2016 = vlaneseq
    %v2017 = vshrl.u32 %v2016, 7
    %v2018 = vsub.s32 %v1236, %v2017
    %v2019 = vrot.slane %v1987, %v2018
    %v2020 = vlaneseq
    %v2021 = vshrl.u32 %v2020, 7
    %v2022 = vsub.s32 %v1236, %v2021
    %v2023 = vrot.slane %v1989, %v2022
    %v2024 = vlaneseq
    %v2025 = vshrl.u32 %v2024, 7
    %v2026 = vsub.s32 %v1236, %v2025
    %v2027 = vrot.slane %v1991, %v2026
    %v2028 = vlaneseq
    %v2029 = vshrl.u32 %v2028, 7
    %v2030 = vsub.s32 %v1236, %v2029
    %v2031 = vrot.slane %v1993, %v2030
    %v2032 = vlaneseq
    %v2033 = vshrl.u32 %v2032, 7
    %v2034 = vsub.s32 %v1236, %v2033
    %v2035 = vrot.slane %v1995, %v2034
    %v2036 = vsel %vm1269, %v2011, %v2007
    %v2037 = vsel %vm1271, %v2015, %v2036
    %v2038 = vsel %vm1273, %v2019, %v2037
    %v2039 = vsel %vm1275, %v2023, %v2038
    %v2040 = vsel %vm1277, %v2027, %v2039
    %v2041 = vsel %vm1279, %v2031, %v2040
    %v2042 = vsel %vm1281, %v2035, %v2041
    %2044 = vxpose.xlu0.b32.start [1/16] %v2042, 128
    %2045 = vxpose.xlu0.b32.cont [2/16] 0.0, 128
    %2046 = vxpose.xlu0.b32.cont [3/16] 0.0, 128
    %2047 = vxpose.xlu0.b32.cont [4/16] 0.0, 128
    %2048 = vxpose.xlu0.b32.cont [5/16] 0.0, 128
    %2049 = vxpose.xlu0.b32.cont [6/16] 0.0, 128
    %2050 = vxpose.xlu0.b32.cont [7/16] 0.0, 128
    %2051 = vxpose.xlu0.b32.cont [8/16] 0.0, 128
    %2052 = vxpose.xlu0.b32.cont [9/16] 0.0, 128
    %2053 = vxpose.xlu0.b32.cont [10/16] 0.0, 128
    %2054 = vxpose.xlu0.b32.cont [11/16] 0.0, 128
    %2055 = vxpose.xlu0.b32.cont [12/16] 0.0, 128
    %2056 = vxpose.xlu0.b32.cont [13/16] 0.0, 128
    %2057 = vxpose.xlu0.b32.cont [14/16] 0.0, 128
    %2058 = vxpose.xlu0.b32.cont [15/16] 0.0, 128
    %2059 = vxpose.xlu0.b32.end [16/16] 0.0, 128
    %v2060 = vpop.trf.xlu0
    %v2061 = vpop.trf.xlu0
    %v2062 = vpop.trf.xlu0
    %v2063 = vpop.trf.xlu0
    %v2064 = vpop.trf.xlu0
    %v2065 = vpop.trf.xlu0
    %v2066 = vpop.trf.xlu0
    %v2067 = vpop.trf.xlu0
    %v2068 = vpop.trf.xlu0
    %v2069 = vpop.trf.xlu0
    %v2070 = vpop.trf.xlu0
    %v2071 = vpop.trf.xlu0
    %v2072 = vpop.trf.xlu0
    %v2073 = vpop.trf.xlu0
    %v2074 = vpop.trf.xlu0
    %v2075 = vpop.trf.xlu0
    %v2076 = vlaneseq
    %v2077 = vshrl.u32 %v2076, 7
    %v2078 = vsub.s32 5, %v2077
    %v2079 = vrot.slane %v1097, %v2078
    %v2080 = vlaneseq
    %v2081 = vshrl.u32 %v2080, 7
    %v2082 = vsub.s32 5, %v2081
    %v2083 = vrot.slane %v1101, %v2082
    %v2084 = vlaneseq
    %v2085 = vshrl.u32 %v2084, 7
    %v2086 = vsub.s32 5, %v2085
    %v2087 = vrot.slane %v1107, %v2086
    %v2088 = vlaneseq
    %v2089 = vshrl.u32 %v2088, 7
    %v2090 = vsub.s32 5, %v2089
    %v2091 = vrot.slane %v1111, %v2090
    %v2092 = vlaneseq
    %v2093 = vshrl.u32 %v2092, 7
    %v2094 = vsub.s32 5, %v2093
    %v2095 = vrot.slane %v1117, %v2094
    %v2096 = vlaneseq
    %v2097 = vshrl.u32 %v2096, 7
    %v2098 = vsub.s32 5, %v2097
    %v2099 = vrot.slane %v1121, %v2098
    %v2100 = vlaneseq
    %v2101 = vshrl.u32 %v2100, 7
    %v2102 = vsub.s32 5, %v2101
    %v2103 = vrot.slane %v1127, %v2102
    %v2104 = vlaneseq
    %v2105 = vshrl.u32 %v2104, 7
    %v2106 = vsub.s32 5, %v2105
    %v2107 = vrot.slane %v1131, %v2106
    %v2108 = vmul.f32 %v678, %v2079
    %v2109 = vmul.f32 %v682, %v2083
    %v2110 = vmul.f32 %v688, %v2087
    %v2111 = vmul.f32 %v692, %v2091
    %v2112 = vmul.f32 %v698, %v2095
    %v2113 = vmul.f32 %v702, %v2099
    %v2114 = vmul.f32 %v708, %v2103
    %v2115 = vmul.f32 %v712, %v2107
    %2116 = vadd.xlane.f32.xlu0 %v2108
    %v2117 = vpop.xlane.xlu0 %2116
    %2118 = vadd.xlane.f32.xlu0 %v2109
    %v2119 = vpop.xlane.xlu0 %2118
    %2120 = vadd.xlane.f32.xlu0 %v2110
    %v2121 = vpop.xlane.xlu0 %2120
    %2122 = vadd.xlane.f32.xlu0 %v2111
    %v2123 = vpop.xlane.xlu0 %2122
    %2124 = vadd.xlane.f32.xlu0 %v2112
    %v2125 = vpop.xlane.xlu0 %2124
    %2126 = vadd.xlane.f32.xlu0 %v2113
    %v2127 = vpop.xlane.xlu0 %2126
    %2128 = vadd.xlane.f32.xlu0 %v2114
    %v2129 = vpop.xlane.xlu0 %2128
    %2130 = vadd.xlane.f32.xlu0 %v2115
    %v2131 = vpop.xlane.xlu0 %2130
    %v2140 = vlaneseq
    %v2141 = vshrl.u32 %v2140, 7
    %v2142 = vsub.s32 %v1236, %v2141
    %v2143 = vrot.slane %v2117, %v2142
    %v2144 = vlaneseq
    %v2145 = vshrl.u32 %v2144, 7
    %v2146 = vsub.s32 %v1236, %v2145
    %v2147 = vrot.slane %v2119, %v2146
    %v2148 = vlaneseq
    %v2149 = vshrl.u32 %v2148, 7
    %v2150 = vsub.s32 %v1236, %v2149
    %v2151 = vrot.slane %v2121, %v2150
    %v2152 = vlaneseq
    %v2153 = vshrl.u32 %v2152, 7
    %v2154 = vsub.s32 %v1236, %v2153
    %v2155 = vrot.slane %v2123, %v2154
    %v2156 = vlaneseq
    %v2157 = vshrl.u32 %v2156, 7
    %v2158 = vsub.s32 %v1236, %v2157
    %v2159 = vrot.slane %v2125, %v2158
    %v2160 = vlaneseq
    %v2161 = vshrl.u32 %v2160, 7
    %v2162 = vsub.s32 %v1236, %v2161
    %v2163 = vrot.slane %v2127, %v2162
    %v2164 = vlaneseq
    %v2165 = vshrl.u32 %v2164, 7
    %v2166 = vsub.s32 %v1236, %v2165
    %v2167 = vrot.slane %v2129, %v2166
    %v2168 = vlaneseq
    %v2169 = vshrl.u32 %v2168, 7
    %v2170 = vsub.s32 %v1236, %v2169
    %v2171 = vrot.slane %v2131, %v2170
    %v2172 = vsel %vm1269, %v2147, %v2143
    %v2173 = vsel %vm1271, %v2151, %v2172
    %v2174 = vsel %vm1273, %v2155, %v2173
    %v2175 = vsel %vm1275, %v2159, %v2174
    %v2176 = vsel %vm1277, %v2163, %v2175
    %v2177 = vsel %vm1279, %v2167, %v2176
    %v2178 = vsel %vm1281, %v2171, %v2177
    %2180 = vxpose.xlu0.b32.start [1/16] %v2178, 128
    %2181 = vxpose.xlu0.b32.cont [2/16] 0.0, 128
    %2182 = vxpose.xlu0.b32.cont [3/16] 0.0, 128
    %2183 = vxpose.xlu0.b32.cont [4/16] 0.0, 128
    %2184 = vxpose.xlu0.b32.cont [5/16] 0.0, 128
    %2185 = vxpose.xlu0.b32.cont [6/16] 0.0, 128
    %2186 = vxpose.xlu0.b32.cont [7/16] 0.0, 128
    %2187 = vxpose.xlu0.b32.cont [8/16] 0.0, 128
    %2188 = vxpose.xlu0.b32.cont [9/16] 0.0, 128
    %2189 = vxpose.xlu0.b32.cont [10/16] 0.0, 128
    %2190 = vxpose.xlu0.b32.cont [11/16] 0.0, 128
    %2191 = vxpose.xlu0.b32.cont [12/16] 0.0, 128
    %2192 = vxpose.xlu0.b32.cont [13/16] 0.0, 128
    %2193 = vxpose.xlu0.b32.cont [14/16] 0.0, 128
    %2194 = vxpose.xlu0.b32.cont [15/16] 0.0, 128
    %2195 = vxpose.xlu0.b32.end [16/16] 0.0, 128
    %v2196 = vpop.trf.xlu0
    %v2197 = vpop.trf.xlu0
    %v2198 = vpop.trf.xlu0
    %v2199 = vpop.trf.xlu0
    %v2200 = vpop.trf.xlu0
    %v2201 = vpop.trf.xlu0
    %v2202 = vpop.trf.xlu0
    %v2203 = vpop.trf.xlu0
    %v2204 = vpop.trf.xlu0
    %v2205 = vpop.trf.xlu0
    %v2206 = vpop.trf.xlu0
    %v2207 = vpop.trf.xlu0
    %v2208 = vpop.trf.xlu0
    %v2209 = vpop.trf.xlu0
    %v2210 = vpop.trf.xlu0
    %v2211 = vpop.trf.xlu0
    %v2212 = vlaneseq
    %v2213 = vshrl.u32 %v2212, 7
    %v2214 = vsub.s32 6, %v2213
    %v2215 = vrot.slane %v1097, %v2214
    %v2216 = vlaneseq
    %v2217 = vshrl.u32 %v2216, 7
    %v2218 = vsub.s32 6, %v2217
    %v2219 = vrot.slane %v1101, %v2218
    %v2220 = vlaneseq
    %v2221 = vshrl.u32 %v2220, 7
    %v2222 = vsub.s32 6, %v2221
    %v2223 = vrot.slane %v1107, %v2222
    %v2224 = vlaneseq
    %v2225 = vshrl.u32 %v2224, 7
    %v2226 = vsub.s32 6, %v2225
    %v2227 = vrot.slane %v1111, %v2226
    %v2228 = vlaneseq
    %v2229 = vshrl.u32 %v2228, 7
    %v2230 = vsub.s32 6, %v2229
    %v2231 = vrot.slane %v1117, %v2230
    %v2232 = vlaneseq
    %v2233 = vshrl.u32 %v2232, 7
    %v2234 = vsub.s32 6, %v2233
    %v2235 = vrot.slane %v1121, %v2234
    %v2236 = vlaneseq
    %v2237 = vshrl.u32 %v2236, 7
    %v2238 = vsub.s32 6, %v2237
    %v2239 = vrot.slane %v1127, %v2238
    %v2240 = vlaneseq
    %v2241 = vshrl.u32 %v2240, 7
    %v2242 = vsub.s32 6, %v2241
    %v2243 = vrot.slane %v1131, %v2242
    %v2244 = vmul.f32 %v678, %v2215
    %v2245 = vmul.f32 %v682, %v2219
    %v2246 = vmul.f32 %v688, %v2223
    %v2247 = vmul.f32 %v692, %v2227
    %v2248 = vmul.f32 %v698, %v2231
    %v2249 = vmul.f32 %v702, %v2235
    %v2250 = vmul.f32 %v708, %v2239
    %v2251 = vmul.f32 %v712, %v2243
    %2252 = vadd.xlane.f32.xlu0 %v2244
    %v2253 = vpop.xlane.xlu0 %2252
    %2254 = vadd.xlane.f32.xlu0 %v2245
    %v2255 = vpop.xlane.xlu0 %2254
    %2256 = vadd.xlane.f32.xlu0 %v2246
    %v2257 = vpop.xlane.xlu0 %2256
    %2258 = vadd.xlane.f32.xlu0 %v2247
    %v2259 = vpop.xlane.xlu0 %2258
    %2260 = vadd.xlane.f32.xlu0 %v2248
    %v2261 = vpop.xlane.xlu0 %2260
    %2262 = vadd.xlane.f32.xlu0 %v2249
    %v2263 = vpop.xlane.xlu0 %2262
    %2264 = vadd.xlane.f32.xlu0 %v2250
    %v2265 = vpop.xlane.xlu0 %2264
    %2266 = vadd.xlane.f32.xlu0 %v2251
    %v2267 = vpop.xlane.xlu0 %2266
    %v2276 = vlaneseq
    %v2277 = vshrl.u32 %v2276, 7
    %v2278 = vsub.s32 %v1236, %v2277
    %v2279 = vrot.slane %v2253, %v2278
    %v2280 = vlaneseq
    %v2281 = vshrl.u32 %v2280, 7
    %v2282 = vsub.s32 %v1236, %v2281
    %v2283 = vrot.slane %v2255, %v2282
    %v2284 = vlaneseq
    %v2285 = vshrl.u32 %v2284, 7
    %v2286 = vsub.s32 %v1236, %v2285
    %v2287 = vrot.slane %v2257, %v2286
    %v2288 = vlaneseq
    %v2289 = vshrl.u32 %v2288, 7
    %v2290 = vsub.s32 %v1236, %v2289
    %v2291 = vrot.slane %v2259, %v2290
    %v2292 = vlaneseq
    %v2293 = vshrl.u32 %v2292, 7
    %v2294 = vsub.s32 %v1236, %v2293
    %v2295 = vrot.slane %v2261, %v2294
    %v2296 = vlaneseq
    %v2297 = vshrl.u32 %v2296, 7
    %v2298 = vsub.s32 %v1236, %v2297
    %v2299 = vrot.slane %v2263, %v2298
    %v2300 = vlaneseq
    %v2301 = vshrl.u32 %v2300, 7
    %v2302 = vsub.s32 %v1236, %v2301
    %v2303 = vrot.slane %v2265, %v2302
    %v2304 = vlaneseq
    %v2305 = vshrl.u32 %v2304, 7
    %v2306 = vsub.s32 %v1236, %v2305
    %v2307 = vrot.slane %v2267, %v2306
    %v2308 = vsel %vm1269, %v2283, %v2279
    %v2309 = vsel %vm1271, %v2287, %v2308
    %v2310 = vsel %vm1273, %v2291, %v2309
    %v2311 = vsel %vm1275, %v2295, %v2310
    %v2312 = vsel %vm1277, %v2299, %v2311
    %v2313 = vsel %vm1279, %v2303, %v2312
    %v2314 = vsel %vm1281, %v2307, %v2313
    %2316 = vxpose.xlu0.b32.start [1/16] %v2314, 128
    %2317 = vxpose.xlu0.b32.cont [2/16] 0.0, 128
    %2318 = vxpose.xlu0.b32.cont [3/16] 0.0, 128
    %2319 = vxpose.xlu0.b32.cont [4/16] 0.0, 128
    %2320 = vxpose.xlu0.b32.cont [5/16] 0.0, 128
    %2321 = vxpose.xlu0.b32.cont [6/16] 0.0, 128
    %2322 = vxpose.xlu0.b32.cont [7/16] 0.0, 128
    %2323 = vxpose.xlu0.b32.cont [8/16] 0.0, 128
    %2324 = vxpose.xlu0.b32.cont [9/16] 0.0, 128
    %2325 = vxpose.xlu0.b32.cont [10/16] 0.0, 128
    %2326 = vxpose.xlu0.b32.cont [11/16] 0.0, 128
    %2327 = vxpose.xlu0.b32.cont [12/16] 0.0, 128
    %2328 = vxpose.xlu0.b32.cont [13/16] 0.0, 128
    %2329 = vxpose.xlu0.b32.cont [14/16] 0.0, 128
    %2330 = vxpose.xlu0.b32.cont [15/16] 0.0, 128
    %2331 = vxpose.xlu0.b32.end [16/16] 0.0, 128
    %v2332 = vpop.trf.xlu0
    %v2333 = vpop.trf.xlu0
    %v2334 = vpop.trf.xlu0
    %v2335 = vpop.trf.xlu0
    %v2336 = vpop.trf.xlu0
    %v2337 = vpop.trf.xlu0
    %v2338 = vpop.trf.xlu0
    %v2339 = vpop.trf.xlu0
    %v2340 = vpop.trf.xlu0
    %v2341 = vpop.trf.xlu0
    %v2342 = vpop.trf.xlu0
    %v2343 = vpop.trf.xlu0
    %v2344 = vpop.trf.xlu0
    %v2345 = vpop.trf.xlu0
    %v2346 = vpop.trf.xlu0
    %v2347 = vpop.trf.xlu0
    %v2348 = vlaneseq
    %v2349 = vshrl.u32 %v2348, 7
    %v2350 = vsub.s32 7, %v2349
    %v2351 = vrot.slane %v1097, %v2350
    %v2352 = vlaneseq
    %v2353 = vshrl.u32 %v2352, 7
    %v2354 = vsub.s32 7, %v2353
    %v2355 = vrot.slane %v1101, %v2354
    %v2356 = vlaneseq
    %v2357 = vshrl.u32 %v2356, 7
    %v2358 = vsub.s32 7, %v2357
    %v2359 = vrot.slane %v1107, %v2358
    %v2360 = vlaneseq
    %v2361 = vshrl.u32 %v2360, 7
    %v2362 = vsub.s32 7, %v2361
    %v2363 = vrot.slane %v1111, %v2362
    %v2364 = vlaneseq
    %v2365 = vshrl.u32 %v2364, 7
    %v2366 = vsub.s32 7, %v2365
    %v2367 = vrot.slane %v1117, %v2366
    %v2368 = vlaneseq
    %v2369 = vshrl.u32 %v2368, 7
    %v2370 = vsub.s32 7, %v2369
    %v2371 = vrot.slane %v1121, %v2370
    %v2372 = vlaneseq
    %v2373 = vshrl.u32 %v2372, 7
    %v2374 = vsub.s32 7, %v2373
    %v2375 = vrot.slane %v1127, %v2374
    %v2376 = vlaneseq
    %v2377 = vshrl.u32 %v2376, 7
    %v2378 = vsub.s32 7, %v2377
    %v2379 = vrot.slane %v1131, %v2378
    %v2380 = vmul.f32 %v678, %v2351
    %v2381 = vmul.f32 %v682, %v2355
    %v2382 = vmul.f32 %v688, %v2359
    %v2383 = vmul.f32 %v692, %v2363
    %v2384 = vmul.f32 %v698, %v2367
    %v2385 = vmul.f32 %v702, %v2371
    %v2386 = vmul.f32 %v708, %v2375
    %v2387 = vmul.f32 %v712, %v2379
    %2388 = vadd.xlane.f32.xlu0 %v2380
    %v2389 = vpop.xlane.xlu0 %2388
    %2390 = vadd.xlane.f32.xlu0 %v2381
    %v2391 = vpop.xlane.xlu0 %2390
    %2392 = vadd.xlane.f32.xlu0 %v2382
    %v2393 = vpop.xlane.xlu0 %2392
    %2394 = vadd.xlane.f32.xlu0 %v2383
    %v2395 = vpop.xlane.xlu0 %2394
    %2396 = vadd.xlane.f32.xlu0 %v2384
    %v2397 = vpop.xlane.xlu0 %2396
    %2398 = vadd.xlane.f32.xlu0 %v2385
    %v2399 = vpop.xlane.xlu0 %2398
    %2400 = vadd.xlane.f32.xlu0 %v2386
    %v2401 = vpop.xlane.xlu0 %2400
    %2402 = vadd.xlane.f32.xlu0 %v2387
    %v2403 = vpop.xlane.xlu0 %2402
    %v2412 = vlaneseq
    %v2413 = vshrl.u32 %v2412, 7
    %v2414 = vsub.s32 %v1236, %v2413
    %v2415 = vrot.slane %v2389, %v2414
    %v2416 = vlaneseq
    %v2417 = vshrl.u32 %v2416, 7
    %v2418 = vsub.s32 %v1236, %v2417
    %v2419 = vrot.slane %v2391, %v2418
    %v2420 = vlaneseq
    %v2421 = vshrl.u32 %v2420, 7
    %v2422 = vsub.s32 %v1236, %v2421
    %v2423 = vrot.slane %v2393, %v2422
    %v2424 = vlaneseq
    %v2425 = vshrl.u32 %v2424, 7
    %v2426 = vsub.s32 %v1236, %v2425
    %v2427 = vrot.slane %v2395, %v2426
    %v2428 = vlaneseq
    %v2429 = vshrl.u32 %v2428, 7
    %v2430 = vsub.s32 %v1236, %v2429
    %v2431 = vrot.slane %v2397, %v2430
    %v2432 = vlaneseq
    %v2433 = vshrl.u32 %v2432, 7
    %v2434 = vsub.s32 %v1236, %v2433
    %v2435 = vrot.slane %v2399, %v2434
    %v2436 = vlaneseq
    %v2437 = vshrl.u32 %v2436, 7
    %v2438 = vsub.s32 %v1236, %v2437
    %v2439 = vrot.slane %v2401, %v2438
    %v2440 = vlaneseq
    %v2441 = vshrl.u32 %v2440, 7
    %v2442 = vsub.s32 %v1236, %v2441
    %v2443 = vrot.slane %v2403, %v2442
    %v2444 = vsel %vm1269, %v2419, %v2415
    %v2445 = vsel %vm1271, %v2423, %v2444
    %v2446 = vsel %vm1273, %v2427, %v2445
    %v2447 = vsel %vm1275, %v2431, %v2446
    %v2448 = vsel %vm1277, %v2435, %v2447
    %v2449 = vsel %vm1279, %v2439, %v2448
    %v2450 = vsel %vm1281, %v2443, %v2449
    %2452 = vxpose.xlu0.b32.start [1/16] %v2450, 128
    %2453 = vxpose.xlu0.b32.cont [2/16] 0.0, 128
    %2454 = vxpose.xlu0.b32.cont [3/16] 0.0, 128
    %2455 = vxpose.xlu0.b32.cont [4/16] 0.0, 128
    %2456 = vxpose.xlu0.b32.cont [5/16] 0.0, 128
    %2457 = vxpose.xlu0.b32.cont [6/16] 0.0, 128
    %2458 = vxpose.xlu0.b32.cont [7/16] 0.0, 128
    %2459 = vxpose.xlu0.b32.cont [8/16] 0.0, 128
    %2460 = vxpose.xlu0.b32.cont [9/16] 0.0, 128
    %2461 = vxpose.xlu0.b32.cont [10/16] 0.0, 128
    %2462 = vxpose.xlu0.b32.cont [11/16] 0.0, 128
    %2463 = vxpose.xlu0.b32.cont [12/16] 0.0, 128
    %2464 = vxpose.xlu0.b32.cont [13/16] 0.0, 128
    %2465 = vxpose.xlu0.b32.cont [14/16] 0.0, 128
    %2466 = vxpose.xlu0.b32.cont [15/16] 0.0, 128
    %2467 = vxpose.xlu0.b32.end [16/16] 0.0, 128
    %v2468 = vpop.trf.xlu0
    %v2469 = vpop.trf.xlu0
    %v2470 = vpop.trf.xlu0
    %v2471 = vpop.trf.xlu0
    %v2472 = vpop.trf.xlu0
    %v2473 = vpop.trf.xlu0
    %v2474 = vpop.trf.xlu0
    %v2475 = vpop.trf.xlu0
    %v2476 = vpop.trf.xlu0
    %v2477 = vpop.trf.xlu0
    %v2478 = vpop.trf.xlu0
    %v2479 = vpop.trf.xlu0
    %v2480 = vpop.trf.xlu0
    %v2481 = vpop.trf.xlu0
    %v2482 = vpop.trf.xlu0
    %v2483 = vpop.trf.xlu0
    %vm2484 = vcmask 64512
    %v2485 = vsel %vm2484, %v1516, -inf
    %v2486 = vsel %vm2484, %v1652, -inf
    %v2487 = vsel %vm2484, %v1788, -inf
    %v2488 = vsel %vm2484, %v1924, -inf
    %v2489 = vsel %vm2484, %v2060, -inf
    %v2490 = vmax.f32 %v2485, %v2489
    %v2491 = vsel %vm2484, %v2196, -inf
    %v2492 = vmax.f32 %v2486, %v2491
    %v2493 = vsel %vm2484, %v2332, -inf
    %v2494 = vmax.f32 %v2487, %v2493
    %v2495 = vsel %vm2484, %v2468, -inf
    %v2496 = vmax.f32 %v2488, %v2495
    %v2497 = vmax.f32 %v2490, %v2492
    %v2498 = vmax.f32 %v2494, %v2496
    %v2499 = vmax.f32 %v2497, %v2498
    %v2500 = vsub.f32 %v1516, %v2499
    %v2501 = vsub.f32 %v1652, %v2499
    %v2502 = vsub.f32 %v1788, %v2499
    %v2503 = vsub.f32 %v1924, %v2499
    %v2504 = vsub.f32 %v2060, %v2499
    %v2505 = vsub.f32 %v2196, %v2499
    %v2506 = vsub.f32 %v2332, %v2499
    %v2507 = vsub.f32 %v2468, %v2499
    %v2508 = vmul.f32 %v2500, 1.442695
    %v2509 = vpow.pop %v2508
    %v2510 = vmul.f32 %v2501, 1.442695
    %v2511 = vpow.pop %v2510
    %v2512 = vmul.f32 %v2502, 1.442695
    %v2513 = vpow.pop %v2512
    %v2514 = vmul.f32 %v2503, 1.442695
    %v2515 = vpow.pop %v2514
    %v2516 = vmul.f32 %v2504, 1.442695
    %v2517 = vpow.pop %v2516
    %v2518 = vmul.f32 %v2505, 1.442695
    %v2519 = vpow.pop %v2518
    %v2520 = vmul.f32 %v2506, 1.442695
    %v2521 = vpow.pop %v2520
    %v2522 = vmul.f32 %v2507, 1.442695
    %v2523 = vpow.pop %v2522
    %v2524 = vsel %vm2484, %v2509, 0.0
    %v2525 = vsel %vm2484, %v2511, 0.0
    %v2526 = vadd.f32 %v2524, %v2525
    %v2527 = vsel %vm2484, %v2513, 0.0
    %v2528 = vadd.f32 %v2526, %v2527
    %v2529 = vsel %vm2484, %v2515, 0.0
    %v2530 = vadd.f32 %v2528, %v2529
    %v2531 = vsel %vm2484, %v2517, 0.0
    %v2532 = vadd.f32 %v2530, %v2531
    %v2533 = vsel %vm2484, %v2519, 0.0
    %v2534 = vadd.f32 %v2532, %v2533
    %v2535 = vsel %vm2484, %v2521, 0.0
    %v2536 = vadd.f32 %v2534, %v2535
    %v2537 = vsel %vm2484, %v2523, 0.0
    %v2538 = vadd.f32 %v2536, %v2537
    %v2539 = vrcp.pop %v2538
    %v2540 = vmul.f32 %v2509, %v2539
    %v2541 = vmul.f32 %v2511, %v2539
    %v2542 = vmul.f32 %v2513, %v2539
    %v2543 = vmul.f32 %v2515, %v2539
    %v2544 = vmul.f32 %v2517, %v2539
    %v2545 = vmul.f32 %v2519, %v2539
    %v2546 = vmul.f32 %v2521, %v2539
    %v2547 = vmul.f32 %v2523, %v2539
    %v2549 = vcombine.high %v1300, %v1300
    %v2551 = vunpack.c.l.s4 1966171168
    %v2552 = vunpack.c.0.s8 %v2551
    %v2553 = vlaneseq
    %v2554 = vshrl.u32 %v2553, 7
    %v2555 = vsub.s32 %v2552, %v2554
    %v2556 = vrot.slane %v1300, %v2555
    %v2558 = vunpack.c.l.s4 1966171168
    %v2559 = vunpack.c.0.s8 %v2558
    %v2560 = vlaneseq
    %v2561 = vshrl.u32 %v2560, 7
    %v2562 = vsub.s32 %v2559, %v2561
    %v2563 = vrot.slane %v2549, %v2562
    %v2564 = vcombine.high %v2556, %v2556
    %v2565 = vcombine.high %v2563, %v2563
    %v2567 = vunpack.c.l.s4 1966171168
    %v2568 = vunpack.c.0.s8 %v2567
    %v2569 = vlaneseq
    %v2570 = vshrl.u32 %v2569, 7
    %v2571 = vsub.s32 %v2568, %v2570
    %v2572 = vrot.slane %v2556, %v2571
    %v2574 = vunpack.c.l.s4 1966171168
    %v2575 = vunpack.c.0.s8 %v2574
    %v2576 = vlaneseq
    %v2577 = vshrl.u32 %v2576, 7
    %v2578 = vsub.s32 %v2575, %v2577
    %v2579 = vrot.slane %v2563, %v2578
    %v2581 = vunpack.c.l.s4 1966171168
    %v2582 = vunpack.c.0.s8 %v2581
    %v2583 = vlaneseq
    %v2584 = vshrl.u32 %v2583, 7
    %v2585 = vsub.s32 %v2582, %v2584
    %v2586 = vrot.slane %v2564, %v2585
    %v2588 = vunpack.c.l.s4 1966171168
    %v2589 = vunpack.c.0.s8 %v2588
    %v2590 = vlaneseq
    %v2591 = vshrl.u32 %v2590, 7
    %v2592 = vsub.s32 %v2589, %v2591
    %v2593 = vrot.slane %v2565, %v2592
    %v2594 = vcombine.high %v2572, %v2572
    %v2595 = vcombine.high %v2579, %v2579
    %v2596 = vcombine.high %v2586, %v2586
    %v2597 = vcombine.high %v2593, %v2593
    %v2598 = vlaneseq
    %v2599 = vshrl.u32 %v2598, 7
    %v2600 = vsub.s32 0, %v2599
    %v2601 = vrot.slane %v2572, %v2600
    %v2602 = vlaneseq
    %v2603 = vshrl.u32 %v2602, 7
    %v2604 = vsub.s32 0, %v2603
    %v2605 = vrot.slane %v2586, %v2604
    %v2606 = vlaneseq
    %v2607 = vshrl.u32 %v2606, 7
    %v2608 = vsub.s32 0, %v2607
    %v2609 = vrot.slane %v2594, %v2608
    %v2610 = vlaneseq
    %v2611 = vshrl.u32 %v2610, 7
    %v2612 = vsub.s32 0, %v2611
    %v2613 = vrot.slane %v2596, %v2612
    %v2614 = vlaneseq
    %v2615 = vshrl.u32 %v2614, 7
    %v2616 = vsub.s32 0, %v2615
    %v2617 = vrot.slane %v2579, %v2616
    %v2618 = vlaneseq
    %v2619 = vshrl.u32 %v2618, 7
    %v2620 = vsub.s32 0, %v2619
    %v2621 = vrot.slane %v2593, %v2620
    %v2622 = vlaneseq
    %v2623 = vshrl.u32 %v2622, 7
    %v2624 = vsub.s32 0, %v2623
    %v2625 = vrot.slane %v2595, %v2624
    %v2626 = vlaneseq
    %v2627 = vshrl.u32 %v2626, 7
    %v2628 = vsub.s32 0, %v2627
    %v2629 = vrot.slane %v2597, %v2628
    %v2638 = vmul.f32 %v2540, %v2601
    %v2639 = vmul.f32 %v2541, %v2605
    %v2640 = vmul.f32 %v2542, %v2609
    %v2641 = vmul.f32 %v2543, %v2613
    %v2642 = vmul.f32 %v2544, %v2617
    %v2643 = vmul.f32 %v2545, %v2621
    %v2644 = vmul.f32 %v2546, %v2625
    %v2645 = vmul.f32 %v2547, %v2629
    %v2646 = vsel %vm2484, %v2638, 0.0
    %v2647 = vsel %vm2484, %v2639, 0.0
    %v2648 = vadd.f32 %v2646, %v2647
    %v2649 = vsel %vm2484, %v2640, 0.0
    %v2650 = vadd.f32 %v2648, %v2649
    %v2651 = vsel %vm2484, %v2641, 0.0
    %v2652 = vadd.f32 %v2650, %v2651
    %v2653 = vsel %vm2484, %v2642, 0.0
    %v2654 = vadd.f32 %v2652, %v2653
    %v2655 = vsel %vm2484, %v2643, 0.0
    %v2656 = vadd.f32 %v2654, %v2655
    %v2657 = vsel %vm2484, %v2644, 0.0
    %v2658 = vadd.f32 %v2656, %v2657
    %v2659 = vsel %vm2484, %v2645, 0.0
    %v2660 = vadd.f32 %v2658, %v2659
    %v2661 = vmul.f32 %v2660, 0.01
    %v2662 = vadd.f32 %v1380, %v2661
    %v2663 = vsub.f32 %v2662, %v2662
    %v2664 = vmul.f32 %v2663, 1.442695
    %v2665 = vpow.pop %v2664
    %v2666 = vrot.slane %v2485, 4
    %v2667 = vmax.f32 %v2485, %v2666
    %v2668 = vrot.slane %v2667, 2
    %v2669 = vmax.f32 %v2667, %v2668
    %v2670 = vrot.slane %v2669, 1
    %v2671 = vmax.f32 %v2669, %v2670
    %v2672 = vrot.slane %v2486, 4
    %v2673 = vmax.f32 %v2486, %v2672
    %v2674 = vrot.slane %v2673, 2
    %v2675 = vmax.f32 %v2673, %v2674
    %v2676 = vrot.slane %v2675, 1
    %v2677 = vmax.f32 %v2675, %v2676
    %v2678 = vrot.slane %v2487, 4
    %v2679 = vmax.f32 %v2487, %v2678
    %v2680 = vrot.slane %v2679, 2
    %v2681 = vmax.f32 %v2679, %v2680
    %v2682 = vrot.slane %v2681, 1
    %v2683 = vmax.f32 %v2681, %v2682
    %v2684 = vrot.slane %v2488, 4
    %v2685 = vmax.f32 %v2488, %v2684
    %v2686 = vrot.slane %v2685, 2
    %v2687 = vmax.f32 %v2685, %v2686
    %v2688 = vrot.slane %v2687, 1
    %v2689 = vmax.f32 %v2687, %v2688
    %v2690 = vrot.slane %v2489, 4
    %v2691 = vmax.f32 %v2489, %v2690
    %v2692 = vrot.slane %v2691, 2
    %v2693 = vmax.f32 %v2691, %v2692
    %v2694 = vrot.slane %v2693, 1
    %v2695 = vmax.f32 %v2693, %v2694
    %v2696 = vrot.slane %v2491, 4
    %v2697 = vmax.f32 %v2491, %v2696
    %v2698 = vrot.slane %v2697, 2
    %v2699 = vmax.f32 %v2697, %v2698
    %v2700 = vrot.slane %v2699, 1
    %v2701 = vmax.f32 %v2699, %v2700
    %v2702 = vrot.slane %v2493, 4
    %v2703 = vmax.f32 %v2493, %v2702
    %v2704 = vrot.slane %v2703, 2
    %v2705 = vmax.f32 %v2703, %v2704
    %v2706 = vrot.slane %v2705, 1
    %v2707 = vmax.f32 %v2705, %v2706
    %v2708 = vrot.slane %v2495, 4
    %v2709 = vmax.f32 %v2495, %v2708
    %v2710 = vrot.slane %v2709, 2
    %v2711 = vmax.f32 %v2709, %v2710
    %v2712 = vrot.slane %v2711, 1
    %v2713 = vmax.f32 %v2711, %v2712
    %v2714 = vsub.f32 %v1516, %v2671
    %v2715 = vsub.f32 %v1652, %v2677
    %v2716 = vsub.f32 %v1788, %v2683
    %v2717 = vsub.f32 %v1924, %v2689
    %v2718 = vsub.f32 %v2060, %v2695
    %v2719 = vsub.f32 %v2196, %v2701
    %v2720 = vsub.f32 %v2332, %v2707
    %v2721 = vsub.f32 %v2468, %v2713
    %v2722 = vmul.f32 %v2714, 1.442695
    %v2723 = vpow.pop %v2722
    %v2724 = vmul.f32 %v2715, 1.442695
    %v2725 = vpow.pop %v2724
    %v2726 = vmul.f32 %v2716, 1.442695
    %v2727 = vpow.pop %v2726
    %v2728 = vmul.f32 %v2717, 1.442695
    %v2729 = vpow.pop %v2728
    %v2730 = vmul.f32 %v2718, 1.442695
    %v2731 = vpow.pop %v2730
    %v2732 = vmul.f32 %v2719, 1.442695
    %v2733 = vpow.pop %v2732
    %v2734 = vmul.f32 %v2720, 1.442695
    %v2735 = vpow.pop %v2734
    %v2736 = vmul.f32 %v2721, 1.442695
    %v2737 = vpow.pop %v2736
    %v2738 = vsel %vm2484, %v2723, 0.0
    %v2739 = vrot.slane %v2738, 4
    %v2740 = vadd.f32 %v2738, %v2739
    %v2741 = vrot.slane %v2740, 2
    %v2742 = vadd.f32 %v2740, %v2741
    %v2743 = vrot.slane %v2742, 1
    %v2744 = vadd.f32 %v2742, %v2743
    %v2745 = vsel %vm2484, %v2725, 0.0
    %v2746 = vrot.slane %v2745, 4
    %v2747 = vadd.f32 %v2745, %v2746
    %v2748 = vrot.slane %v2747, 2
    %v2749 = vadd.f32 %v2747, %v2748
    %v2750 = vrot.slane %v2749, 1
    %v2751 = vadd.f32 %v2749, %v2750
    %v2752 = vsel %vm2484, %v2727, 0.0
    %v2753 = vrot.slane %v2752, 4
    %v2754 = vadd.f32 %v2752, %v2753
    %v2755 = vrot.slane %v2754, 2
    %v2756 = vadd.f32 %v2754, %v2755
    %v2757 = vrot.slane %v2756, 1
    %v2758 = vadd.f32 %v2756, %v2757
    %v2759 = vsel %vm2484, %v2729, 0.0
    %v2760 = vrot.slane %v2759, 4
    %v2761 = vadd.f32 %v2759, %v2760
    %v2762 = vrot.slane %v2761, 2
    %v2763 = vadd.f32 %v2761, %v2762
    %v2764 = vrot.slane %v2763, 1
    %v2765 = vadd.f32 %v2763, %v2764
    %v2766 = vsel %vm2484, %v2731, 0.0
    %v2767 = vrot.slane %v2766, 4
    %v2768 = vadd.f32 %v2766, %v2767
    %v2769 = vrot.slane %v2768, 2
    %v2770 = vadd.f32 %v2768, %v2769
    %v2771 = vrot.slane %v2770, 1
    %v2772 = vadd.f32 %v2770, %v2771
    %v2773 = vsel %vm2484, %v2733, 0.0
    %v2774 = vrot.slane %v2773, 4
    %v2775 = vadd.f32 %v2773, %v2774
    %v2776 = vrot.slane %v2775, 2
    %v2777 = vadd.f32 %v2775, %v2776
    %v2778 = vrot.slane %v2777, 1
    %v2779 = vadd.f32 %v2777, %v2778
    %v2780 = vsel %vm2484, %v2735, 0.0
    %v2781 = vrot.slane %v2780, 4
    %v2782 = vadd.f32 %v2780, %v2781
    %v2783 = vrot.slane %v2782, 2
    %v2784 = vadd.f32 %v2782, %v2783
    %v2785 = vrot.slane %v2784, 1
    %v2786 = vadd.f32 %v2784, %v2785
    %v2787 = vsel %vm2484, %v2737, 0.0
    %v2788 = vrot.slane %v2787, 4
    %v2789 = vadd.f32 %v2787, %v2788
    %v2790 = vrot.slane %v2789, 2
    %v2791 = vadd.f32 %v2789, %v2790
    %v2792 = vrot.slane %v2791, 1
    %v2793 = vadd.f32 %v2791, %v2792
    %v2794 = vrcp.pop %v2744
    %v2795 = vrcp.pop %v2751
    %v2796 = vrcp.pop %v2758
    %v2797 = vrcp.pop %v2765
    %v2798 = vrcp.pop %v2772
    %v2799 = vrcp.pop %v2779
    %v2800 = vrcp.pop %v2786
    %v2801 = vrcp.pop %v2793
    %v2802 = vmul.f32 %v2723, %v2794
    %v2803 = vmul.f32 %v2725, %v2795
    %v2804 = vmul.f32 %v2727, %v2796
    %v2805 = vmul.f32 %v2729, %v2797
    %v2806 = vmul.f32 %v2731, %v2798
    %v2807 = vmul.f32 %v2733, %v2799
    %v2808 = vmul.f32 %v2735, %v2800
    %v2809 = vmul.f32 %v2737, %v2801
    %v2810 = vmul.f32 %v2802, %v2665
    %v2811 = vmul.f32 %v2803, %v2665
    %v2812 = vmul.f32 %v2804, %v2665
    %v2813 = vmul.f32 %v2805, %v2665
    %v2814 = vmul.f32 %v2806, %v2665
    %v2815 = vmul.f32 %v2807, %v2665
    %v2816 = vmul.f32 %v2808, %v2665
    %v2817 = vmul.f32 %v2809, %v2665
    %v2818 = vsel %vm2484, %v2810, 0.0
    %v2819 = vrot.slane %v2818, 4
    %v2820 = vadd.f32 %v2818, %v2819
    %v2821 = vrot.slane %v2820, 2
    %v2822 = vadd.f32 %v2820, %v2821
    %v2823 = vrot.slane %v2822, 1
    %v2824 = vadd.f32 %v2822, %v2823
    %v2825 = vsel %vm2484, %v2811, 0.0
    %v2826 = vrot.slane %v2825, 4
    %v2827 = vadd.f32 %v2825, %v2826
    %v2828 = vrot.slane %v2827, 2
    %v2829 = vadd.f32 %v2827, %v2828
    %v2830 = vrot.slane %v2829, 1
    %v2831 = vadd.f32 %v2829, %v2830
    %v2832 = vsel %vm2484, %v2812, 0.0
    %v2833 = vrot.slane %v2832, 4
    %v2834 = vadd.f32 %v2832, %v2833
    %v2835 = vrot.slane %v2834, 2
    %v2836 = vadd.f32 %v2834, %v2835
    %v2837 = vrot.slane %v2836, 1
    %v2838 = vadd.f32 %v2836, %v2837
    %v2839 = vsel %vm2484, %v2813, 0.0
    %v2840 = vrot.slane %v2839, 4
    %v2841 = vadd.f32 %v2839, %v2840
    %v2842 = vrot.slane %v2841, 2
    %v2843 = vadd.f32 %v2841, %v2842
    %v2844 = vrot.slane %v2843, 1
    %v2845 = vadd.f32 %v2843, %v2844
    %v2846 = vsel %vm2484, %v2814, 0.0
    %v2847 = vrot.slane %v2846, 4
    %v2848 = vadd.f32 %v2846, %v2847
    %v2849 = vrot.slane %v2848, 2
    %v2850 = vadd.f32 %v2848, %v2849
    %v2851 = vrot.slane %v2850, 1
    %v2852 = vadd.f32 %v2850, %v2851
    %v2853 = vsel %vm2484, %v2815, 0.0
    %v2854 = vrot.slane %v2853, 4
    %v2855 = vadd.f32 %v2853, %v2854
    %v2856 = vrot.slane %v2855, 2
    %v2857 = vadd.f32 %v2855, %v2856
    %v2858 = vrot.slane %v2857, 1
    %v2859 = vadd.f32 %v2857, %v2858
    %v2860 = vsel %vm2484, %v2816, 0.0
    %v2861 = vrot.slane %v2860, 4
    %v2862 = vadd.f32 %v2860, %v2861
    %v2863 = vrot.slane %v2862, 2
    %v2864 = vadd.f32 %v2862, %v2863
    %v2865 = vrot.slane %v2864, 1
    %v2866 = vadd.f32 %v2864, %v2865
    %v2867 = vsel %vm2484, %v2817, 0.0
    %v2868 = vrot.slane %v2867, 4
    %v2869 = vadd.f32 %v2867, %v2868
    %v2870 = vrot.slane %v2869, 2
    %v2871 = vadd.f32 %v2869, %v2870
    %v2872 = vrot.slane %v2871, 1
    %v2873 = vadd.f32 %v2871, %v2872
    %v2874 = vmul.f32 %v2824, 0.01
    %v2875 = vmul.f32 %v2831, 0.01
    %v2876 = vmul.f32 %v2838, 0.01
    %v2877 = vmul.f32 %v2845, 0.01
    %v2878 = vmul.f32 %v2852, 0.01
    %v2879 = vmul.f32 %v2859, 0.01
    %v2880 = vmul.f32 %v2866, 0.01
    %v2881 = vmul.f32 %v2873, 0.01
    %v2890 = vsel %vm1269, %v2875, %v2874
    %v2891 = vsel %vm1271, %v2876, %v2890
    %v2892 = vsel %vm1273, %v2877, %v2891
    %v2893 = vsel %vm1275, %v2878, %v2892
    %v2894 = vsel %vm1277, %v2879, %v2893
    %v2895 = vsel %vm1279, %v2880, %v2894
    %v2896 = vsel %vm1281, %v2881, %v2895
    %v2898 = vadd.f32 %v1300, %v2896
    %v2899 = vsub.f32 %v2898, %v2898
    %v2900 = vmul.f32 %v2899, 1.442695
    %v2901 = vpow.pop %v2900
    %v2902 = vld [vmem:[%s5] sm:$0xff]
    %v2903 = vld [vmem:[%s5 + $0x8] sm:$0xff]
    %2904 = vxpose.xlu0.b32.start [1/16] %v2901, 128
    %2905 = vxpose.xlu0.b32.cont [2/16] 0.0, 128
    %2906 = vxpose.xlu0.b32.cont [3/16] 0.0, 128
    %2907 = vxpose.xlu0.b32.cont [4/16] 0.0, 128
    %2908 = vxpose.xlu0.b32.cont [5/16] 0.0, 128
    %2909 = vxpose.xlu0.b32.cont [6/16] 0.0, 128
    %2910 = vxpose.xlu0.b32.cont [7/16] 0.0, 128
    %2911 = vxpose.xlu0.b32.cont [8/16] 0.0, 128
    %2912 = vxpose.xlu0.b32.cont [9/16] 0.0, 128
    %2913 = vxpose.xlu0.b32.cont [10/16] 0.0, 128
    %2914 = vxpose.xlu0.b32.cont [11/16] 0.0, 128
    %2915 = vxpose.xlu0.b32.cont [12/16] 0.0, 128
    %2916 = vxpose.xlu0.b32.cont [13/16] 0.0, 128
    %2917 = vxpose.xlu0.b32.cont [14/16] 0.0, 128
    %2918 = vxpose.xlu0.b32.cont [15/16] 0.0, 128
    %2919 = vxpose.xlu0.b32.end [16/16] 0.0, 128
    %v2920 = vpop.trf.xlu0
    %v2921 = vpop.trf.xlu0
    %v2922 = vpop.trf.xlu0
    %v2923 = vpop.trf.xlu0
    %v2924 = vpop.trf.xlu0
    %v2925 = vpop.trf.xlu0
    %v2926 = vpop.trf.xlu0
    %v2927 = vpop.trf.xlu0
    %v2928 = vpop.trf.xlu0
    %v2929 = vpop.trf.xlu0
    %v2930 = vpop.trf.xlu0
    %v2931 = vpop.trf.xlu0
    %v2932 = vpop.trf.xlu0
    %v2933 = vpop.trf.xlu0
    %v2934 = vpop.trf.xlu0
    %v2935 = vpop.trf.xlu0
    %2936 = vxpose.xlu0.b32.start [1/16] %v2665, 128
    %2937 = vxpose.xlu0.b32.cont [2/16] 0.0, 128
    %2938 = vxpose.xlu0.b32.cont [3/16] 0.0, 128
    %2939 = vxpose.xlu0.b32.cont [4/16] 0.0, 128
    %2940 = vxpose.xlu0.b32.cont [5/16] 0.0, 128
    %2941 = vxpose.xlu0.b32.cont [6/16] 0.0, 128
    %2942 = vxpose.xlu0.b32.cont [7/16] 0.0, 128
    %2943 = vxpose.xlu0.b32.cont [8/16] 0.0, 128
    %2944 = vxpose.xlu0.b32.cont [9/16] 0.0, 128
    %2945 = vxpose.xlu0.b32.cont [10/16] 0.0, 128
    %2946 = vxpose.xlu0.b32.cont [11/16] 0.0, 128
    %2947 = vxpose.xlu0.b32.cont [12/16] 0.0, 128
    %2948 = vxpose.xlu0.b32.cont [13/16] 0.0, 128
    %2949 = vxpose.xlu0.b32.cont [14/16] 0.0, 128
    %2950 = vxpose.xlu0.b32.cont [15/16] 0.0, 128
    %2951 = vxpose.xlu0.b32.end [16/16] 0.0, 128
    %v2952 = vpop.trf.xlu0
    %v2953 = vpop.trf.xlu0
    %v2954 = vpop.trf.xlu0
    %v2955 = vpop.trf.xlu0
    %v2956 = vpop.trf.xlu0
    %v2957 = vpop.trf.xlu0
    %v2958 = vpop.trf.xlu0
    %v2959 = vpop.trf.xlu0
    %v2960 = vpop.trf.xlu0
    %v2961 = vpop.trf.xlu0
    %v2962 = vpop.trf.xlu0
    %v2963 = vpop.trf.xlu0
    %v2964 = vpop.trf.xlu0
    %v2965 = vpop.trf.xlu0
    %v2966 = vpop.trf.xlu0
    %v2967 = vpop.trf.xlu0
    %v2968 = vlaneseq
    %v2969 = vshrl.u32 %v2968, 7
    %v2970 = vsub.s32 0, %v2969
    %v2971 = vrot.slane %v2920, %v2970
    %2973 = vbcast.lane.b32.xlu0 %v2971, 256
    %v2974 = vpop.permute.xlu0 %2973
    %v2975 = vlaneseq
    %v2976 = vshrl.u32 %v2975, 7
    %v2977 = vsub.s32 1, %v2976
    %v2978 = vrot.slane %v2920, %v2977
    %2980 = vbcast.lane.b32.xlu0 %v2978, 256
    %v2981 = vpop.permute.xlu0 %2980
    %v2982 = vlaneseq
    %v2983 = vshrl.u32 %v2982, 7
    %v2984 = vsub.s32 2, %v2983
    %v2985 = vrot.slane %v2920, %v2984
    %2987 = vbcast.lane.b32.xlu0 %v2985, 256
    %v2988 = vpop.permute.xlu0 %2987
    %v2989 = vlaneseq
    %v2990 = vshrl.u32 %v2989, 7
    %v2991 = vsub.s32 3, %v2990
    %v2992 = vrot.slane %v2920, %v2991
    %2994 = vbcast.lane.b32.xlu0 %v2992, 256
    %v2995 = vpop.permute.xlu0 %2994
    %v2996 = vlaneseq
    %v2997 = vshrl.u32 %v2996, 7
    %v2998 = vsub.s32 4, %v2997
    %v2999 = vrot.slane %v2920, %v2998
    %3001 = vbcast.lane.b32.xlu0 %v2999, 256
    %v3002 = vpop.permute.xlu0 %3001
    %v3003 = vlaneseq
    %v3004 = vshrl.u32 %v3003, 7
    %v3005 = vsub.s32 5, %v3004
    %v3006 = vrot.slane %v2920, %v3005
    %3008 = vbcast.lane.b32.xlu0 %v3006, 256
    %v3009 = vpop.permute.xlu0 %3008
    %v3010 = vlaneseq
    %v3011 = vshrl.u32 %v3010, 7
    %v3012 = vsub.s32 6, %v3011
    %v3013 = vrot.slane %v2920, %v3012
    %3015 = vbcast.lane.b32.xlu0 %v3013, 256
    %v3016 = vpop.permute.xlu0 %3015
    %v3017 = vlaneseq
    %v3018 = vshrl.u32 %v3017, 7
    %v3019 = vsub.s32 7, %v3018
    %v3020 = vrot.slane %v2920, %v3019
    %3022 = vbcast.lane.b32.xlu0 %v3020, 256
    %v3023 = vpop.permute.xlu0 %3022
    %v3024 = vmul.f32 %v94, %v2974
    %v3025 = vmul.f32 %v95, %v2974
    %v3026 = vmul.f32 %v96, %v2974
    %v3027 = vmul.f32 %v97, %v2974
    %v3028 = vmul.f32 %v98, %v2981
    %v3029 = vmul.f32 %v99, %v2981
    %v3030 = vmul.f32 %v100, %v2981
    %v3031 = vmul.f32 %v101, %v2981
    %v3032 = vmul.f32 %v102, %v2988
    %v3033 = vmul.f32 %v103, %v2988
    %v3034 = vmul.f32 %v104, %v2988
    %v3035 = vmul.f32 %v105, %v2988
    %v3036 = vmul.f32 %v106, %v2995
    %v3037 = vmul.f32 %v107, %v2995
    %v3038 = vmul.f32 %v108, %v2995
    %v3039 = vmul.f32 %v109, %v2995
    %v3040 = vmul.f32 %v110, %v3002
    %v3041 = vmul.f32 %v111, %v3002
    %v3042 = vmul.f32 %v112, %v3002
    %v3043 = vmul.f32 %v113, %v3002
    %v3044 = vmul.f32 %v114, %v3009
    %v3045 = vmul.f32 %v115, %v3009
    %v3046 = vmul.f32 %v116, %v3009
    %v3047 = vmul.f32 %v117, %v3009
    %v3048 = vmul.f32 %v118, %v3016
    %v3049 = vmul.f32 %v119, %v3016
    %v3050 = vmul.f32 %v120, %v3016
    %v3051 = vmul.f32 %v121, %v3016
    %v3052 = vmul.f32 %v122, %v3023
    %v3053 = vmul.f32 %v123, %v3023
    %v3054 = vmul.f32 %v124, %v3023
    %v3055 = vmul.f32 %v125, %v3023
    %v3056 = vrot.slane %v3024, 4
    %v3057 = vadd.f32 %v3024, %v3056
    %v3058 = vrot.slane %v3057, 2
    %v3059 = vadd.f32 %v3057, %v3058
    %v3060 = vrot.slane %v3059, 1
    %v3061 = vadd.f32 %v3059, %v3060
    %v3062 = vrot.slane %v3025, 4
    %v3063 = vadd.f32 %v3025, %v3062
    %v3064 = vrot.slane %v3063, 2
    %v3065 = vadd.f32 %v3063, %v3064
    %v3066 = vrot.slane %v3065, 1
    %v3067 = vadd.f32 %v3065, %v3066
    %v3068 = vrot.slane %v3026, 4
    %v3069 = vadd.f32 %v3026, %v3068
    %v3070 = vrot.slane %v3069, 2
    %v3071 = vadd.f32 %v3069, %v3070
    %v3072 = vrot.slane %v3071, 1
    %v3073 = vadd.f32 %v3071, %v3072
    %v3074 = vsel %vm555, %v3027, 0.0
    %v3075 = vrot.slane %v3074, 4
    %v3076 = vadd.f32 %v3074, %v3075
    %v3077 = vrot.slane %v3076, 2
    %v3078 = vadd.f32 %v3076, %v3077
    %v3079 = vrot.slane %v3078, 1
    %v3080 = vadd.f32 %v3078, %v3079
    %v3081 = vrot.slane %v3028, 4
    %v3082 = vadd.f32 %v3028, %v3081
    %v3083 = vrot.slane %v3082, 2
    %v3084 = vadd.f32 %v3082, %v3083
    %v3085 = vrot.slane %v3084, 1
    %v3086 = vadd.f32 %v3084, %v3085
    %v3087 = vrot.slane %v3029, 4
    %v3088 = vadd.f32 %v3029, %v3087
    %v3089 = vrot.slane %v3088, 2
    %v3090 = vadd.f32 %v3088, %v3089
    %v3091 = vrot.slane %v3090, 1
    %v3092 = vadd.f32 %v3090, %v3091
    %v3093 = vrot.slane %v3030, 4
    %v3094 = vadd.f32 %v3030, %v3093
    %v3095 = vrot.slane %v3094, 2
    %v3096 = vadd.f32 %v3094, %v3095
    %v3097 = vrot.slane %v3096, 1
    %v3098 = vadd.f32 %v3096, %v3097
    %v3099 = vsel %vm555, %v3031, 0.0
    %v3100 = vrot.slane %v3099, 4
    %v3101 = vadd.f32 %v3099, %v3100
    %v3102 = vrot.slane %v3101, 2
    %v3103 = vadd.f32 %v3101, %v3102
    %v3104 = vrot.slane %v3103, 1
    %v3105 = vadd.f32 %v3103, %v3104
    %v3106 = vrot.slane %v3032, 4
    %v3107 = vadd.f32 %v3032, %v3106
    %v3108 = vrot.slane %v3107, 2
    %v3109 = vadd.f32 %v3107, %v3108
    %v3110 = vrot.slane %v3109, 1
    %v3111 = vadd.f32 %v3109, %v3110
    %v3112 = vrot.slane %v3033, 4
    %v3113 = vadd.f32 %v3033, %v3112
    %v3114 = vrot.slane %v3113, 2
    %v3115 = vadd.f32 %v3113, %v3114
    %v3116 = vrot.slane %v3115, 1
    %v3117 = vadd.f32 %v3115, %v3116
    %v3118 = vrot.slane %v3034, 4
    %v3119 = vadd.f32 %v3034, %v3118
    %v3120 = vrot.slane %v3119, 2
    %v3121 = vadd.f32 %v3119, %v3120
    %v3122 = vrot.slane %v3121, 1
    %v3123 = vadd.f32 %v3121, %v3122
    %v3124 = vsel %vm555, %v3035, 0.0
    %v3125 = vrot.slane %v3124, 4
    %v3126 = vadd.f32 %v3124, %v3125
    %v3127 = vrot.slane %v3126, 2
    %v3128 = vadd.f32 %v3126, %v3127
    %v3129 = vrot.slane %v3128, 1
    %v3130 = vadd.f32 %v3128, %v3129
    %v3131 = vrot.slane %v3036, 4
    %v3132 = vadd.f32 %v3036, %v3131
    %v3133 = vrot.slane %v3132, 2
    %v3134 = vadd.f32 %v3132, %v3133
    %v3135 = vrot.slane %v3134, 1
    %v3136 = vadd.f32 %v3134, %v3135
    %v3137 = vrot.slane %v3037, 4
    %v3138 = vadd.f32 %v3037, %v3137
    %v3139 = vrot.slane %v3138, 2
    %v3140 = vadd.f32 %v3138, %v3139
    %v3141 = vrot.slane %v3140, 1
    %v3142 = vadd.f32 %v3140, %v3141
    %v3143 = vrot.slane %v3038, 4
    %v3144 = vadd.f32 %v3038, %v3143
    %v3145 = vrot.slane %v3144, 2
    %v3146 = vadd.f32 %v3144, %v3145
    %v3147 = vrot.slane %v3146, 1
    %v3148 = vadd.f32 %v3146, %v3147
    %v3149 = vsel %vm555, %v3039, 0.0
    %v3150 = vrot.slane %v3149, 4
    %v3151 = vadd.f32 %v3149, %v3150
    %v3152 = vrot.slane %v3151, 2
    %v3153 = vadd.f32 %v3151, %v3152
    %v3154 = vrot.slane %v3153, 1
    %v3155 = vadd.f32 %v3153, %v3154
    %v3156 = vrot.slane %v3040, 4
    %v3157 = vadd.f32 %v3040, %v3156
    %v3158 = vrot.slane %v3157, 2
    %v3159 = vadd.f32 %v3157, %v3158
    %v3160 = vrot.slane %v3159, 1
    %v3161 = vadd.f32 %v3159, %v3160
    %v3162 = vrot.slane %v3041, 4
    %v3163 = vadd.f32 %v3041, %v3162
    %v3164 = vrot.slane %v3163, 2
    %v3165 = vadd.f32 %v3163, %v3164
    %v3166 = vrot.slane %v3165, 1
    %v3167 = vadd.f32 %v3165, %v3166
    %v3168 = vrot.slane %v3042, 4
    %v3169 = vadd.f32 %v3042, %v3168
    %v3170 = vrot.slane %v3169, 2
    %v3171 = vadd.f32 %v3169, %v3170
    %v3172 = vrot.slane %v3171, 1
    %v3173 = vadd.f32 %v3171, %v3172
    %v3174 = vsel %vm555, %v3043, 0.0
    %v3175 = vrot.slane %v3174, 4
    %v3176 = vadd.f32 %v3174, %v3175
    %v3177 = vrot.slane %v3176, 2
    %v3178 = vadd.f32 %v3176, %v3177
    %v3179 = vrot.slane %v3178, 1
    %v3180 = vadd.f32 %v3178, %v3179
    %v3181 = vrot.slane %v3044, 4
    %v3182 = vadd.f32 %v3044, %v3181
    %v3183 = vrot.slane %v3182, 2
    %v3184 = vadd.f32 %v3182, %v3183
    %v3185 = vrot.slane %v3184, 1
    %v3186 = vadd.f32 %v3184, %v3185
    %v3187 = vrot.slane %v3045, 4
    %v3188 = vadd.f32 %v3045, %v3187
    %v3189 = vrot.slane %v3188, 2
    %v3190 = vadd.f32 %v3188, %v3189
    %v3191 = vrot.slane %v3190, 1
    %v3192 = vadd.f32 %v3190, %v3191
    %v3193 = vrot.slane %v3046, 4
    %v3194 = vadd.f32 %v3046, %v3193
    %v3195 = vrot.slane %v3194, 2
    %v3196 = vadd.f32 %v3194, %v3195
    %v3197 = vrot.slane %v3196, 1
    %v3198 = vadd.f32 %v3196, %v3197
    %v3199 = vsel %vm555, %v3047, 0.0
    %v3200 = vrot.slane %v3199, 4
    %v3201 = vadd.f32 %v3199, %v3200
    %v3202 = vrot.slane %v3201, 2
    %v3203 = vadd.f32 %v3201, %v3202
    %v3204 = vrot.slane %v3203, 1
    %v3205 = vadd.f32 %v3203, %v3204
    %v3206 = vrot.slane %v3048, 4
    %v3207 = vadd.f32 %v3048, %v3206
    %v3208 = vrot.slane %v3207, 2
    %v3209 = vadd.f32 %v3207, %v3208
    %v3210 = vrot.slane %v3209, 1
    %v3211 = vadd.f32 %v3209, %v3210
    %v3212 = vrot.slane %v3049, 4
    %v3213 = vadd.f32 %v3049, %v3212
    %v3214 = vrot.slane %v3213, 2
    %v3215 = vadd.f32 %v3213, %v3214
    %v3216 = vrot.slane %v3215, 1
    %v3217 = vadd.f32 %v3215, %v3216
    %v3218 = vrot.slane %v3050, 4
    %v3219 = vadd.f32 %v3050, %v3218
    %v3220 = vrot.slane %v3219, 2
    %v3221 = vadd.f32 %v3219, %v3220
    %v3222 = vrot.slane %v3221, 1
    %v3223 = vadd.f32 %v3221, %v3222
    %v3224 = vsel %vm555, %v3051, 0.0
    %v3225 = vrot.slane %v3224, 4
    %v3226 = vadd.f32 %v3224, %v3225
    %v3227 = vrot.slane %v3226, 2
    %v3228 = vadd.f32 %v3226, %v3227
    %v3229 = vrot.slane %v3228, 1
    %v3230 = vadd.f32 %v3228, %v3229
    %v3231 = vrot.slane %v3052, 4
    %v3232 = vadd.f32 %v3052, %v3231
    %v3233 = vrot.slane %v3232, 2
    %v3234 = vadd.f32 %v3232, %v3233
    %v3235 = vrot.slane %v3234, 1
    %v3236 = vadd.f32 %v3234, %v3235
    %v3237 = vrot.slane %v3053, 4
    %v3238 = vadd.f32 %v3053, %v3237
    %v3239 = vrot.slane %v3238, 2
    %v3240 = vadd.f32 %v3238, %v3239
    %v3241 = vrot.slane %v3240, 1
    %v3242 = vadd.f32 %v3240, %v3241
    %v3243 = vrot.slane %v3054, 4
    %v3244 = vadd.f32 %v3054, %v3243
    %v3245 = vrot.slane %v3244, 2
    %v3246 = vadd.f32 %v3244, %v3245
    %v3247 = vrot.slane %v3246, 1
    %v3248 = vadd.f32 %v3246, %v3247
    %v3249 = vsel %vm555, %v3055, 0.0
    %v3250 = vrot.slane %v3249, 4
    %v3251 = vadd.f32 %v3249, %v3250
    %v3252 = vrot.slane %v3251, 2
    %v3253 = vadd.f32 %v3251, %v3252
    %v3254 = vrot.slane %v3253, 1
    %v3255 = vadd.f32 %v3253, %v3254
    %v3256 = vlaneseq
    %v3257 = vshrl.u32 %v3256, 7
    %v3258 = vsub.s32 0, %v3257
    %v3259 = vrot.slane %v2952, %v3258
    %3261 = vbcast.lane.b32.xlu0 %v3259, 256
    %v3262 = vpop.permute.xlu0 %3261
    %v3263 = vlaneseq
    %v3264 = vshrl.u32 %v3263, 7
    %v3265 = vsub.s32 1, %v3264
    %v3266 = vrot.slane %v2952, %v3265
    %3268 = vbcast.lane.b32.xlu0 %v3266, 256
    %v3269 = vpop.permute.xlu0 %3268
    %v3270 = vlaneseq
    %v3271 = vshrl.u32 %v3270, 7
    %v3272 = vsub.s32 2, %v3271
    %v3273 = vrot.slane %v2952, %v3272
    %3275 = vbcast.lane.b32.xlu0 %v3273, 256
    %v3276 = vpop.permute.xlu0 %3275
    %v3277 = vlaneseq
    %v3278 = vshrl.u32 %v3277, 7
    %v3279 = vsub.s32 3, %v3278
    %v3280 = vrot.slane %v2952, %v3279
    %3282 = vbcast.lane.b32.xlu0 %v3280, 256
    %v3283 = vpop.permute.xlu0 %3282
    %v3284 = vlaneseq
    %v3285 = vshrl.u32 %v3284, 7
    %v3286 = vsub.s32 4, %v3285
    %v3287 = vrot.slane %v2952, %v3286
    %3289 = vbcast.lane.b32.xlu0 %v3287, 256
    %v3290 = vpop.permute.xlu0 %3289
    %v3291 = vlaneseq
    %v3292 = vshrl.u32 %v3291, 7
    %v3293 = vsub.s32 5, %v3292
    %v3294 = vrot.slane %v2952, %v3293
    %3296 = vbcast.lane.b32.xlu0 %v3294, 256
    %v3297 = vpop.permute.xlu0 %3296
    %v3298 = vlaneseq
    %v3299 = vshrl.u32 %v3298, 7
    %v3300 = vsub.s32 6, %v3299
    %v3301 = vrot.slane %v2952, %v3300
    %3303 = vbcast.lane.b32.xlu0 %v3301, 256
    %v3304 = vpop.permute.xlu0 %3303
    %v3305 = vlaneseq
    %v3306 = vshrl.u32 %v3305, 7
    %v3307 = vsub.s32 7, %v3306
    %v3308 = vrot.slane %v2952, %v3307
    %3310 = vbcast.lane.b32.xlu0 %v3308, 256
    %v3311 = vpop.permute.xlu0 %3310
    %v3312 = vmul.f32 %v126, %v3262
    %v3313 = vmul.f32 %v127, %v3262
    %v3314 = vmul.f32 %v128, %v3262
    %v3315 = vmul.f32 %v129, %v3262
    %v3316 = vmul.f32 %v130, %v3269
    %v3317 = vmul.f32 %v131, %v3269
    %v3318 = vmul.f32 %v132, %v3269
    %v3319 = vmul.f32 %v133, %v3269
    %v3320 = vmul.f32 %v134, %v3276
    %v3321 = vmul.f32 %v135, %v3276
    %v3322 = vmul.f32 %v136, %v3276
    %v3323 = vmul.f32 %v137, %v3276
    %v3324 = vmul.f32 %v138, %v3283
    %v3325 = vmul.f32 %v139, %v3283
    %v3326 = vmul.f32 %v140, %v3283
    %v3327 = vmul.f32 %v141, %v3283
    %v3328 = vmul.f32 %v142, %v3290
    %v3329 = vmul.f32 %v143, %v3290
    %v3330 = vmul.f32 %v144, %v3290
    %v3331 = vmul.f32 %v145, %v3290
    %v3332 = vmul.f32 %v146, %v3297
    %v3333 = vmul.f32 %v147, %v3297
    %v3334 = vmul.f32 %v148, %v3297
    %v3335 = vmul.f32 %v149, %v3297
    %v3336 = vmul.f32 %v150, %v3304
    %v3337 = vmul.f32 %v151, %v3304
    %v3338 = vmul.f32 %v152, %v3304
    %v3339 = vmul.f32 %v153, %v3304
    %v3340 = vmul.f32 %v154, %v3311
    %v3341 = vmul.f32 %v155, %v3311
    %v3342 = vmul.f32 %v156, %v3311
    %v3343 = vmul.f32 %v157, %v3311
    %v3344 = vrot.slane %v3312, 4
    %v3345 = vadd.f32 %v3312, %v3344
    %v3346 = vrot.slane %v3345, 2
    %v3347 = vadd.f32 %v3345, %v3346
    %v3348 = vrot.slane %v3347, 1
    %v3349 = vadd.f32 %v3347, %v3348
    %v3350 = vrot.slane %v3313, 4
    %v3351 = vadd.f32 %v3313, %v3350
    %v3352 = vrot.slane %v3351, 2
    %v3353 = vadd.f32 %v3351, %v3352
    %v3354 = vrot.slane %v3353, 1
    %v3355 = vadd.f32 %v3353, %v3354
    %v3356 = vrot.slane %v3314, 4
    %v3357 = vadd.f32 %v3314, %v3356
    %v3358 = vrot.slane %v3357, 2
    %v3359 = vadd.f32 %v3357, %v3358
    %v3360 = vrot.slane %v3359, 1
    %v3361 = vadd.f32 %v3359, %v3360
    %v3362 = vsel %vm555, %v3315, 0.0
    %v3363 = vrot.slane %v3362, 4
    %v3364 = vadd.f32 %v3362, %v3363
    %v3365 = vrot.slane %v3364, 2
    %v3366 = vadd.f32 %v3364, %v3365
    %v3367 = vrot.slane %v3366, 1
    %v3368 = vadd.f32 %v3366, %v3367
    %v3369 = vrot.slane %v3316, 4
    %v3370 = vadd.f32 %v3316, %v3369
    %v3371 = vrot.slane %v3370, 2
    %v3372 = vadd.f32 %v3370, %v3371
    %v3373 = vrot.slane %v3372, 1
    %v3374 = vadd.f32 %v3372, %v3373
    %v3375 = vrot.slane %v3317, 4
    %v3376 = vadd.f32 %v3317, %v3375
    %v3377 = vrot.slane %v3376, 2
    %v3378 = vadd.f32 %v3376, %v3377
    %v3379 = vrot.slane %v3378, 1
    %v3380 = vadd.f32 %v3378, %v3379
    %v3381 = vrot.slane %v3318, 4
    %v3382 = vadd.f32 %v3318, %v3381
    %v3383 = vrot.slane %v3382, 2
    %v3384 = vadd.f32 %v3382, %v3383
    %v3385 = vrot.slane %v3384, 1
    %v3386 = vadd.f32 %v3384, %v3385
    %v3387 = vsel %vm555, %v3319, 0.0
    %v3388 = vrot.slane %v3387, 4
    %v3389 = vadd.f32 %v3387, %v3388
    %v3390 = vrot.slane %v3389, 2
    %v3391 = vadd.f32 %v3389, %v3390
    %v3392 = vrot.slane %v3391, 1
    %v3393 = vadd.f32 %v3391, %v3392
    %v3394 = vrot.slane %v3320, 4
    %v3395 = vadd.f32 %v3320, %v3394
    %v3396 = vrot.slane %v3395, 2
    %v3397 = vadd.f32 %v3395, %v3396
    %v3398 = vrot.slane %v3397, 1
    %v3399 = vadd.f32 %v3397, %v3398
    %v3400 = vrot.slane %v3321, 4
    %v3401 = vadd.f32 %v3321, %v3400
    %v3402 = vrot.slane %v3401, 2
    %v3403 = vadd.f32 %v3401, %v3402
    %v3404 = vrot.slane %v3403, 1
    %v3405 = vadd.f32 %v3403, %v3404
    %v3406 = vrot.slane %v3322, 4
    %v3407 = vadd.f32 %v3322, %v3406
    %v3408 = vrot.slane %v3407, 2
    %v3409 = vadd.f32 %v3407, %v3408
    %v3410 = vrot.slane %v3409, 1
    %v3411 = vadd.f32 %v3409, %v3410
    %v3412 = vsel %vm555, %v3323, 0.0
    %v3413 = vrot.slane %v3412, 4
    %v3414 = vadd.f32 %v3412, %v3413
    %v3415 = vrot.slane %v3414, 2
    %v3416 = vadd.f32 %v3414, %v3415
    %v3417 = vrot.slane %v3416, 1
    %v3418 = vadd.f32 %v3416, %v3417
    %v3419 = vrot.slane %v3324, 4
    %v3420 = vadd.f32 %v3324, %v3419
    %v3421 = vrot.slane %v3420, 2
    %v3422 = vadd.f32 %v3420, %v3421
    %v3423 = vrot.slane %v3422, 1
    %v3424 = vadd.f32 %v3422, %v3423
    %v3425 = vrot.slane %v3325, 4
    %v3426 = vadd.f32 %v3325, %v3425
    %v3427 = vrot.slane %v3426, 2
    %v3428 = vadd.f32 %v3426, %v3427
    %v3429 = vrot.slane %v3428, 1
    %v3430 = vadd.f32 %v3428, %v3429
    %v3431 = vrot.slane %v3326, 4
    %v3432 = vadd.f32 %v3326, %v3431
    %v3433 = vrot.slane %v3432, 2
    %v3434 = vadd.f32 %v3432, %v3433
    %v3435 = vrot.slane %v3434, 1
    %v3436 = vadd.f32 %v3434, %v3435
    %v3437 = vsel %vm555, %v3327, 0.0
    %v3438 = vrot.slane %v3437, 4
    %v3439 = vadd.f32 %v3437, %v3438
    %v3440 = vrot.slane %v3439, 2
    %v3441 = vadd.f32 %v3439, %v3440
    %v3442 = vrot.slane %v3441, 1
    %v3443 = vadd.f32 %v3441, %v3442
    %v3444 = vrot.slane %v3328, 4
    %v3445 = vadd.f32 %v3328, %v3444
    %v3446 = vrot.slane %v3445, 2
    %v3447 = vadd.f32 %v3445, %v3446
    %v3448 = vrot.slane %v3447, 1
    %v3449 = vadd.f32 %v3447, %v3448
    %v3450 = vrot.slane %v3329, 4
    %v3451 = vadd.f32 %v3329, %v3450
    %v3452 = vrot.slane %v3451, 2
    %v3453 = vadd.f32 %v3451, %v3452
    %v3454 = vrot.slane %v3453, 1
    %v3455 = vadd.f32 %v3453, %v3454
    %v3456 = vrot.slane %v3330, 4
    %v3457 = vadd.f32 %v3330, %v3456
    %v3458 = vrot.slane %v3457, 2
    %v3459 = vadd.f32 %v3457, %v3458
    %v3460 = vrot.slane %v3459, 1
    %v3461 = vadd.f32 %v3459, %v3460
    %v3462 = vsel %vm555, %v3331, 0.0
    %v3463 = vrot.slane %v3462, 4
    %v3464 = vadd.f32 %v3462, %v3463
    %v3465 = vrot.slane %v3464, 2
    %v3466 = vadd.f32 %v3464, %v3465
    %v3467 = vrot.slane %v3466, 1
    %v3468 = vadd.f32 %v3466, %v3467
    %v3469 = vrot.slane %v3332, 4
    %v3470 = vadd.f32 %v3332, %v3469
    %v3471 = vrot.slane %v3470, 2
    %v3472 = vadd.f32 %v3470, %v3471
    %v3473 = vrot.slane %v3472, 1
    %v3474 = vadd.f32 %v3472, %v3473
    %v3475 = vrot.slane %v3333, 4
    %v3476 = vadd.f32 %v3333, %v3475
    %v3477 = vrot.slane %v3476, 2
    %v3478 = vadd.f32 %v3476, %v3477
    %v3479 = vrot.slane %v3478, 1
    %v3480 = vadd.f32 %v3478, %v3479
    %v3481 = vrot.slane %v3334, 4
    %v3482 = vadd.f32 %v3334, %v3481
    %v3483 = vrot.slane %v3482, 2
    %v3484 = vadd.f32 %v3482, %v3483
    %v3485 = vrot.slane %v3484, 1
    %v3486 = vadd.f32 %v3484, %v3485
    %v3487 = vsel %vm555, %v3335, 0.0
    %v3488 = vrot.slane %v3487, 4
    %v3489 = vadd.f32 %v3487, %v3488
    %v3490 = vrot.slane %v3489, 2
    %v3491 = vadd.f32 %v3489, %v3490
    %v3492 = vrot.slane %v3491, 1
    %v3493 = vadd.f32 %v3491, %v3492
    %v3494 = vrot.slane %v3336, 4
    %v3495 = vadd.f32 %v3336, %v3494
    %v3496 = vrot.slane %v3495, 2
    %v3497 = vadd.f32 %v3495, %v3496
    %v3498 = vrot.slane %v3497, 1
    %v3499 = vadd.f32 %v3497, %v3498
    %v3500 = vrot.slane %v3337, 4
    %v3501 = vadd.f32 %v3337, %v3500
    %v3502 = vrot.slane %v3501, 2
    %v3503 = vadd.f32 %v3501, %v3502
    %v3504 = vrot.slane %v3503, 1
    %v3505 = vadd.f32 %v3503, %v3504
    %v3506 = vrot.slane %v3338, 4
    %v3507 = vadd.f32 %v3338, %v3506
    %v3508 = vrot.slane %v3507, 2
    %v3509 = vadd.f32 %v3507, %v3508
    %v3510 = vrot.slane %v3509, 1
    %v3511 = vadd.f32 %v3509, %v3510
    %v3512 = vsel %vm555, %v3339, 0.0
    %v3513 = vrot.slane %v3512, 4
    %v3514 = vadd.f32 %v3512, %v3513
    %v3515 = vrot.slane %v3514, 2
    %v3516 = vadd.f32 %v3514, %v3515
    %v3517 = vrot.slane %v3516, 1
    %v3518 = vadd.f32 %v3516, %v3517
    %v3519 = vrot.slane %v3340, 4
    %v3520 = vadd.f32 %v3340, %v3519
    %v3521 = vrot.slane %v3520, 2
    %v3522 = vadd.f32 %v3520, %v3521
    %v3523 = vrot.slane %v3522, 1
    %v3524 = vadd.f32 %v3522, %v3523
    %v3525 = vrot.slane %v3341, 4
    %v3526 = vadd.f32 %v3341, %v3525
    %v3527 = vrot.slane %v3526, 2
    %v3528 = vadd.f32 %v3526, %v3527
    %v3529 = vrot.slane %v3528, 1
    %v3530 = vadd.f32 %v3528, %v3529
    %v3531 = vrot.slane %v3342, 4
    %v3532 = vadd.f32 %v3342, %v3531
    %v3533 = vrot.slane %v3532, 2
    %v3534 = vadd.f32 %v3532, %v3533
    %v3535 = vrot.slane %v3534, 1
    %v3536 = vadd.f32 %v3534, %v3535
    %v3537 = vsel %vm555, %v3343, 0.0
    %v3538 = vrot.slane %v3537, 4
    %v3539 = vadd.f32 %v3537, %v3538
    %v3540 = vrot.slane %v3539, 2
    %v3541 = vadd.f32 %v3539, %v3540
    %v3542 = vrot.slane %v3541, 1
    %v3543 = vadd.f32 %v3541, %v3542
    %v3576 = vsel %vm1269, %v3086, %v3061
    %v3577 = vsel %vm1271, %v3111, %v3576
    %v3578 = vsel %vm1273, %v3136, %v3577
    %v3579 = vsel %vm1275, %v3161, %v3578
    %v3580 = vsel %vm1277, %v3186, %v3579
    %v3581 = vsel %vm1279, %v3211, %v3580
    %v3582 = vsel %vm1281, %v3236, %v3581
    %v3583 = vsel %vm1269, %v3092, %v3067
    %v3584 = vsel %vm1271, %v3117, %v3583
    %v3585 = vsel %vm1273, %v3142, %v3584
    %v3586 = vsel %vm1275, %v3167, %v3585
    %v3587 = vsel %vm1277, %v3192, %v3586
    %v3588 = vsel %vm1279, %v3217, %v3587
    %v3589 = vsel %vm1281, %v3242, %v3588
    %v3590 = vsel %vm1269, %v3098, %v3073
    %v3591 = vsel %vm1271, %v3123, %v3590
    %v3592 = vsel %vm1273, %v3148, %v3591
    %v3593 = vsel %vm1275, %v3173, %v3592
    %v3594 = vsel %vm1277, %v3198, %v3593
    %v3595 = vsel %vm1279, %v3223, %v3594
    %v3596 = vsel %vm1281, %v3248, %v3595
    %v3597 = vsel %vm1269, %v3105, %v3080
    %v3598 = vsel %vm1271, %v3130, %v3597
    %v3599 = vsel %vm1273, %v3155, %v3598
    %v3600 = vsel %vm1275, %v3180, %v3599
    %v3601 = vsel %vm1277, %v3205, %v3600
    %v3602 = vsel %vm1279, %v3230, %v3601
    %v3603 = vsel %vm1281, %v3255, %v3602
    %v3608 = vadd.f32 %v3582, %v3589
    %v3609 = vadd.f32 %v3608, %v3596
    %v3610 = vsel %vm555, %v3603, 0.0
    %v3611 = vadd.f32 %v3609, %v3610
    %3612 = vadd.xlane.f32.xlu0 %v3611
    %v3613 = vpop.xlane.xlu0 %3612
    %v3614 = vrcp.pop 400.0
    %v3615 = vmul.f32 %v3613, %v3614
    %v3617 = vrot.slane %v3615, 1
    %v3618 = vrot.slane %v3615, 2
    %v3619 = vrot.slane %v3615, 3
    %v3620 = vrot.slane %v3615, 4
    %v3621 = vrot.slane %v3615, 5
    %v3622 = vrot.slane %v3615, 6
    %v3623 = vrot.slane %v3615, 7
    %v3632 = vsub.f32 %v3061, %v3615
    %v3633 = vsub.f32 %v3067, %v3615
    %v3634 = vsub.f32 %v3073, %v3615
    %v3635 = vsub.f32 %v3080, %v3615
    %v3636 = vsub.f32 %v3086, %v3617
    %v3637 = vsub.f32 %v3092, %v3617
    %v3638 = vsub.f32 %v3098, %v3617
    %v3639 = vsub.f32 %v3105, %v3617
    %v3640 = vsub.f32 %v3111, %v3618
    %v3641 = vsub.f32 %v3117, %v3618
    %v3642 = vsub.f32 %v3123, %v3618
    %v3643 = vsub.f32 %v3130, %v3618
    %v3644 = vsub.f32 %v3136, %v3619
    %v3645 = vsub.f32 %v3142, %v3619
    %v3646 = vsub.f32 %v3148, %v3619
    %v3647 = vsub.f32 %v3155, %v3619
    %v3648 = vsub.f32 %v3161, %v3620
    %v3649 = vsub.f32 %v3167, %v3620
    %v3650 = vsub.f32 %v3173, %v3620
    %v3651 = vsub.f32 %v3180, %v3620
    %v3652 = vsub.f32 %v3186, %v3621
    %v3653 = vsub.f32 %v3192, %v3621
    %v3654 = vsub.f32 %v3198, %v3621
    %v3655 = vsub.f32 %v3205, %v3621
    %v3656 = vsub.f32 %v3211, %v3622
    %v3657 = vsub.f32 %v3217, %v3622
    %v3658 = vsub.f32 %v3223, %v3622
    %v3659 = vsub.f32 %v3230, %v3622
    %v3660 = vsub.f32 %v3236, %v3623
    %v3661 = vsub.f32 %v3242, %v3623
    %v3662 = vsub.f32 %v3248, %v3623
    %v3663 = vsub.f32 %v3255, %v3623
    %v3664 = vmul.f32 %v3632, %v3632
    %v3665 = vmul.f32 %v3633, %v3633
    %v3666 = vmul.f32 %v3634, %v3634
    %v3667 = vmul.f32 %v3635, %v3635
    %v3668 = vmul.f32 %v3636, %v3636
    %v3669 = vmul.f32 %v3637, %v3637
    %v3670 = vmul.f32 %v3638, %v3638
    %v3671 = vmul.f32 %v3639, %v3639
    %v3672 = vmul.f32 %v3640, %v3640
    %v3673 = vmul.f32 %v3641, %v3641
    %v3674 = vmul.f32 %v3642, %v3642
    %v3675 = vmul.f32 %v3643, %v3643
    %v3676 = vmul.f32 %v3644, %v3644
    %v3677 = vmul.f32 %v3645, %v3645
    %v3678 = vmul.f32 %v3646, %v3646
    %v3679 = vmul.f32 %v3647, %v3647
    %v3680 = vmul.f32 %v3648, %v3648
    %v3681 = vmul.f32 %v3649, %v3649
    %v3682 = vmul.f32 %v3650, %v3650
    %v3683 = vmul.f32 %v3651, %v3651
    %v3684 = vmul.f32 %v3652, %v3652
    %v3685 = vmul.f32 %v3653, %v3653
    %v3686 = vmul.f32 %v3654, %v3654
    %v3687 = vmul.f32 %v3655, %v3655
    %v3688 = vmul.f32 %v3656, %v3656
    %v3689 = vmul.f32 %v3657, %v3657
    %v3690 = vmul.f32 %v3658, %v3658
    %v3691 = vmul.f32 %v3659, %v3659
    %v3692 = vmul.f32 %v3660, %v3660
    %v3693 = vmul.f32 %v3661, %v3661
    %v3694 = vmul.f32 %v3662, %v3662
    %v3695 = vmul.f32 %v3663, %v3663
    %v3728 = vrot.slane %v3668, 7
    %v3729 = vsel %vm1269, %v3728, %v3664
    %v3730 = vrot.slane %v3672, 6
    %v3731 = vsel %vm1271, %v3730, %v3729
    %v3732 = vrot.slane %v3676, 5
    %v3733 = vsel %vm1273, %v3732, %v3731
    %v3734 = vrot.slane %v3680, 4
    %v3735 = vsel %vm1275, %v3734, %v3733
    %v3736 = vrot.slane %v3684, 3
    %v3737 = vsel %vm1277, %v3736, %v3735
    %v3738 = vrot.slane %v3688, 2
    %v3739 = vsel %vm1279, %v3738, %v3737
    %v3740 = vrot.slane %v3692, 1
    %v3741 = vsel %vm1281, %v3740, %v3739
    %v3742 = vrot.slane %v3669, 7
    %v3743 = vsel %vm1269, %v3742, %v3665
    %v3744 = vrot.slane %v3673, 6
    %v3745 = vsel %vm1271, %v3744, %v3743
    %v3746 = vrot.slane %v3677, 5
    %v3747 = vsel %vm1273, %v3746, %v3745
    %v3748 = vrot.slane %v3681, 4
    %v3749 = vsel %vm1275, %v3748, %v3747
    %v3750 = vrot.slane %v3685, 3
    %v3751 = vsel %vm1277, %v3750, %v3749
    %v3752 = vrot.slane %v3689, 2
    %v3753 = vsel %vm1279, %v3752, %v3751
    %v3754 = vrot.slane %v3693, 1
    %v3755 = vsel %vm1281, %v3754, %v3753
    %v3756 = vrot.slane %v3670, 7
    %v3757 = vsel %vm1269, %v3756, %v3666
    %v3758 = vrot.slane %v3674, 6
    %v3759 = vsel %vm1271, %v3758, %v3757
    %v3760 = vrot.slane %v3678, 5
    %v3761 = vsel %vm1273, %v3760, %v3759
    %v3762 = vrot.slane %v3682, 4
    %v3763 = vsel %vm1275, %v3762, %v3761
    %v3764 = vrot.slane %v3686, 3
    %v3765 = vsel %vm1277, %v3764, %v3763
    %v3766 = vrot.slane %v3690, 2
    %v3767 = vsel %vm1279, %v3766, %v3765
    %v3768 = vrot.slane %v3694, 1
    %v3769 = vsel %vm1281, %v3768, %v3767
    %v3770 = vrot.slane %v3671, 7
    %v3771 = vsel %vm1269, %v3770, %v3667
    %v3772 = vrot.slane %v3675, 6
    %v3773 = vsel %vm1271, %v3772, %v3771
    %v3774 = vrot.slane %v3679, 5
    %v3775 = vsel %vm1273, %v3774, %v3773
    %v3776 = vrot.slane %v3683, 4
    %v3777 = vsel %vm1275, %v3776, %v3775
    %v3778 = vrot.slane %v3687, 3
    %v3779 = vsel %vm1277, %v3778, %v3777
    %v3780 = vrot.slane %v3691, 2
    %v3781 = vsel %vm1279, %v3780, %v3779
    %v3782 = vrot.slane %v3695, 1
    %v3783 = vsel %vm1281, %v3782, %v3781
    %v3788 = vadd.f32 %v3741, %v3755
    %v3789 = vadd.f32 %v3788, %v3769
    %v3790 = vsel %vm555, %v3783, 0.0
    %v3791 = vadd.f32 %v3789, %v3790
    %3792 = vadd.xlane.f32.xlu0 %v3791
    %v3793 = vpop.xlane.xlu0 %3792
    %v3794 = vmul.f32 %v3793, %v3614
    %v3795 = vadd.f32 %v3794, 1e-05
    %v3796 = vrsqrt.pop %v3795
    %v3798 = vrot.slane %v3796, 1
    %v3799 = vrot.slane %v3796, 2
    %v3800 = vrot.slane %v3796, 3
    %v3801 = vrot.slane %v3796, 4
    %v3802 = vrot.slane %v3796, 5
    %v3803 = vrot.slane %v3796, 6
    %v3804 = vrot.slane %v3796, 7
    %v3813 = vmul.f32 %v3632, %v3796
    %v3814 = vmul.f32 %v3633, %v3796
    %v3815 = vmul.f32 %v3634, %v3796
    %v3816 = vmul.f32 %v3635, %v3796
    %v3817 = vmul.f32 %v3636, %v3798
    %v3818 = vmul.f32 %v3637, %v3798
    %v3819 = vmul.f32 %v3638, %v3798
    %v3820 = vmul.f32 %v3639, %v3798
    %v3821 = vmul.f32 %v3640, %v3799
    %v3822 = vmul.f32 %v3641, %v3799
    %v3823 = vmul.f32 %v3642, %v3799
    %v3824 = vmul.f32 %v3643, %v3799
    %v3825 = vmul.f32 %v3644, %v3800
    %v3826 = vmul.f32 %v3645, %v3800
    %v3827 = vmul.f32 %v3646, %v3800
    %v3828 = vmul.f32 %v3647, %v3800
    %v3829 = vmul.f32 %v3648, %v3801
    %v3830 = vmul.f32 %v3649, %v3801
    %v3831 = vmul.f32 %v3650, %v3801
    %v3832 = vmul.f32 %v3651, %v3801
    %v3833 = vmul.f32 %v3652, %v3802
    %v3834 = vmul.f32 %v3653, %v3802
    %v3835 = vmul.f32 %v3654, %v3802
    %v3836 = vmul.f32 %v3655, %v3802
    %v3837 = vmul.f32 %v3656, %v3803
    %v3838 = vmul.f32 %v3657, %v3803
    %v3839 = vmul.f32 %v3658, %v3803
    %v3840 = vmul.f32 %v3659, %v3803
    %v3841 = vmul.f32 %v3660, %v3804
    %v3842 = vmul.f32 %v3661, %v3804
    %v3843 = vmul.f32 %v3662, %v3804
    %v3844 = vmul.f32 %v3663, %v3804
    %v3847 = vlaneseq
    %v3848 = vshrl.u32 %v3847, 7
    %v3849 = vsub.s32 0, %v3848
    %v3850 = vrot.slane %v2902, %v3849
    %v3851 = vlaneseq
    %v3852 = vshrl.u32 %v3851, 7
    %v3853 = vsub.s32 4, %v3852
    %v3854 = vrot.slane %v2902, %v3853
    %v3855 = vlaneseq
    %v3856 = vshrl.u32 %v3855, 7
    %v3857 = vsub.s32 0, %v3856
    %v3858 = vrot.slane %v2903, %v3857
    %v3859 = vlaneseq
    %v3860 = vshrl.u32 %v3859, 7
    %v3861 = vsub.s32 4, %v3860
    %v3862 = vrot.slane %v2903, %v3861
    %v3867 = vlaneseq
    %v3868 = vshrl.u32 %v3867, 7
    %v3869 = vsub.s32 0, %v3868
    %v3870 = vrot.slane %v3850, %v3869
    %v3871 = vlaneseq
    %v3872 = vshrl.u32 %v3871, 7
    %v3873 = vsub.s32 0, %v3872
    %v3874 = vrot.slane %v3854, %v3873
    %v3875 = vlaneseq
    %v3876 = vshrl.u32 %v3875, 7
    %v3877 = vsub.s32 0, %v3876
    %v3878 = vrot.slane %v3858, %v3877
    %v3879 = vlaneseq
    %v3880 = vshrl.u32 %v3879, 7
    %v3881 = vsub.s32 0, %v3880
    %v3882 = vrot.slane %v3862, %v3881
    %v3883 = vmul.f32 %v3813, %v3870
    %v3884 = vmul.f32 %v3814, %v3874
    %v3885 = vmul.f32 %v3815, %v3878
    %v3886 = vmul.f32 %v3816, %v3882
    %v3887 = vmul.f32 %v3817, %v3870
    %v3888 = vmul.f32 %v3818, %v3874
    %v3889 = vmul.f32 %v3819, %v3878
    %v3890 = vmul.f32 %v3820, %v3882
    %v3891 = vmul.f32 %v3821, %v3870
    %v3892 = vmul.f32 %v3822, %v3874
    %v3893 = vmul.f32 %v3823, %v3878
    %v3894 = vmul.f32 %v3824, %v3882
    %v3895 = vmul.f32 %v3825, %v3870
    %v3896 = vmul.f32 %v3826, %v3874
    %v3897 = vmul.f32 %v3827, %v3878
    %v3898 = vmul.f32 %v3828, %v3882
    %v3899 = vmul.f32 %v3829, %v3870
    %v3900 = vmul.f32 %v3830, %v3874
    %v3901 = vmul.f32 %v3831, %v3878
    %v3902 = vmul.f32 %v3832, %v3882
    %v3903 = vmul.f32 %v3833, %v3870
    %v3904 = vmul.f32 %v3834, %v3874
    %v3905 = vmul.f32 %v3835, %v3878
    %v3906 = vmul.f32 %v3836, %v3882
    %v3907 = vmul.f32 %v3837, %v3870
    %v3908 = vmul.f32 %v3838, %v3874
    %v3909 = vmul.f32 %v3839, %v3878
    %v3910 = vmul.f32 %v3840, %v3882
    %v3911 = vmul.f32 %v3841, %v3870
    %v3912 = vmul.f32 %v3842, %v3874
    %v3913 = vmul.f32 %v3843, %v3878
    %v3914 = vmul.f32 %v3844, %v3882
    %v3915 = vlaneseq
    %v3916 = vshrl.u32 %v3915, 7
    %v3917 = vsub.s32 1, %v3916
    %v3918 = vrot.slane %v2902, %v3917
    %v3919 = vlaneseq
    %v3920 = vshrl.u32 %v3919, 7
    %v3921 = vsub.s32 5, %v3920
    %v3922 = vrot.slane %v2902, %v3921
    %v3923 = vlaneseq
    %v3924 = vshrl.u32 %v3923, 7
    %v3925 = vsub.s32 1, %v3924
    %v3926 = vrot.slane %v2903, %v3925
    %v3927 = vlaneseq
    %v3928 = vshrl.u32 %v3927, 7
    %v3929 = vsub.s32 5, %v3928
    %v3930 = vrot.slane %v2903, %v3929
    %v3935 = vlaneseq
    %v3936 = vshrl.u32 %v3935, 7
    %v3937 = vsub.s32 1, %v3936
    %v3938 = vrot.slane %v3918, %v3937
    %v3939 = vlaneseq
    %v3940 = vshrl.u32 %v3939, 7
    %v3941 = vsub.s32 1, %v3940
    %v3942 = vrot.slane %v3922, %v3941
    %v3943 = vlaneseq
    %v3944 = vshrl.u32 %v3943, 7
    %v3945 = vsub.s32 1, %v3944
    %v3946 = vrot.slane %v3926, %v3945
    %v3947 = vlaneseq
    %v3948 = vshrl.u32 %v3947, 7
    %v3949 = vsub.s32 1, %v3948
    %v3950 = vrot.slane %v3930, %v3949
    %v3951 = vadd.f32 %v3883, %v3938
    %v3952 = vadd.f32 %v3884, %v3942
    %v3953 = vadd.f32 %v3885, %v3946
    %v3954 = vadd.f32 %v3886, %v3950
    %v3955 = vadd.f32 %v3887, %v3938
    %v3956 = vadd.f32 %v3888, %v3942
    %v3957 = vadd.f32 %v3889, %v3946
    %v3958 = vadd.f32 %v3890, %v3950
    %v3959 = vadd.f32 %v3891, %v3938
    %v3960 = vadd.f32 %v3892, %v3942
    %v3961 = vadd.f32 %v3893, %v3946
    %v3962 = vadd.f32 %v3894, %v3950
    %v3963 = vadd.f32 %v3895, %v3938
    %v3964 = vadd.f32 %v3896, %v3942
    %v3965 = vadd.f32 %v3897, %v3946
    %v3966 = vadd.f32 %v3898, %v3950
    %v3967 = vadd.f32 %v3899, %v3938
    %v3968 = vadd.f32 %v3900, %v3942
    %v3969 = vadd.f32 %v3901, %v3946
    %v3970 = vadd.f32 %v3902, %v3950
    %v3971 = vadd.f32 %v3903, %v3938
    %v3972 = vadd.f32 %v3904, %v3942
    %v3973 = vadd.f32 %v3905, %v3946
    %v3974 = vadd.f32 %v3906, %v3950
    %v3975 = vadd.f32 %v3907, %v3938
    %v3976 = vadd.f32 %v3908, %v3942
    %v3977 = vadd.f32 %v3909, %v3946
    %v3978 = vadd.f32 %v3910, %v3950
    %v3979 = vadd.f32 %v3911, %v3938
    %v3980 = vadd.f32 %v3912, %v3942
    %v3981 = vadd.f32 %v3913, %v3946
    %v3982 = vadd.f32 %v3914, %v3950
    %v4015 = vsel %vm1269, %v3374, %v3349
    %v4016 = vsel %vm1271, %v3399, %v4015
    %v4017 = vsel %vm1273, %v3424, %v4016
    %v4018 = vsel %vm1275, %v3449, %v4017
    %v4019 = vsel %vm1277, %v3474, %v4018
    %v4020 = vsel %vm1279, %v3499, %v4019
    %v4021 = vsel %vm1281, %v3524, %v4020
    %v4022 = vsel %vm1269, %v3380, %v3355
    %v4023 = vsel %vm1271, %v3405, %v4022
    %v4024 = vsel %vm1273, %v3430, %v4023
    %v4025 = vsel %vm1275, %v3455, %v4024
    %v4026 = vsel %vm1277, %v3480, %v4025
    %v4027 = vsel %vm1279, %v3505, %v4026
    %v4028 = vsel %vm1281, %v3530, %v4027
    %v4029 = vsel %vm1269, %v3386, %v3361
    %v4030 = vsel %vm1271, %v3411, %v4029
    %v4031 = vsel %vm1273, %v3436, %v4030
    %v4032 = vsel %vm1275, %v3461, %v4031
    %v4033 = vsel %vm1277, %v3486, %v4032
    %v4034 = vsel %vm1279, %v3511, %v4033
    %v4035 = vsel %vm1281, %v3536, %v4034
    %v4036 = vsel %vm1269, %v3393, %v3368
    %v4037 = vsel %vm1271, %v3418, %v4036
    %v4038 = vsel %vm1273, %v3443, %v4037
    %v4039 = vsel %vm1275, %v3468, %v4038
    %v4040 = vsel %vm1277, %v3493, %v4039
    %v4041 = vsel %vm1279, %v3518, %v4040
    %v4042 = vsel %vm1281, %v3543, %v4041
    %v4047 = vadd.f32 %v4021, %v4028
    %v4048 = vadd.f32 %v4047, %v4035
    %v4049 = vsel %vm555, %v4042, 0.0
    %v4050 = vadd.f32 %v4048, %v4049
    %4051 = vadd.xlane.f32.xlu0 %v4050
    %v4052 = vpop.xlane.xlu0 %4051
    %v4053 = vmul.f32 %v4052, %v3614
    %v4055 = vrot.slane %v4053, 1
    %v4056 = vrot.slane %v4053, 2
    %v4057 = vrot.slane %v4053, 3
    %v4058 = vrot.slane %v4053, 4
    %v4059 = vrot.slane %v4053, 5
    %v4060 = vrot.slane %v4053, 6
    %v4061 = vrot.slane %v4053, 7
    %v4070 = vsub.f32 %v3349, %v4053
    %v4071 = vsub.f32 %v3355, %v4053
    %v4072 = vsub.f32 %v3361, %v4053
    %v4073 = vsub.f32 %v3368, %v4053
    %v4074 = vsub.f32 %v3374, %v4055
    %v4075 = vsub.f32 %v3380, %v4055
    %v4076 = vsub.f32 %v3386, %v4055
    %v4077 = vsub.f32 %v3393, %v4055
    %v4078 = vsub.f32 %v3399, %v4056
    %v4079 = vsub.f32 %v3405, %v4056
    %v4080 = vsub.f32 %v3411, %v4056
    %v4081 = vsub.f32 %v3418, %v4056
    %v4082 = vsub.f32 %v3424, %v4057
    %v4083 = vsub.f32 %v3430, %v4057
    %v4084 = vsub.f32 %v3436, %v4057
    %v4085 = vsub.f32 %v3443, %v4057
    %v4086 = vsub.f32 %v3449, %v4058
    %v4087 = vsub.f32 %v3455, %v4058
    %v4088 = vsub.f32 %v3461, %v4058
    %v4089 = vsub.f32 %v3468, %v4058
    %v4090 = vsub.f32 %v3474, %v4059
    %v4091 = vsub.f32 %v3480, %v4059
    %v4092 = vsub.f32 %v3486, %v4059
    %v4093 = vsub.f32 %v3493, %v4059
    %v4094 = vsub.f32 %v3499, %v4060
    %v4095 = vsub.f32 %v3505, %v4060
    %v4096 = vsub.f32 %v3511, %v4060
    %v4097 = vsub.f32 %v3518, %v4060
    %v4098 = vsub.f32 %v3524, %v4061
    %v4099 = vsub.f32 %v3530, %v4061
    %v4100 = vsub.f32 %v3536, %v4061
    %v4101 = vsub.f32 %v3543, %v4061
    %v4102 = vmul.f32 %v4070, %v4070
    %v4103 = vmul.f32 %v4071, %v4071
    %v4104 = vmul.f32 %v4072, %v4072
    %v4105 = vmul.f32 %v4073, %v4073
    %v4106 = vmul.f32 %v4074, %v4074
    %v4107 = vmul.f32 %v4075, %v4075
    %v4108 = vmul.f32 %v4076, %v4076
    %v4109 = vmul.f32 %v4077, %v4077
    %v4110 = vmul.f32 %v4078, %v4078
    %v4111 = vmul.f32 %v4079, %v4079
    %v4112 = vmul.f32 %v4080, %v4080
    %v4113 = vmul.f32 %v4081, %v4081
    %v4114 = vmul.f32 %v4082, %v4082
    %v4115 = vmul.f32 %v4083, %v4083
    %v4116 = vmul.f32 %v4084, %v4084
    %v4117 = vmul.f32 %v4085, %v4085
    %v4118 = vmul.f32 %v4086, %v4086
    %v4119 = vmul.f32 %v4087, %v4087
    %v4120 = vmul.f32 %v4088, %v4088
    %v4121 = vmul.f32 %v4089, %v4089
    %v4122 = vmul.f32 %v4090, %v4090
    %v4123 = vmul.f32 %v4091, %v4091
    %v4124 = vmul.f32 %v4092, %v4092
    %v4125 = vmul.f32 %v4093, %v4093
    %v4126 = vmul.f32 %v4094, %v4094
    %v4127 = vmul.f32 %v4095, %v4095
    %v4128 = vmul.f32 %v4096, %v4096
    %v4129 = vmul.f32 %v4097, %v4097
    %v4130 = vmul.f32 %v4098, %v4098
    %v4131 = vmul.f32 %v4099, %v4099
    %v4132 = vmul.f32 %v4100, %v4100
    %v4133 = vmul.f32 %v4101, %v4101
    %v4166 = vrot.slane %v4106, 7
    %v4167 = vsel %vm1269, %v4166, %v4102
    %v4168 = vrot.slane %v4110, 6
    %v4169 = vsel %vm1271, %v4168, %v4167
    %v4170 = vrot.slane %v4114, 5
    %v4171 = vsel %vm1273, %v4170, %v4169
    %v4172 = vrot.slane %v4118, 4
    %v4173 = vsel %vm1275, %v4172, %v4171
    %v4174 = vrot.slane %v4122, 3
    %v4175 = vsel %vm1277, %v4174, %v4173
    %v4176 = vrot.slane %v4126, 2
    %v4177 = vsel %vm1279, %v4176, %v4175
    %v4178 = vrot.slane %v4130, 1
    %v4179 = vsel %vm1281, %v4178, %v4177
    %v4180 = vrot.slane %v4107, 7
    %v4181 = vsel %vm1269, %v4180, %v4103
    %v4182 = vrot.slane %v4111, 6
    %v4183 = vsel %vm1271, %v4182, %v4181
    %v4184 = vrot.slane %v4115, 5
    %v4185 = vsel %vm1273, %v4184, %v4183
    %v4186 = vrot.slane %v4119, 4
    %v4187 = vsel %vm1275, %v4186, %v4185
    %v4188 = vrot.slane %v4123, 3
    %v4189 = vsel %vm1277, %v4188, %v4187
    %v4190 = vrot.slane %v4127, 2
    %v4191 = vsel %vm1279, %v4190, %v4189
    %v4192 = vrot.slane %v4131, 1
    %v4193 = vsel %vm1281, %v4192, %v4191
    %v4194 = vrot.slane %v4108, 7
    %v4195 = vsel %vm1269, %v4194, %v4104
    %v4196 = vrot.slane %v4112, 6
    %v4197 = vsel %vm1271, %v4196, %v4195
    %v4198 = vrot.slane %v4116, 5
    %v4199 = vsel %vm1273, %v4198, %v4197
    %v4200 = vrot.slane %v4120, 4
    %v4201 = vsel %vm1275, %v4200, %v4199
    %v4202 = vrot.slane %v4124, 3
    %v4203 = vsel %vm1277, %v4202, %v4201
    %v4204 = vrot.slane %v4128, 2
    %v4205 = vsel %vm1279, %v4204, %v4203
    %v4206 = vrot.slane %v4132, 1
    %v4207 = vsel %vm1281, %v4206, %v4205
    %v4208 = vrot.slane %v4109, 7
    %v4209 = vsel %vm1269, %v4208, %v4105
    %v4210 = vrot.slane %v4113, 6
    %v4211 = vsel %vm1271, %v4210, %v4209
    %v4212 = vrot.slane %v4117, 5
    %v4213 = vsel %vm1273, %v4212, %v4211
    %v4214 = vrot.slane %v4121, 4
    %v4215 = vsel %vm1275, %v4214, %v4213
    %v4216 = vrot.slane %v4125, 3
    %v4217 = vsel %vm1277, %v4216, %v4215
    %v4218 = vrot.slane %v4129, 2
    %v4219 = vsel %vm1279, %v4218, %v4217
    %v4220 = vrot.slane %v4133, 1
    %v4221 = vsel %vm1281, %v4220, %v4219
    %v4226 = vadd.f32 %v4179, %v4193
    %v4227 = vadd.f32 %v4226, %v4207
    %v4228 = vsel %vm555, %v4221, 0.0
    %v4229 = vadd.f32 %v4227, %v4228
    %4230 = vadd.xlane.f32.xlu0 %v4229
    %v4231 = vpop.xlane.xlu0 %4230
    %v4232 = vmul.f32 %v4231, %v3614
    %v4233 = vadd.f32 %v4232, 1e-05
    %v4234 = vrsqrt.pop %v4233
    %v4236 = vrot.slane %v4234, 1
    %v4237 = vrot.slane %v4234, 2
    %v4238 = vrot.slane %v4234, 3
    %v4239 = vrot.slane %v4234, 4
    %v4240 = vrot.slane %v4234, 5
    %v4241 = vrot.slane %v4234, 6
    %v4242 = vrot.slane %v4234, 7
    %v4251 = vmul.f32 %v4070, %v4234
    %v4252 = vmul.f32 %v4071, %v4234
    %v4253 = vmul.f32 %v4072, %v4234
    %v4254 = vmul.f32 %v4073, %v4234
    %v4255 = vmul.f32 %v4074, %v4236
    %v4256 = vmul.f32 %v4075, %v4236
    %v4257 = vmul.f32 %v4076, %v4236
    %v4258 = vmul.f32 %v4077, %v4236
    %v4259 = vmul.f32 %v4078, %v4237
    %v4260 = vmul.f32 %v4079, %v4237
    %v4261 = vmul.f32 %v4080, %v4237
    %v4262 = vmul.f32 %v4081, %v4237
    %v4263 = vmul.f32 %v4082, %v4238
    %v4264 = vmul.f32 %v4083, %v4238
    %v4265 = vmul.f32 %v4084, %v4238
    %v4266 = vmul.f32 %v4085, %v4238
    %v4267 = vmul.f32 %v4086, %v4239
    %v4268 = vmul.f32 %v4087, %v4239
    %v4269 = vmul.f32 %v4088, %v4239
    %v4270 = vmul.f32 %v4089, %v4239
    %v4271 = vmul.f32 %v4090, %v4240
    %v4272 = vmul.f32 %v4091, %v4240
    %v4273 = vmul.f32 %v4092, %v4240
    %v4274 = vmul.f32 %v4093, %v4240
    %v4275 = vmul.f32 %v4094, %v4241
    %v4276 = vmul.f32 %v4095, %v4241
    %v4277 = vmul.f32 %v4096, %v4241
    %v4278 = vmul.f32 %v4097, %v4241
    %v4279 = vmul.f32 %v4098, %v4242
    %v4280 = vmul.f32 %v4099, %v4242
    %v4281 = vmul.f32 %v4100, %v4242
    %v4282 = vmul.f32 %v4101, %v4242
    %v4283 = vlaneseq
    %v4284 = vshrl.u32 %v4283, 7
    %v4285 = vsub.s32 2, %v4284
    %v4286 = vrot.slane %v2902, %v4285
    %v4287 = vlaneseq
    %v4288 = vshrl.u32 %v4287, 7
    %v4289 = vsub.s32 6, %v4288
    %v4290 = vrot.slane %v2902, %v4289
    %v4291 = vlaneseq
    %v4292 = vshrl.u32 %v4291, 7
    %v4293 = vsub.s32 2, %v4292
    %v4294 = vrot.slane %v2903, %v4293
    %v4295 = vlaneseq
    %v4296 = vshrl.u32 %v4295, 7
    %v4297 = vsub.s32 6, %v4296
    %v4298 = vrot.slane %v2903, %v4297
    %v4303 = vlaneseq
    %v4304 = vshrl.u32 %v4303, 7
    %v4305 = vsub.s32 2, %v4304
    %v4306 = vrot.slane %v4286, %v4305
    %v4307 = vlaneseq
    %v4308 = vshrl.u32 %v4307, 7
    %v4309 = vsub.s32 2, %v4308
    %v4310 = vrot.slane %v4290, %v4309
    %v4311 = vlaneseq
    %v4312 = vshrl.u32 %v4311, 7
    %v4313 = vsub.s32 2, %v4312
    %v4314 = vrot.slane %v4294, %v4313
    %v4315 = vlaneseq
    %v4316 = vshrl.u32 %v4315, 7
    %v4317 = vsub.s32 2, %v4316
    %v4318 = vrot.slane %v4298, %v4317
    %v4319 = vmul.f32 %v4251, %v4306
    %v4320 = vmul.f32 %v4252, %v4310
    %v4321 = vmul.f32 %v4253, %v4314
    %v4322 = vmul.f32 %v4254, %v4318
    %v4323 = vmul.f32 %v4255, %v4306
    %v4324 = vmul.f32 %v4256, %v4310
    %v4325 = vmul.f32 %v4257, %v4314
    %v4326 = vmul.f32 %v4258, %v4318
    %v4327 = vmul.f32 %v4259, %v4306
    %v4328 = vmul.f32 %v4260, %v4310
    %v4329 = vmul.f32 %v4261, %v4314
    %v4330 = vmul.f32 %v4262, %v4318
    %v4331 = vmul.f32 %v4263, %v4306
    %v4332 = vmul.f32 %v4264, %v4310
    %v4333 = vmul.f32 %v4265, %v4314
    %v4334 = vmul.f32 %v4266, %v4318
    %v4335 = vmul.f32 %v4267, %v4306
    %v4336 = vmul.f32 %v4268, %v4310
    %v4337 = vmul.f32 %v4269, %v4314
    %v4338 = vmul.f32 %v4270, %v4318
    %v4339 = vmul.f32 %v4271, %v4306
    %v4340 = vmul.f32 %v4272, %v4310
    %v4341 = vmul.f32 %v4273, %v4314
    %v4342 = vmul.f32 %v4274, %v4318
    %v4343 = vmul.f32 %v4275, %v4306
    %v4344 = vmul.f32 %v4276, %v4310
    %v4345 = vmul.f32 %v4277, %v4314
    %v4346 = vmul.f32 %v4278, %v4318
    %v4347 = vmul.f32 %v4279, %v4306
    %v4348 = vmul.f32 %v4280, %v4310
    %v4349 = vmul.f32 %v4281, %v4314
    %v4350 = vmul.f32 %v4282, %v4318
    %v4351 = vlaneseq
    %v4352 = vshrl.u32 %v4351, 7
    %v4353 = vsub.s32 3, %v4352
    %v4354 = vrot.slane %v2902, %v4353
    %v4355 = vlaneseq
    %v4356 = vshrl.u32 %v4355, 7
    %v4357 = vsub.s32 7, %v4356
    %v4358 = vrot.slane %v2902, %v4357
    %v4359 = vlaneseq
    %v4360 = vshrl.u32 %v4359, 7
    %v4361 = vsub.s32 3, %v4360
    %v4362 = vrot.slane %v2903, %v4361
    %v4363 = vlaneseq
    %v4364 = vshrl.u32 %v4363, 7
    %v4365 = vsub.s32 7, %v4364
    %v4366 = vrot.slane %v2903, %v4365
    %v4371 = vlaneseq
    %v4372 = vshrl.u32 %v4371, 7
    %v4373 = vsub.s32 3, %v4372
    %v4374 = vrot.slane %v4354, %v4373
    %v4375 = vlaneseq
    %v4376 = vshrl.u32 %v4375, 7
    %v4377 = vsub.s32 3, %v4376
    %v4378 = vrot.slane %v4358, %v4377
    %v4379 = vlaneseq
    %v4380 = vshrl.u32 %v4379, 7
    %v4381 = vsub.s32 3, %v4380
    %v4382 = vrot.slane %v4362, %v4381
    %v4383 = vlaneseq
    %v4384 = vshrl.u32 %v4383, 7
    %v4385 = vsub.s32 3, %v4384
    %v4386 = vrot.slane %v4366, %v4385
    %v4387 = vadd.f32 %v4319, %v4374
    %v4388 = vadd.f32 %v4320, %v4378
    %v4389 = vadd.f32 %v4321, %v4382
    %v4390 = vadd.f32 %v4322, %v4386
    %v4391 = vadd.f32 %v4323, %v4374
    %v4392 = vadd.f32 %v4324, %v4378
    %v4393 = vadd.f32 %v4325, %v4382
    %v4394 = vadd.f32 %v4326, %v4386
    %v4395 = vadd.f32 %v4327, %v4374
    %v4396 = vadd.f32 %v4328, %v4378
    %v4397 = vadd.f32 %v4329, %v4382
    %v4398 = vadd.f32 %v4330, %v4386
    %v4399 = vadd.f32 %v4331, %v4374
    %v4400 = vadd.f32 %v4332, %v4378
    %v4401 = vadd.f32 %v4333, %v4382
    %v4402 = vadd.f32 %v4334, %v4386
    %v4403 = vadd.f32 %v4335, %v4374
    %v4404 = vadd.f32 %v4336, %v4378
    %v4405 = vadd.f32 %v4337, %v4382
    %v4406 = vadd.f32 %v4338, %v4386
    %v4407 = vadd.f32 %v4339, %v4374
    %v4408 = vadd.f32 %v4340, %v4378
    %v4409 = vadd.f32 %v4341, %v4382
    %v4410 = vadd.f32 %v4342, %v4386
    %v4411 = vadd.f32 %v4343, %v4374
    %v4412 = vadd.f32 %v4344, %v4378
    %v4413 = vadd.f32 %v4345, %v4382
    %v4414 = vadd.f32 %v4346, %v4386
    %v4415 = vadd.f32 %v4347, %v4374
    %v4416 = vadd.f32 %v4348, %v4378
    %v4417 = vadd.f32 %v4349, %v4382
    %v4418 = vadd.f32 %v4350, %v4386
    %v4419 = vmul.f32 %v3951, %v4387
    %v4420 = vmul.f32 %v3952, %v4388
    %v4421 = vmul.f32 %v3953, %v4389
    %v4422 = vmul.f32 %v3954, %v4390
    %v4423 = vmul.f32 %v3955, %v4391
    %v4424 = vmul.f32 %v3956, %v4392
    %v4425 = vmul.f32 %v3957, %v4393
    %v4426 = vmul.f32 %v3958, %v4394
    %v4427 = vmul.f32 %v3959, %v4395
    %v4428 = vmul.f32 %v3960, %v4396
    %v4429 = vmul.f32 %v3961, %v4397
    %v4430 = vmul.f32 %v3962, %v4398
    %v4431 = vmul.f32 %v3963, %v4399
    %v4432 = vmul.f32 %v3964, %v4400
    %v4433 = vmul.f32 %v3965, %v4401
    %v4434 = vmul.f32 %v3966, %v4402
    %v4435 = vmul.f32 %v3967, %v4403
    %v4436 = vmul.f32 %v3968, %v4404
    %v4437 = vmul.f32 %v3969, %v4405
    %v4438 = vmul.f32 %v3970, %v4406
    %v4439 = vmul.f32 %v3971, %v4407
    %v4440 = vmul.f32 %v3972, %v4408
    %v4441 = vmul.f32 %v3973, %v4409
    %v4442 = vmul.f32 %v3974, %v4410
    %v4443 = vmul.f32 %v3975, %v4411
    %v4444 = vmul.f32 %v3976, %v4412
    %v4445 = vmul.f32 %v3977, %v4413
    %v4446 = vmul.f32 %v3978, %v4414
    %v4447 = vmul.f32 %v3979, %v4415
    %v4448 = vmul.f32 %v3980, %v4416
    %v4449 = vmul.f32 %v3981, %v4417
    %v4450 = vmul.f32 %v3982, %v4418
    %v4483 = vrot.slane %v4423, 7
    %v4484 = vsel %vm1269, %v4483, %v4419
    %v4485 = vrot.slane %v4427, 6
    %v4486 = vsel %vm1271, %v4485, %v4484
    %v4487 = vrot.slane %v4431, 5
    %v4488 = vsel %vm1273, %v4487, %v4486
    %v4489 = vrot.slane %v4435, 4
    %v4490 = vsel %vm1275, %v4489, %v4488
    %v4491 = vrot.slane %v4439, 3
    %v4492 = vsel %vm1277, %v4491, %v4490
    %v4493 = vrot.slane %v4443, 2
    %v4494 = vsel %vm1279, %v4493, %v4492
    %v4495 = vrot.slane %v4447, 1
    %v4496 = vsel %vm1281, %v4495, %v4494
    %v4497 = vrot.slane %v4424, 7
    %v4498 = vsel %vm1269, %v4497, %v4420
    %v4499 = vrot.slane %v4428, 6
    %v4500 = vsel %vm1271, %v4499, %v4498
    %v4501 = vrot.slane %v4432, 5
    %v4502 = vsel %vm1273, %v4501, %v4500
    %v4503 = vrot.slane %v4436, 4
    %v4504 = vsel %vm1275, %v4503, %v4502
    %v4505 = vrot.slane %v4440, 3
    %v4506 = vsel %vm1277, %v4505, %v4504
    %v4507 = vrot.slane %v4444, 2
    %v4508 = vsel %vm1279, %v4507, %v4506
    %v4509 = vrot.slane %v4448, 1
    %v4510 = vsel %vm1281, %v4509, %v4508
    %v4511 = vrot.slane %v4425, 7
    %v4512 = vsel %vm1269, %v4511, %v4421
    %v4513 = vrot.slane %v4429, 6
    %v4514 = vsel %vm1271, %v4513, %v4512
    %v4515 = vrot.slane %v4433, 5
    %v4516 = vsel %vm1273, %v4515, %v4514
    %v4517 = vrot.slane %v4437, 4
    %v4518 = vsel %vm1275, %v4517, %v4516
    %v4519 = vrot.slane %v4441, 3
    %v4520 = vsel %vm1277, %v4519, %v4518
    %v4521 = vrot.slane %v4445, 2
    %v4522 = vsel %vm1279, %v4521, %v4520
    %v4523 = vrot.slane %v4449, 1
    %v4524 = vsel %vm1281, %v4523, %v4522
    %v4525 = vrot.slane %v4426, 7
    %v4526 = vsel %vm1269, %v4525, %v4422
    %v4527 = vrot.slane %v4430, 6
    %v4528 = vsel %vm1271, %v4527, %v4526
    %v4529 = vrot.slane %v4434, 5
    %v4530 = vsel %vm1273, %v4529, %v4528
    %v4531 = vrot.slane %v4438, 4
    %v4532 = vsel %vm1275, %v4531, %v4530
    %v4533 = vrot.slane %v4442, 3
    %v4534 = vsel %vm1277, %v4533, %v4532
    %v4535 = vrot.slane %v4446, 2
    %v4536 = vsel %vm1279, %v4535, %v4534
    %v4537 = vrot.slane %v4450, 1
    %v4538 = vsel %vm1281, %v4537, %v4536
    %v4543 = vadd.f32 %v4496, %v4510
    %v4544 = vadd.f32 %v4543, %v4524
    %v4545 = vsel %vm555, %v4538, 0.0
    %v4546 = vadd.f32 %v4544, %v4545
    %4547 = vadd.xlane.f32.xlu0 %v4546
    %v4548 = vpop.xlane.xlu0 %4547
    %v4550 = vlaneseq
    %v4551 = vshrl.u32 %v4550, 7
    %v4552 = vsub.s32 %v1236, %v4551
    %v4553 = vrot.slane %v4548, %v4552
    %vm4555 = vcmask 57344
    %4556 = vst.msk [vmem:[#allocation12] sm:$0x1] %vm4555, %v4553
    // Predicated region
    $region50: #{tpu_custom_call.1} parent=1 // pred_check
      _
    $region51: #{tpu_custom_call.1} parent=1 // pred_check_branch
      %4558 = sbr.rel (0) target = $region53
    $region52: #{tpu_custom_call.1} parent=1 // pred_region
      %s4560 = ssub.s32 16, 16
      %4561 = vsyncadd [#allocation4], %s4560
      %s4563 = sshll.u32 [#allocation12], 4
      %s4564 = int_to_ptr.vmem [resolvable:$true] %s4563
      %4566 = dma.vmem_to_hbm [thread:$0]  %s4564, 16, %s7, [#allocation4]
    $region53: #{tpu_custom_call.1} parent=1 // pred_fallthru
      _
    // Predicated region
    $region54: #{tpu_custom_call.1} parent=1 // pred_check
      _
    $region55: #{tpu_custom_call.1} parent=1 // pred_check_branch
      %4568 = sbr.rel (0) target = $region57
    $region56: #{tpu_custom_call.1} parent=1 // pred_region
      %4569 = dma.done [#allocation4], 16
    $region57: #{tpu_custom_call.1} parent=1 // pred_fallthru
      _
    %4570 = vsyncpa [#allocation3], 1
    %4571 = vsyncpa [#allocation7], 1
    %4572 = vsyncpa [#allocation10], 1
    %4573 = vsyncpa [#allocation4], 1
    %4574 = vsyncpa [#allocation5], 1

</llo_original>
